<compile_context>
chip_gen: v6e
topology: v6e:2x2x1
jax: 0.10.0
libtpu: 0.0.40
codegen_flags: <defaults>
</compile_context>

<pallas_src>
import jax
import jax.numpy as jnp
from jax.experimental import pallas as pl
from jax.experimental.pallas import tpu as pltpu

EPS = 1e-5


def _round_up(x, m):
    return (x + m - 1) // m * m


# --------------------------------------------------------------------------
# Pallas kernels
# --------------------------------------------------------------------------
def _conv_bias_pool_kernel(x_ref, w_ref, b_ref, o_ref):
    """Fused conv-as-matmul (BN scale pre-folded into w) + 2x2 max-pool + bias.

    x_ref : (nwin, TM, K)  bf16  im2col patches, pool-window-position major
    w_ref : (K, C)         bf16  conv weights * BN scale (VMEM-resident)
    b_ref : (1, C)         f32   fused eval-mode BN bias (window-invariant)
    o_ref : (TM, C)        bf16  pooled, BN-affined activations
    """
    nwin, tm, k = x_ref.shape
    c = w_ref.shape[1]
    # One MXU pass over all 4 window positions (major-dim collapse is
    # layout-free because TM is a multiple of the bf16 sublane tile).
    x = x_ref[...].reshape(nwin * tm, k)
    y = jnp.dot(x, w_ref[...], preferred_element_type=jnp.float32)
    y = y.reshape(nwin, tm, c)
    m = y[0]
    for i in range(1, nwin):                      # 2x2 max-pool over window axis
        m = jnp.maximum(m, y[i])
    # Bias hoisted after the max: max_i(v_i + b) == max_i(v_i) + b.
    o_ref[...] = (m + b_ref[...]).astype(o_ref.dtype)


def _head_kernel(x_ref, w3_ref, b3_ref, w4_ref, b4_ref, o_ref):
    """Fused conv3 (BN3 scale folded into w3) + bias + ReLU -> conv4.

    The (TM, 512) hidden activation never leaves VMEM/vregs.
    """
    h = jnp.dot(x_ref[...], w3_ref[...], preferred_element_type=jnp.float32)
    h = jnp.maximum(h + b3_ref[...], 0.0)
    y = jnp.dot(h.astype(jnp.bfloat16), w4_ref[...],
                preferred_element_type=jnp.float32)
    o_ref[...] = y + b4_ref[...]


# --------------------------------------------------------------------------
# Pallas wrappers
# --------------------------------------------------------------------------
def conv_bn_pool(patches, w2d, scale, bias, *, max_tile_m):
    """patches: (nwin, M, K) bf16; w2d: (K, C) f32; scale/bias: (C,) f32.

    Returns (M, C) bf16 pooled, BN-affined activations.
    """
    nwin, M, K = patches.shape
    C = w2d.shape[1]
    # Fold the BN scale into the conv weights in f32 *before* the bf16 cast
    # (conv is linear, so max_i(dot(x_i, w*s)) == max_i(s*dot(x_i, w))).
    w = (w2d * scale[None, :]).astype(jnp.bfloat16)
    b = bias.reshape(1, C).astype(jnp.float32)
    patches = patches.astype(jnp.bfloat16)        # no-op if already bf16

    # tile_m scales with batch; multiple of 16 keeps the in-kernel
    # (nwin,TM,K)->(nwin*TM,K) collapse layout-free for bf16 sublane packing.
    tile_m = max(16, (min(M, max_tile_m) // 16) * 16)
    m_pad = _round_up(M, tile_m)
    if m_pad != M:
        patches = jnp.pad(patches, ((0, 0), (0, m_pad - M), (0, 0)))

    out = pl.pallas_call(
        _conv_bias_pool_kernel,
        out_shape=jax.ShapeDtypeStruct((m_pad, C), jnp.bfloat16),
        grid=(m_pad // tile_m,),
        in_specs=[
            pl.BlockSpec((nwin, tile_m, K), lambda m: (0, m, 0)),
            pl.BlockSpec((K, C), lambda m: (0, 0)),   # constant -> VMEM-resident
            pl.BlockSpec((1, C), lambda m: (0, 0)),   # constant -> VMEM-resident
        ],
        out_specs=pl.BlockSpec((tile_m, C), lambda m: (m, 0)),
        compiler_params=pltpu.CompilerParams(dimension_semantics=("parallel",)),
    )(patches, w, b)
    return out[:M]


def head(x, w3, s3, b3, w4, b4, *, max_tile_m=512):
    """Fused conv3+BN3+ReLU+conv4: x (M, 1024) -> logits (M, 128) f32."""
    M, K = x.shape
    C3 = w3.shape[1]
    C4 = w4.shape[1]
    w3f = (w3 * s3[None, :]).astype(jnp.bfloat16)   # BN3 scale folded, f32 math
    b3r = b3.reshape(1, C3).astype(jnp.float32)
    w4b = w4.astype(jnp.bfloat16)
    b4r = b4.reshape(1, C4).astype(jnp.float32)
    x = x.astype(jnp.bfloat16)

    tile_m = max(16, (min(_round_up(M, 16), max_tile_m) // 16) * 16)
    m_pad = _round_up(M, tile_m)
    if m_pad != M:
        x = jnp.pad(x, ((0, m_pad - M), (0, 0)))

    out = pl.pallas_call(
        _head_kernel,
        out_shape=jax.ShapeDtypeStruct((m_pad, C4), jnp.float32),
        grid=(m_pad // tile_m,),
        in_specs=[
            pl.BlockSpec((tile_m, K), lambda m: (m, 0)),
            pl.BlockSpec((K, C3), lambda m: (0, 0)),
            pl.BlockSpec((1, C3), lambda m: (0, 0)),
            pl.BlockSpec((C3, C4), lambda m: (0, 0)),
            pl.BlockSpec((1, C4), lambda m: (0, 0)),
        ],
        out_specs=pl.BlockSpec((tile_m, C4), lambda m: (m, 0)),
        compiler_params=pltpu.CompilerParams(dimension_semantics=("parallel",)),
    )(x, w3f, b3r, w4b, b4r)
    return out[:M]


# --------------------------------------------------------------------------
# Glue: im2col / pool-window-major layout / weight packing (plain JAX)
# --------------------------------------------------------------------------
def _im2col(x, kh, kw):
    # x: (N, H, W, C) NHWC, VALID, stride 1 -> (N, ho, wo, kh*kw*C)
    N, H, W, C = x.shape
    ho, wo = H - kh + 1, W - kw + 1
    cols = [x[:, i:i + ho, j:j + wo, :] for i in range(kh) for j in range(kw)]
    return jnp.concatenate(cols, axis=-1)


def _window_major(p):
    # (N, H, W, K) with even H, W  ->  (4, N*(H//2)*(W//2), K)
    # Leading axis = the 4 positions of each 2x2 pool window.
    N, H, W, K = p.shape
    h, w = H // 2, W // 2
    p = p.reshape(N, h, 2, w, 2, K).transpose(0, 2, 4, 1, 3, 5)   # (N,2,2,h,w,K)
    p = p.reshape(N, 4, h * w, K).transpose(1, 0, 2, 3)           # (4,N,h*w,K)
    return p.reshape(4, N * h * w, K)


def _conv_w2d(w_oihw, cin_pad, cout_pad):
    # (Cout,Cin,KH,KW) -> zero-pad channels -> (KH*KW*Cin_pad, Cout_pad) f32
    cout, cin, kh, kw = w_oihw.shape
    w = jnp.zeros((cout_pad, cin_pad, kh, kw), jnp.float32)
    w = w.at[:cout, :cin].set(w_oihw)
    return jnp.transpose(w, (2, 3, 1, 0)).reshape(kh * kw * cin_pad, cout_pad)


def _pad1(v, n):
    return jnp.zeros((n,), jnp.float32).at[: v.shape[0]].set(v)


def _fuse_bn(conv_b, gamma, beta, mean, var):
    scale = gamma / jnp.sqrt(var + EPS)
    bias = scale * (conv_b - mean) + beta
    return scale, bias


# --------------------------------------------------------------------------
# Deterministic parameter initialization (synthetic weights)
# --------------------------------------------------------------------------
def _conv_params(key, cout, cin, k):
    k1, k2 = jax.random.split(key)
    w = jax.random.normal(k1, (cout, cin, k, k), jnp.float32) * 0.05
    b = jax.random.normal(k2, (cout,), jnp.float32) * 0.05
    return w, b


def _bn_params(key, c):
    k1, k2, k3, k4 = jax.random.split(key, 4)
    gamma = 1.0 + 0.1 * jax.random.normal(k1, (c,), jnp.float32)
    beta = 0.1 * jax.random.normal(k2, (c,), jnp.float32)
    mean = 0.1 * jax.random.normal(k3, (c,), jnp.float32)
    var = 1.0 + 0.1 * jax.random.uniform(k4, (c,), jnp.float32)
    return gamma, beta, mean, var


def init_params(key):
    ks = jax.random.split(key, 7)
    p = {}
    p["w1"], p["b1"] = _conv_params(ks[0], 20, 1, 5)
    p["bn1"] = _bn_params(ks[1], 20)
    p["w2"], p["b2"] = _conv_params(ks[2], 50, 20, 5)
    p["bn2"] = _bn_params(ks[3], 50)
    p["w3"], p["b3"] = _conv_params(ks[4], 500, 50, 4)
    p["bn3"] = _bn_params(ks[5], 500)
    p["w4"], p["b4"] = _conv_params(ks[6], 10, 500, 1)
    return p


# --------------------------------------------------------------------------
# Forward pass (matches LeNet_teachehr.forward, eval-mode BN)
# --------------------------------------------------------------------------
def lenet_forward(x_nchw, p):
    N = x_nchw.shape[0]
    # bf16 BEFORE im2col / window-major transposes: halves the HBM traffic of
    # the XLA glue; the values reaching the MXU are identical to casting at
    # the kernel boundary (no arithmetic happens in the glue).
    x = jnp.transpose(x_nchw, (0, 2, 3, 1)).astype(jnp.bfloat16)  # NHWC (N,28,28,1)

    # ---- conv1 (1->20, 5x5) + BN1 + 2x2 maxpool ; Cout padded to 32 --------
    s1, b1 = _fuse_bn(p["b1"], *p["bn1"])
    w1 = _conv_w2d(p["w1"], 1, 32)                                # (25, 32) f32
    pa1 = _window_major(_im2col(x, 5, 5))                         # (4, N*144, 25)
    y1 = conv_bn_pool(pa1, w1, _pad1(s1, 32), _pad1(b1, 32),
                      max_tile_m=1152)                            # 8 images / step
    y1 = y1.reshape(N, 12, 12, 32)                                # pooled1 (bf16)

    # ---- conv2 (20->50, 5x5) + BN2 + 2x2 maxpool ; Cin/Cout -> 32/64 -------
    s2, b2 = _fuse_bn(p["b2"], *p["bn2"])
    w2 = _conv_w2d(p["w2"], 32, 64)                               # (800, 64) f32
    pa2 = _window_major(_im2col(y1, 5, 5))                        # (4, N*16, 800)
    # 512-row cap: (4,512,800) bf16 x2 buffers ~6.6 MB -> fits v5e's 16 MiB
    # default scoped VMEM and leaves headroom on v7x's 64 MiB part.
    y2 = conv_bn_pool(pa2, w2, _pad1(s2, 64), _pad1(b2, 64), max_tile_m=512)
    x3 = y2.reshape(N, 16 * 64)                                   # (N, 1024)

    # ---- conv3 (50->500, 4x4) + BN3 + ReLU fused with conv4 (500->10) ------
    s3, b3 = _fuse_bn(p["b3"], *p["bn3"])
    w3 = _conv_w2d(p["w3"], 64, 512)                              # (1024, 512) f32
    w4 = _conv_w2d(p["w4"], 512, 128)                             # (512, 128) f32
    logits = head(x3, w3, _pad1(s3, 512), _pad1(b3, 512),
                  w4, _pad1(p["b4"], 128), max_tile_m=512)        # (N, 128) f32

    return logits[:, :10]                                         # == x.view(N, -1)


# --------------------------------------------------------------------------
# Pure-JAX f32 reference (numerical sanity check)
# --------------------------------------------------------------------------
def lenet_reference(x_nchw, p):
    def conv(x, w, b):
        y = jax.lax.conv_general_dilated(
            x, w, (1, 1), "VALID", dimension_numbers=("NCHW", "OIHW", "NCHW"))
        return y + b.reshape(1, -1, 1, 1)

    def bn(x, stats):
        g, bt, m, v = (t.reshape(1, -1, 1, 1) for t in stats)
        return g * (x - m) / jnp.sqrt(v + EPS) + bt

    def mp(x):
        return jax.lax.reduce_window(
            x, -jnp.inf, jax.lax.max, (1, 1, 2, 2), (1, 1, 2, 2), "VALID")

    x = x_nchw.astype(jnp.float32)
    x = mp(bn(conv(x, p["w1"], p["b1"]), p["bn1"]))
    x = mp(bn(conv(x, p["w2"], p["b2"]), p["bn2"]))
    x = jnp.maximum(bn(conv(x, p["w3"], p["b3"]), p["bn3"]), 0.0)
    x = conv(x, p["w4"], p["b4"])
    return x.reshape(x.shape[0], -1)


# --------------------------------------------------------------------------
if __name__ == "__main__":
    key = jax.random.PRNGKey(0)
    kx, kp = jax.random.split(key)

    # LeNet geometry requires 28x28 single-channel input (MNIST-like).
    x = jax.random.normal(kx, (2, 1, 28, 28), jnp.float32)
    params = init_params(kp)

    out = jax.jit(lenet_forward)(x, params)
    out = jax.block_until_ready(out)
    assert out.shape == (2, 10), out.shape

    ref = lenet_reference(x, params)
    # bf16 MXU inputs (f32 accumulation) -> slightly looser tolerance than f32.
    assert jnp.allclose(out, ref, rtol=2e-2, atol=2e-2), (
        "max abs err = " + str(float(jnp.max(jnp.abs(out - ref)))))

    print("KERNEL_OK")
</pallas_src>

<mosaic_0001>
module attributes {stable_mosaic.version = 11 : i64} {
  func.func @_conv_bias_pool_kernel(%arg0: i32, %arg1: memref<4x288x25xbf16, #tpu.memory_space<vmem>>, %arg2: memref<25x32xbf16, #tpu.memory_space<vmem>>, %arg3: memref<1x32xf32, #tpu.memory_space<vmem>>, %arg4: memref<288x32xbf16, #tpu.memory_space<vmem>>) attributes {dimension_semantics = [#tpu.dimension_semantics<parallel>], iteration_bounds = array<i64: 1>, scalar_prefetch = 0 : i64, scratch_operands = 0 : i64, tpu.core_type = #tpu.core_type<tc>, window_params = [{transform_indices = @transform_0, window_bounds = array<i64: 4, 288, 25>}, {pipeline_mode = #tpu.pipeline_mode<synchronous>, transform_indices = @transform_1, window_bounds = array<i64: 25, 32>}, {pipeline_mode = #tpu.pipeline_mode<synchronous>, transform_indices = @transform_2, window_bounds = array<i64: 1, 32>}, {transform_indices = @transform_3, window_bounds = array<i64: 288, 32>}]} {
    %c0 = arith.constant 0 : index
    %c0_0 = arith.constant 0 : index
    %c0_1 = arith.constant 0 : index
    %0 = vector.load %arg1[%c0, %c0_0, %c0_1] : memref<4x288x25xbf16, #tpu.memory_space<vmem>>, vector<4x288x25xbf16>
    %1 = vector.shape_cast %0 : vector<4x288x25xbf16> to vector<1152x25xbf16>
    %c0_2 = arith.constant 0 : index
    %c0_3 = arith.constant 0 : index
    %2 = vector.load %arg2[%c0_2, %c0_3] : memref<25x32xbf16, #tpu.memory_space<vmem>>, vector<25x32xbf16>
    %cst = arith.constant dense<0.000000e+00> : vector<1152x32xf32>
    %3 = tpu.matmul %1, %2, %cst {dimension_numbers = #tpu.dot_dimension_numbers<[1], [0], [0], [1], [0, 0, 1, 1], [], []>} : vector<1152x25xbf16>, vector<25x32xbf16>, vector<1152x32xf32> -> vector<1152x32xf32>
    %4 = vector.shape_cast %3 : vector<1152x32xf32> to vector<4x288x32xf32>
    %5 = vector.extract_strided_slice %4 {offsets = [0, 0, 0], sizes = [1, 288, 32], strides = [1, 1, 1]} : vector<4x288x32xf32> to vector<1x288x32xf32>
    %6 = vector.shape_cast %5 : vector<1x288x32xf32> to vector<288x32xf32>
    %7 = vector.extract_strided_slice %4 {offsets = [1, 0, 0], sizes = [1, 288, 32], strides = [1, 1, 1]} : vector<4x288x32xf32> to vector<1x288x32xf32>
    %8 = vector.shape_cast %7 : vector<1x288x32xf32> to vector<288x32xf32>
    %9 = arith.maximumf %6, %8 : vector<288x32xf32>
    %10 = vector.extract_strided_slice %4 {offsets = [2, 0, 0], sizes = [1, 288, 32], strides = [1, 1, 1]} : vector<4x288x32xf32> to vector<1x288x32xf32>
    %11 = vector.shape_cast %10 : vector<1x288x32xf32> to vector<288x32xf32>
    %12 = arith.maximumf %9, %11 : vector<288x32xf32>
    %13 = vector.extract_strided_slice %4 {offsets = [3, 0, 0], sizes = [1, 288, 32], strides = [1, 1, 1]} : vector<4x288x32xf32> to vector<1x288x32xf32>
    %14 = vector.shape_cast %13 : vector<1x288x32xf32> to vector<288x32xf32>
    %15 = arith.maximumf %12, %14 : vector<288x32xf32>
    %c0_4 = arith.constant 0 : index
    %c0_5 = arith.constant 0 : index
    %16 = vector.load %arg3[%c0_4, %c0_5] : memref<1x32xf32, #tpu.memory_space<vmem>>, vector<1x32xf32>
    %17 = vector.broadcast %16 : vector<1x32xf32> to vector<288x32xf32>
    %18 = arith.addf %15, %17 : vector<288x32xf32>
    %19 = arith.truncf %18 : vector<288x32xf32> to vector<288x32xbf16>
    %c0_6 = arith.constant 0 : index
    %c0_7 = arith.constant 0 : index
    %20 = vector.load %arg4[%c0_6, %c0_7] : memref<288x32xbf16, #tpu.memory_space<vmem>>, vector<288x32xbf16>
    tpu.vector_store %arg4[%c0_6, %c0_7], %19 {strides = array<i32>} : memref<288x32xbf16, #tpu.memory_space<vmem>>, vector<288x32xbf16>,
    return
  }
  func.func @transform_0(%arg0: i32) -> (i32, i32, i32) {
    %c0_i32 = arith.constant 0 : i32
    %c0_i32_0 = arith.constant 0 : i32
    %c0_i32_1 = arith.constant 0 : i32
    return %c0_i32, %arg0, %c0_i32_0 : i32, i32, i32
  }
  func.func @transform_1(%arg0: i32) -> (i32, i32) {
    %c0_i32 = arith.constant 0 : i32
    %c0_i32_0 = arith.constant 0 : i32
    %c0_i32_1 = arith.constant 0 : i32
    return %c0_i32, %c0_i32_0 : i32, i32
  }
  func.func @transform_2(%arg0: i32) -> (i32, i32) {
    %c0_i32 = arith.constant 0 : i32
    %c0_i32_0 = arith.constant 0 : i32
    %c0_i32_1 = arith.constant 0 : i32
    return %c0_i32, %c0_i32_0 : i32, i32
  }
  func.func @transform_3(%arg0: i32) -> (i32, i32) {
    %c0_i32 = arith.constant 0 : i32
    %c0_i32_0 = arith.constant 0 : i32
    return %arg0, %c0_i32 : i32, i32
  }
}

module attributes {stable_mosaic.version = 11 : i64} {
  func.func @_conv_bias_pool_kernel(%arg0: i32, %arg1: memref<4x32x800xbf16, #tpu.memory_space<vmem>>, %arg2: memref<800x64xbf16, #tpu.memory_space<vmem>>, %arg3: memref<1x64xf32, #tpu.memory_space<vmem>>, %arg4: memref<32x64xbf16, #tpu.memory_space<vmem>>) attributes {dimension_semantics = [#tpu.dimension_semantics<parallel>], iteration_bounds = array<i64: 1>, scalar_prefetch = 0 : i64, scratch_operands = 0 : i64, tpu.core_type = #tpu.core_type<tc>, window_params = [{transform_indices = @transform_0, window_bounds = array<i64: 4, 32, 800>}, {pipeline_mode = #tpu.pipeline_mode<synchronous>, transform_indices = @transform_1, window_bounds = array<i64: 800, 64>}, {pipeline_mode = #tpu.pipeline_mode<synchronous>, transform_indices = @transform_2, window_bounds = array<i64: 1, 64>}, {transform_indices = @transform_3, window_bounds = array<i64: 32, 64>}]} {
    %c0 = arith.constant 0 : index
    %c0_0 = arith.constant 0 : index
    %c0_1 = arith.constant 0 : index
    %0 = vector.load %arg1[%c0, %c0_0, %c0_1] : memref<4x32x800xbf16, #tpu.memory_space<vmem>>, vector<4x32x800xbf16>
    %1 = vector.shape_cast %0 : vector<4x32x800xbf16> to vector<128x800xbf16>
    %c0_2 = arith.constant 0 : index
    %c0_3 = arith.constant 0 : index
    %2 = vector.load %arg2[%c0_2, %c0_3] : memref<800x64xbf16, #tpu.memory_space<vmem>>, vector<800x64xbf16>
    %cst = arith.constant dense<0.000000e+00> : vector<128x64xf32>
    %3 = tpu.matmul %1, %2, %cst {dimension_numbers = #tpu.dot_dimension_numbers<[1], [0], [0], [1], [0, 0, 1, 1], [], []>} : vector<128x800xbf16>, vector<800x64xbf16>, vector<128x64xf32> -> vector<128x64xf32>
    %4 = vector.shape_cast %3 : vector<128x64xf32> to vector<4x32x64xf32>
    %5 = vector.extract_strided_slice %4 {offsets = [0, 0, 0], sizes = [1, 32, 64], strides = [1, 1, 1]} : vector<4x32x64xf32> to vector<1x32x64xf32>
    %6 = vector.shape_cast %5 : vector<1x32x64xf32> to vector<32x64xf32>
    %7 = vector.extract_strided_slice %4 {offsets = [1, 0, 0], sizes = [1, 32, 64], strides = [1, 1, 1]} : vector<4x32x64xf32> to vector<1x32x64xf32>
    %8 = vector.shape_cast %7 : vector<1x32x64xf32> to vector<32x64xf32>
    %9 = arith.maximumf %6, %8 : vector<32x64xf32>
    %10 = vector.extract_strided_slice %4 {offsets = [2, 0, 0], sizes = [1, 32, 64], strides = [1, 1, 1]} : vector<4x32x64xf32> to vector<1x32x64xf32>
    %11 = vector.shape_cast %10 : vector<1x32x64xf32> to vector<32x64xf32>
    %12 = arith.maximumf %9, %11 : vector<32x64xf32>
    %13 = vector.extract_strided_slice %4 {offsets = [3, 0, 0], sizes = [1, 32, 64], strides = [1, 1, 1]} : vector<4x32x64xf32> to vector<1x32x64xf32>
    %14 = vector.shape_cast %13 : vector<1x32x64xf32> to vector<32x64xf32>
    %15 = arith.maximumf %12, %14 : vector<32x64xf32>
    %c0_4 = arith.constant 0 : index
    %c0_5 = arith.constant 0 : index
    %16 = vector.load %arg3[%c0_4, %c0_5] : memref<1x64xf32, #tpu.memory_space<vmem>>, vector<1x64xf32>
    %17 = vector.broadcast %16 : vector<1x64xf32> to vector<32x64xf32>
    %18 = arith.addf %15, %17 : vector<32x64xf32>
    %19 = arith.truncf %18 : vector<32x64xf32> to vector<32x64xbf16>
    %c0_6 = arith.constant 0 : index
    %c0_7 = arith.constant 0 : index
    %20 = vector.load %arg4[%c0_6, %c0_7] : memref<32x64xbf16, #tpu.memory_space<vmem>>, vector<32x64xbf16>
    tpu.vector_store %arg4[%c0_6, %c0_7], %19 {strides = array<i32>} : memref<32x64xbf16, #tpu.memory_space<vmem>>, vector<32x64xbf16>,
    return
  }
  func.func @transform_0(%arg0: i32) -> (i32, i32, i32) {
    %c0_i32 = arith.constant 0 : i32
    %c0_i32_0 = arith.constant 0 : i32
    %c0_i32_1 = arith.constant 0 : i32
    return %c0_i32, %arg0, %c0_i32_0 : i32, i32, i32
  }
  func.func @transform_1(%arg0: i32) -> (i32, i32) {
    %c0_i32 = arith.constant 0 : i32
    %c0_i32_0 = arith.constant 0 : i32
    %c0_i32_1 = arith.constant 0 : i32
    return %c0_i32, %c0_i32_0 : i32, i32
  }
  func.func @transform_2(%arg0: i32) -> (i32, i32) {
    %c0_i32 = arith.constant 0 : i32
    %c0_i32_0 = arith.constant 0 : i32
    %c0_i32_1 = arith.constant 0 : i32
    return %c0_i32, %c0_i32_0 : i32, i32
  }
  func.func @transform_3(%arg0: i32) -> (i32, i32) {
    %c0_i32 = arith.constant 0 : i32
    %c0_i32_0 = arith.constant 0 : i32
    return %arg0, %c0_i32 : i32, i32
  }
}

module attributes {stable_mosaic.version = 11 : i64} {
  func.func @_head_kernel(%arg0: i32, %arg1: memref<16x1024xbf16, #tpu.memory_space<vmem>>, %arg2: memref<1024x512xbf16, #tpu.memory_space<vmem>>, %arg3: memref<1x512xf32, #tpu.memory_space<vmem>>, %arg4: memref<512x128xbf16, #tpu.memory_space<vmem>>, %arg5: memref<1x128xf32, #tpu.memory_space<vmem>>, %arg6: memref<16x128xf32, #tpu.memory_space<vmem>>) attributes {dimension_semantics = [#tpu.dimension_semantics<parallel>], iteration_bounds = array<i64: 1>, scalar_prefetch = 0 : i64, scratch_operands = 0 : i64, tpu.core_type = #tpu.core_type<tc>, window_params = [{transform_indices = @transform_0, window_bounds = array<i64: 16, 1024>}, {pipeline_mode = #tpu.pipeline_mode<synchronous>, transform_indices = @transform_1, window_bounds = array<i64: 1024, 512>}, {pipeline_mode = #tpu.pipeline_mode<synchronous>, transform_indices = @transform_2, window_bounds = array<i64: 1, 512>}, {pipeline_mode = #tpu.pipeline_mode<synchronous>, transform_indices = @transform_3, window_bounds = array<i64: 512, 128>}, {pipeline_mode = #tpu.pipeline_mode<synchronous>, transform_indices = @transform_4, window_bounds = array<i64: 1, 128>}, {transform_indices = @transform_5, window_bounds = array<i64: 16, 128>}]} {
    %c0 = arith.constant 0 : index
    %c0_0 = arith.constant 0 : index
    %0 = vector.load %arg1[%c0, %c0_0] : memref<16x1024xbf16, #tpu.memory_space<vmem>>, vector<16x1024xbf16>
    %c0_1 = arith.constant 0 : index
    %c0_2 = arith.constant 0 : index
    %1 = vector.load %arg2[%c0_1, %c0_2] : memref<1024x512xbf16, #tpu.memory_space<vmem>>, vector<1024x512xbf16>
    %cst = arith.constant dense<0.000000e+00> : vector<16x512xf32>
    %2 = tpu.matmul %0, %1, %cst {dimension_numbers = #tpu.dot_dimension_numbers<[1], [0], [0], [1], [0, 0, 1, 1], [], []>} : vector<16x1024xbf16>, vector<1024x512xbf16>, vector<16x512xf32> -> vector<16x512xf32>
    %c0_3 = arith.constant 0 : index
    %c0_4 = arith.constant 0 : index
    %3 = vector.load %arg3[%c0_3, %c0_4] : memref<1x512xf32, #tpu.memory_space<vmem>>, vector<1x512xf32>
    %4 = vector.broadcast %3 : vector<1x512xf32> to vector<16x512xf32>
    %5 = arith.addf %2, %4 : vector<16x512xf32>
    %cst_5 = arith.constant 0.000000e+00 : f32
    %6 = vector.broadcast %cst_5 : f32 to vector<16x512xf32>
    %7 = arith.maximumf %5, %6 : vector<16x512xf32>
    %8 = arith.truncf %7 : vector<16x512xf32> to vector<16x512xbf16>
    %c0_6 = arith.constant 0 : index
    %c0_7 = arith.constant 0 : index
    %9 = vector.load %arg4[%c0_6, %c0_7] : memref<512x128xbf16, #tpu.memory_space<vmem>>, vector<512x128xbf16>
    %cst_8 = arith.constant dense<0.000000e+00> : vector<16x128xf32>
    %10 = tpu.matmul %8, %9, %cst_8 {dimension_numbers = #tpu.dot_dimension_numbers<[1], [0], [0], [1], [0, 0, 1, 1], [], []>} : vector<16x512xbf16>, vector<512x128xbf16>, vector<16x128xf32> -> vector<16x128xf32>
    %c0_9 = arith.constant 0 : index
    %c0_10 = arith.constant 0 : index
    %11 = vector.load %arg5[%c0_9, %c0_10] : memref<1x128xf32, #tpu.memory_space<vmem>>, vector<1x128xf32>
    %12 = vector.broadcast %11 : vector<1x128xf32> to vector<16x128xf32>
    %13 = arith.addf %10, %12 : vector<16x128xf32>
    %c0_11 = arith.constant 0 : index
    %c0_12 = arith.constant 0 : index
    %14 = vector.load %arg6[%c0_11, %c0_12] : memref<16x128xf32, #tpu.memory_space<vmem>>, vector<16x128xf32>
    tpu.vector_store %arg6[%c0_11, %c0_12], %13 {strides = array<i32>} : memref<16x128xf32, #tpu.memory_space<vmem>>, vector<16x128xf32>,
    return
  }
  func.func @transform_0(%arg0: i32) -> (i32, i32) {
    %c0_i32 = arith.constant 0 : i32
    %c0_i32_0 = arith.constant 0 : i32
    return %arg0, %c0_i32 : i32, i32
  }
  func.func @transform_1(%arg0: i32) -> (i32, i32) {
    %c0_i32 = arith.constant 0 : i32
    %c0_i32_0 = arith.constant 0 : i32
    %c0_i32_1 = arith.constant 0 : i32
    return %c0_i32, %c0_i32_0 : i32, i32
  }
  func.func @transform_2(%arg0: i32) -> (i32, i32) {
    %c0_i32 = arith.constant 0 : i32
    %c0_i32_0 = arith.constant 0 : i32
    %c0_i32_1 = arith.constant 0 : i32
    return %c0_i32, %c0_i32_0 : i32, i32
  }
  func.func @transform_3(%arg0: i32) -> (i32, i32) {
    %c0_i32 = arith.constant 0 : i32
    %c0_i32_0 = arith.constant 0 : i32
    %c0_i32_1 = arith.constant 0 : i32
    return %c0_i32, %c0_i32_0 : i32, i32
  }
  func.func @transform_4(%arg0: i32) -> (i32, i32) {
    %c0_i32 = arith.constant 0 : i32
    %c0_i32_0 = arith.constant 0 : i32
    %c0_i32_1 = arith.constant 0 : i32
    return %c0_i32, %c0_i32_0 : i32, i32
  }
  func.func @transform_5(%arg0: i32) -> (i32, i32) {
    %c0_i32 = arith.constant 0 : i32
    %c0_i32_0 = arith.constant 0 : i32
    return %arg0, %c0_i32 : i32, i32
  }
}

</mosaic_0001>

<llo_original>
// kernel: lenet_forward.3
$region0: #{lenet_forward.3}
  #allocation0 [shape = 'u32[]', space=smem, size = 0x4, offset = 0x4, fixed_abs, tag = 'smem constant byte address 0x4 - core index']
  #allocation1 [shape = 'u32[144,128]{1,0:T(1,128)}', space=vmem, size = 0x12000, scoped, tag = 'internal scratch']
  %s0 = inlined_call_operand.vmem [shape: bf16[4,288,25], index: 0, kind: input, shape index: {}]
  %s1 = inlined_call_operand.vmem [shape: bf16[25,32], index: 1, kind: input, shape index: {}]
  %s2 = inlined_call_operand.vmem [shape: f32[1,32], index: 2, kind: input, shape index: {}]
  %s3 = inlined_call_operand.vmem [shape: bf16[288,32], index: 3, kind: output, shape index: {}]
  %s4 = sld [smem:[#allocation0]]
  $region22: #{lenet_forward.3} parent=0
    _
  %s6 = ssub.s32 1, %s4
  %s7 = scalar_select 0, %s6, %s4
  // Predicated region
  $region2: #{lenet_forward.3} parent=0 // pred_check
    _
  $region3: #{lenet_forward.3} parent=0 // pred_check_branch
    %9 = sbr.rel (0) target = $region5
  $region4: #{lenet_forward.3} parent=0 // pred_region
    _
  $region5: #{lenet_forward.3} parent=0 // pred_fallthru
    _
  // Predicated region
  $region6: #{lenet_forward.3} parent=0 // pred_check
    _
  $region7: #{lenet_forward.3} parent=0 // pred_check_branch
    %11 = sbr.rel (0) target = $region9
  $region8: #{lenet_forward.3} parent=0 // pred_region
    _
  $region9: #{lenet_forward.3} parent=0 // pred_fallthru
    _
  // Predicated region
  $region10: #{lenet_forward.3} parent=0 // pred_check
    _
  $region11: #{lenet_forward.3} parent=0 // pred_check_branch
    %13 = sbr.rel (0) target = $region13
  $region12: #{lenet_forward.3} parent=0 // pred_region
    _
  $region13: #{lenet_forward.3} parent=0 // pred_fallthru
    _
  %v15 = vld [vmem:[%s0] sm:$0xf]
  %v16 = vld [vmem:[%s0 + $0x4] sm:$0xf]
  %v17 = vld [vmem:[%s0 + $0x8] sm:$0xf]
  %v18 = vld [vmem:[%s0 + $0xc] sm:$0xf]
  %v19 = vld [vmem:[%s0 + $0x10] sm:$0xf]
  %v20 = vld [vmem:[%s0 + $0x14] sm:$0xf]
  %v21 = vld [vmem:[%s0 + $0x18] sm:$0xf]
  %v22 = vld [vmem:[%s0 + $0x1c] sm:$0xf]
  %v23 = vld [vmem:[%s0 + $0x20] sm:$0xf]
  %v24 = vld [vmem:[%s0 + $0x24] sm:$0xf]
  %v25 = vld [vmem:[%s0 + $0x28] sm:$0xf]
  %v26 = vld [vmem:[%s0 + $0x2c] sm:$0xf]
  %v27 = vld [vmem:[%s0 + $0x30] sm:$0xf]
  %v28 = vld [vmem:[%s0 + $0x34] sm:$0xf]
  %v29 = vld [vmem:[%s0 + $0x38] sm:$0xf]
  %v30 = vld [vmem:[%s0 + $0x3c] sm:$0xf]
  %v31 = vld [vmem:[%s0 + $0x40] sm:$0xf]
  %v32 = vld [vmem:[%s0 + $0x44] sm:$0xf]
  %v33 = vld [vmem:[%s0 + $0x48] sm:$0xf]
  %v34 = vld [vmem:[%s0 + $0x4c] sm:$0xf]
  %v35 = vld [vmem:[%s0 + $0x50] sm:$0xf]
  %v36 = vld [vmem:[%s0 + $0x54] sm:$0xf]
  %v37 = vld [vmem:[%s0 + $0x58] sm:$0xf]
  %v38 = vld [vmem:[%s0 + $0x5c] sm:$0xf]
  %v39 = vld [vmem:[%s0 + $0x60] sm:$0xf]
  %v40 = vld [vmem:[%s0 + $0x64] sm:$0xf]
  %v41 = vld [vmem:[%s0 + $0x68] sm:$0xf]
  %v42 = vld [vmem:[%s0 + $0x6c] sm:$0xf]
  %v43 = vld [vmem:[%s0 + $0x70] sm:$0xf]
  %v44 = vld [vmem:[%s0 + $0x74] sm:$0xf]
  %v45 = vld [vmem:[%s0 + $0x78] sm:$0xf]
  %v46 = vld [vmem:[%s0 + $0x7c] sm:$0xf]
  %v47 = vld [vmem:[%s0 + $0x80] sm:$0xf]
  %v48 = vld [vmem:[%s0 + $0x84] sm:$0xf]
  %v49 = vld [vmem:[%s0 + $0x88] sm:$0xf]
  %v50 = vld [vmem:[%s0 + $0x8c] sm:$0xf]
  %v51 = vld [vmem:[%s0 + $0x90] sm:$0xf]
  %v52 = vld [vmem:[%s0 + $0x94] sm:$0xf]
  %v53 = vld [vmem:[%s0 + $0x98] sm:$0xf]
  %v54 = vld [vmem:[%s0 + $0x9c] sm:$0xf]
  %v55 = vld [vmem:[%s0 + $0xa0] sm:$0xf]
  %v56 = vld [vmem:[%s0 + $0xa4] sm:$0xf]
  %v57 = vld [vmem:[%s0 + $0xa8] sm:$0xf]
  %v58 = vld [vmem:[%s0 + $0xac] sm:$0xf]
  %v59 = vld [vmem:[%s0 + $0xb0] sm:$0xf]
  %v60 = vld [vmem:[%s0 + $0xb4] sm:$0xf]
  %v61 = vld [vmem:[%s0 + $0xb8] sm:$0xf]
  %v62 = vld [vmem:[%s0 + $0xbc] sm:$0xf]
  %v63 = vld [vmem:[%s0 + $0xc0] sm:$0xf]
  %v64 = vld [vmem:[%s0 + $0xc4] sm:$0xf]
  %v65 = vld [vmem:[%s0 + $0xc8] sm:$0xf]
  %v66 = vld [vmem:[%s0 + $0xcc] sm:$0xf]
  %v67 = vld [vmem:[%s0 + $0xd0] sm:$0xf]
  %v68 = vld [vmem:[%s0 + $0xd4] sm:$0xf]
  %v69 = vld [vmem:[%s0 + $0xd8] sm:$0xf]
  %v70 = vld [vmem:[%s0 + $0xdc] sm:$0xf]
  %v71 = vld [vmem:[%s0 + $0xe0] sm:$0xf]
  %v72 = vld [vmem:[%s0 + $0xe4] sm:$0xf]
  %v73 = vld [vmem:[%s0 + $0xe8] sm:$0xf]
  %v74 = vld [vmem:[%s0 + $0xec] sm:$0xf]
  %v75 = vld [vmem:[%s0 + $0xf0] sm:$0xf]
  %v76 = vld [vmem:[%s0 + $0xf4] sm:$0xf]
  %v77 = vld [vmem:[%s0 + $0xf8] sm:$0xf]
  %v78 = vld [vmem:[%s0 + $0xfc] sm:$0xf]
  %v79 = vld [vmem:[%s0 + $0x100] sm:$0xf]
  %v80 = vld [vmem:[%s0 + $0x104] sm:$0xf]
  %v81 = vld [vmem:[%s0 + $0x108] sm:$0xf]
  %v82 = vld [vmem:[%s0 + $0x10c] sm:$0xf]
  %v83 = vld [vmem:[%s0 + $0x110] sm:$0xf]
  %v84 = vld [vmem:[%s0 + $0x114] sm:$0xf]
  %v85 = vld [vmem:[%s0 + $0x118] sm:$0xf]
  %v86 = vld [vmem:[%s0 + $0x11c] sm:$0xf]
  %v87 = vld [vmem:[%s0 + $0x120] sm:$0xf]
  %v88 = vld [vmem:[%s0 + $0x124] sm:$0xf]
  %v89 = vld [vmem:[%s0 + $0x128] sm:$0xf]
  %v90 = vld [vmem:[%s0 + $0x12c] sm:$0xf]
  %v91 = vld [vmem:[%s0 + $0x130] sm:$0xf]
  %v92 = vld [vmem:[%s0 + $0x134] sm:$0xf]
  %v93 = vld [vmem:[%s0 + $0x138] sm:$0xf]
  %v94 = vld [vmem:[%s0 + $0x13c] sm:$0xf]
  %v95 = vld [vmem:[%s0 + $0x140] sm:$0xf]
  %v96 = vld [vmem:[%s0 + $0x144] sm:$0xf]
  %v97 = vld [vmem:[%s0 + $0x148] sm:$0xf]
  %v98 = vld [vmem:[%s0 + $0x14c] sm:$0xf]
  %v99 = vld [vmem:[%s0 + $0x150] sm:$0xf]
  %v100 = vld [vmem:[%s0 + $0x154] sm:$0xf]
  %v101 = vld [vmem:[%s0 + $0x158] sm:$0xf]
  %v102 = vld [vmem:[%s0 + $0x15c] sm:$0xf]
  %v103 = vld [vmem:[%s0 + $0x160] sm:$0xf]
  %v104 = vld [vmem:[%s0 + $0x164] sm:$0xf]
  %v105 = vld [vmem:[%s0 + $0x168] sm:$0xf]
  %v106 = vld [vmem:[%s0 + $0x16c] sm:$0xf]
  %v107 = vld [vmem:[%s0 + $0x170] sm:$0xf]
  %v108 = vld [vmem:[%s0 + $0x174] sm:$0xf]
  %v109 = vld [vmem:[%s0 + $0x178] sm:$0xf]
  %v110 = vld [vmem:[%s0 + $0x17c] sm:$0xf]
  %v111 = vld [vmem:[%s0 + $0x180] sm:$0xf]
  %v112 = vld [vmem:[%s0 + $0x184] sm:$0xf]
  %v113 = vld [vmem:[%s0 + $0x188] sm:$0xf]
  %v114 = vld [vmem:[%s0 + $0x18c] sm:$0xf]
  %v115 = vld [vmem:[%s0 + $0x190] sm:$0xf]
  %v116 = vld [vmem:[%s0 + $0x194] sm:$0xf]
  %v117 = vld [vmem:[%s0 + $0x198] sm:$0xf]
  %v118 = vld [vmem:[%s0 + $0x19c] sm:$0xf]
  %v119 = vld [vmem:[%s0 + $0x1a0] sm:$0xf]
  %v120 = vld [vmem:[%s0 + $0x1a4] sm:$0xf]
  %v121 = vld [vmem:[%s0 + $0x1a8] sm:$0xf]
  %v122 = vld [vmem:[%s0 + $0x1ac] sm:$0xf]
  %v123 = vld [vmem:[%s0 + $0x1b0] sm:$0xf]
  %v124 = vld [vmem:[%s0 + $0x1b4] sm:$0xf]
  %v125 = vld [vmem:[%s0 + $0x1b8] sm:$0xf]
  %v126 = vld [vmem:[%s0 + $0x1bc] sm:$0xf]
  %v127 = vld [vmem:[%s0 + $0x1c0] sm:$0xf]
  %v128 = vld [vmem:[%s0 + $0x1c4] sm:$0xf]
  %v129 = vld [vmem:[%s0 + $0x1c8] sm:$0xf]
  %v130 = vld [vmem:[%s0 + $0x1cc] sm:$0xf]
  %v131 = vld [vmem:[%s0 + $0x1d0] sm:$0xf]
  %v132 = vld [vmem:[%s0 + $0x1d4] sm:$0xf]
  %v133 = vld [vmem:[%s0 + $0x1d8] sm:$0xf]
  %v134 = vld [vmem:[%s0 + $0x1dc] sm:$0xf]
  %v135 = vld [vmem:[%s0 + $0x1e0] sm:$0xf]
  %v136 = vld [vmem:[%s0 + $0x1e4] sm:$0xf]
  %v137 = vld [vmem:[%s0 + $0x1e8] sm:$0xf]
  %v138 = vld [vmem:[%s0 + $0x1ec] sm:$0xf]
  %v139 = vld [vmem:[%s0 + $0x1f0] sm:$0xf]
  %v140 = vld [vmem:[%s0 + $0x1f4] sm:$0xf]
  %v141 = vld [vmem:[%s0 + $0x1f8] sm:$0xf]
  %v142 = vld [vmem:[%s0 + $0x1fc] sm:$0xf]
  %v143 = vld [vmem:[%s0 + $0x200] sm:$0xf]
  %v144 = vld [vmem:[%s0 + $0x204] sm:$0xf]
  %v145 = vld [vmem:[%s0 + $0x208] sm:$0xf]
  %v146 = vld [vmem:[%s0 + $0x20c] sm:$0xf]
  %v147 = vld [vmem:[%s0 + $0x210] sm:$0xf]
  %v148 = vld [vmem:[%s0 + $0x214] sm:$0xf]
  %v149 = vld [vmem:[%s0 + $0x218] sm:$0xf]
  %v150 = vld [vmem:[%s0 + $0x21c] sm:$0xf]
  %v151 = vld [vmem:[%s0 + $0x220] sm:$0xf]
  %v152 = vld [vmem:[%s0 + $0x224] sm:$0xf]
  %v153 = vld [vmem:[%s0 + $0x228] sm:$0xf]
  %v154 = vld [vmem:[%s0 + $0x22c] sm:$0xf]
  %v155 = vld [vmem:[%s0 + $0x230] sm:$0xf]
  %v156 = vld [vmem:[%s0 + $0x234] sm:$0xf]
  %v157 = vld [vmem:[%s0 + $0x238] sm:$0xf]
  %v158 = vld [vmem:[%s0 + $0x23c] sm:$0xf]
  %v159 = vld [vmem:[%s1] sm:$0xf]
  %v160 = vld [vmem:[%s1 + $0x4] sm:$0xf]
  %v161 = vld [vmem:[%s1 + $0x8] sm:$0xf]
  %v162 = vld [vmem:[%s1 + $0xc] sm:$0x1]
  %v307 = vunpack.c.l.b16 %v15
  %v308 = vunpack.c.l.b16 %v16
  %v309 = vunpack.c.l.b16 %v17
  %v310 = vunpack.c.l.b16 %v18
  %v311 = vunpack.c.l.b16 %v19
  %v312 = vunpack.c.l.b16 %v20
  %v313 = vunpack.c.l.b16 %v21
  %v314 = vunpack.c.l.b16 %v22
  %v315 = vunpack.c.l.b16 %v23
  %v316 = vunpack.c.l.b16 %v24
  %v317 = vunpack.c.l.b16 %v25
  %v318 = vunpack.c.l.b16 %v26
  %v319 = vunpack.c.l.b16 %v27
  %v320 = vunpack.c.l.b16 %v28
  %v321 = vunpack.c.l.b16 %v29
  %v322 = vunpack.c.l.b16 %v30
  %v323 = vunpack.c.l.b16 %v31
  %v324 = vunpack.c.l.b16 %v32
  %v325 = vunpack.c.l.b16 %v33
  %v326 = vunpack.c.l.b16 %v34
  %v327 = vunpack.c.l.b16 %v35
  %v328 = vunpack.c.l.b16 %v36
  %v329 = vunpack.c.l.b16 %v37
  %v330 = vunpack.c.l.b16 %v38
  %v331 = vunpack.c.l.b16 %v39
  %v332 = vunpack.c.l.b16 %v40
  %v333 = vunpack.c.l.b16 %v41
  %v334 = vunpack.c.l.b16 %v42
  %v335 = vunpack.c.l.b16 %v43
  %v336 = vunpack.c.l.b16 %v44
  %v337 = vunpack.c.l.b16 %v45
  %v338 = vunpack.c.l.b16 %v46
  %v339 = vunpack.c.l.b16 %v47
  %v340 = vunpack.c.l.b16 %v48
  %v341 = vunpack.c.l.b16 %v49
  %v342 = vunpack.c.l.b16 %v50
  %v343 = vunpack.c.l.b16 %v51
  %v344 = vunpack.c.l.b16 %v52
  %v345 = vunpack.c.l.b16 %v53
  %v346 = vunpack.c.l.b16 %v54
  %v347 = vunpack.c.l.b16 %v55
  %v348 = vunpack.c.l.b16 %v56
  %v349 = vunpack.c.l.b16 %v57
  %v350 = vunpack.c.l.b16 %v58
  %v351 = vunpack.c.l.b16 %v59
  %v352 = vunpack.c.l.b16 %v60
  %v353 = vunpack.c.l.b16 %v61
  %v354 = vunpack.c.l.b16 %v62
  %v355 = vunpack.c.l.b16 %v63
  %v356 = vunpack.c.l.b16 %v64
  %v357 = vunpack.c.l.b16 %v65
  %v358 = vunpack.c.l.b16 %v66
  %v359 = vunpack.c.l.b16 %v67
  %v360 = vunpack.c.l.b16 %v68
  %v361 = vunpack.c.l.b16 %v69
  %v362 = vunpack.c.l.b16 %v70
  %v363 = vunpack.c.l.b16 %v71
  %v364 = vunpack.c.l.b16 %v72
  %v365 = vunpack.c.l.b16 %v73
  %v366 = vunpack.c.l.b16 %v74
  %v367 = vunpack.c.l.b16 %v75
  %v368 = vunpack.c.l.b16 %v76
  %v369 = vunpack.c.l.b16 %v77
  %v370 = vunpack.c.l.b16 %v78
  %v371 = vunpack.c.l.b16 %v79
  %v372 = vunpack.c.l.b16 %v80
  %v373 = vunpack.c.l.b16 %v81
  %v374 = vunpack.c.l.b16 %v82
  %v375 = vunpack.c.l.b16 %v83
  %v376 = vunpack.c.l.b16 %v84
  %v377 = vunpack.c.l.b16 %v85
  %v378 = vunpack.c.l.b16 %v86
  %v379 = vunpack.c.l.b16 %v87
  %v380 = vunpack.c.l.b16 %v88
  %v381 = vunpack.c.l.b16 %v89
  %v382 = vunpack.c.l.b16 %v90
  %v383 = vunpack.c.l.b16 %v91
  %v384 = vunpack.c.l.b16 %v92
  %v385 = vunpack.c.l.b16 %v93
  %v386 = vunpack.c.l.b16 %v94
  %v387 = vunpack.c.l.b16 %v95
  %v388 = vunpack.c.l.b16 %v96
  %v389 = vunpack.c.l.b16 %v97
  %v390 = vunpack.c.l.b16 %v98
  %v391 = vunpack.c.l.b16 %v99
  %v392 = vunpack.c.l.b16 %v100
  %v393 = vunpack.c.l.b16 %v101
  %v394 = vunpack.c.l.b16 %v102
  %v395 = vunpack.c.l.b16 %v103
  %v396 = vunpack.c.l.b16 %v104
  %v397 = vunpack.c.l.b16 %v105
  %v398 = vunpack.c.l.b16 %v106
  %v399 = vunpack.c.l.b16 %v107
  %v400 = vunpack.c.l.b16 %v108
  %v401 = vunpack.c.l.b16 %v109
  %v402 = vunpack.c.l.b16 %v110
  %v403 = vunpack.c.l.b16 %v111
  %v404 = vunpack.c.l.b16 %v112
  %v405 = vunpack.c.l.b16 %v113
  %v406 = vunpack.c.l.b16 %v114
  %v407 = vunpack.c.l.b16 %v115
  %v408 = vunpack.c.l.b16 %v116
  %v409 = vunpack.c.l.b16 %v117
  %v410 = vunpack.c.l.b16 %v118
  %v411 = vunpack.c.l.b16 %v119
  %v412 = vunpack.c.l.b16 %v120
  %v413 = vunpack.c.l.b16 %v121
  %v414 = vunpack.c.l.b16 %v122
  %v415 = vunpack.c.l.b16 %v123
  %v416 = vunpack.c.l.b16 %v124
  %v417 = vunpack.c.l.b16 %v125
  %v418 = vunpack.c.l.b16 %v126
  %v419 = vunpack.c.l.b16 %v127
  %v420 = vunpack.c.l.b16 %v128
  %v421 = vunpack.c.l.b16 %v129
  %v422 = vunpack.c.l.b16 %v130
  %v423 = vunpack.c.l.b16 %v131
  %v424 = vunpack.c.l.b16 %v132
  %v425 = vunpack.c.l.b16 %v133
  %v426 = vunpack.c.l.b16 %v134
  %v427 = vunpack.c.l.b16 %v135
  %v428 = vunpack.c.l.b16 %v136
  %v429 = vunpack.c.l.b16 %v137
  %v430 = vunpack.c.l.b16 %v138
  %v431 = vunpack.c.l.b16 %v139
  %v432 = vunpack.c.l.b16 %v140
  %v433 = vunpack.c.l.b16 %v141
  %v434 = vunpack.c.l.b16 %v142
  %v435 = vunpack.c.l.b16 %v143
  %v436 = vunpack.c.l.b16 %v144
  %v437 = vunpack.c.l.b16 %v145
  %v438 = vunpack.c.l.b16 %v146
  %v439 = vunpack.c.l.b16 %v147
  %v440 = vunpack.c.l.b16 %v148
  %v441 = vunpack.c.l.b16 %v149
  %v442 = vunpack.c.l.b16 %v150
  %v443 = vunpack.c.l.b16 %v151
  %v444 = vunpack.c.l.b16 %v152
  %v445 = vunpack.c.l.b16 %v153
  %v446 = vunpack.c.l.b16 %v154
  %v447 = vunpack.c.l.b16 %v155
  %v448 = vunpack.c.l.b16 %v156
  %v449 = vunpack.c.l.b16 %v157
  %v450 = vunpack.c.l.b16 %v158
  %v451 = vpack.c.b16 %v308, %v307
  %v452 = vpack.c.b16 %v310, %v309
  %v453 = vpack.c.b16 %v312, %v311
  %v454 = vpack.c.b16 %v314, %v313
  %v455 = vpack.c.b16 %v316, %v315
  %v456 = vpack.c.b16 %v318, %v317
  %v457 = vpack.c.b16 %v320, %v319
  %v458 = vpack.c.b16 %v322, %v321
  %v459 = vpack.c.b16 %v324, %v323
  %v460 = vpack.c.b16 %v326, %v325
  %v461 = vpack.c.b16 %v328, %v327
  %v462 = vpack.c.b16 %v330, %v329
  %v463 = vpack.c.b16 %v332, %v331
  %v464 = vpack.c.b16 %v334, %v333
  %v465 = vpack.c.b16 %v336, %v335
  %v466 = vpack.c.b16 %v338, %v337
  %v467 = vpack.c.b16 %v340, %v339
  %v468 = vpack.c.b16 %v342, %v341
  %v469 = vpack.c.b16 %v344, %v343
  %v470 = vpack.c.b16 %v346, %v345
  %v471 = vpack.c.b16 %v348, %v347
  %v472 = vpack.c.b16 %v350, %v349
  %v473 = vpack.c.b16 %v352, %v351
  %v474 = vpack.c.b16 %v354, %v353
  %v475 = vpack.c.b16 %v356, %v355
  %v476 = vpack.c.b16 %v358, %v357
  %v477 = vpack.c.b16 %v360, %v359
  %v478 = vpack.c.b16 %v362, %v361
  %v479 = vpack.c.b16 %v364, %v363
  %v480 = vpack.c.b16 %v366, %v365
  %v481 = vpack.c.b16 %v368, %v367
  %v482 = vpack.c.b16 %v370, %v369
  %v483 = vpack.c.b16 %v372, %v371
  %v484 = vpack.c.b16 %v374, %v373
  %v485 = vpack.c.b16 %v376, %v375
  %v486 = vpack.c.b16 %v378, %v377
  %v487 = vpack.c.b16 %v380, %v379
  %v488 = vpack.c.b16 %v382, %v381
  %v489 = vpack.c.b16 %v384, %v383
  %v490 = vpack.c.b16 %v386, %v385
  %v491 = vpack.c.b16 %v388, %v387
  %v492 = vpack.c.b16 %v390, %v389
  %v493 = vpack.c.b16 %v392, %v391
  %v494 = vpack.c.b16 %v394, %v393
  %v495 = vpack.c.b16 %v396, %v395
  %v496 = vpack.c.b16 %v398, %v397
  %v497 = vpack.c.b16 %v400, %v399
  %v498 = vpack.c.b16 %v402, %v401
  %v499 = vpack.c.b16 %v404, %v403
  %v500 = vpack.c.b16 %v406, %v405
  %v501 = vpack.c.b16 %v408, %v407
  %v502 = vpack.c.b16 %v410, %v409
  %v503 = vpack.c.b16 %v412, %v411
  %v504 = vpack.c.b16 %v414, %v413
  %v505 = vpack.c.b16 %v416, %v415
  %v506 = vpack.c.b16 %v418, %v417
  %v507 = vpack.c.b16 %v420, %v419
  %v508 = vpack.c.b16 %v422, %v421
  %v509 = vpack.c.b16 %v424, %v423
  %v510 = vpack.c.b16 %v426, %v425
  %v511 = vpack.c.b16 %v428, %v427
  %v512 = vpack.c.b16 %v430, %v429
  %v513 = vpack.c.b16 %v432, %v431
  %v514 = vpack.c.b16 %v434, %v433
  %v515 = vpack.c.b16 %v436, %v435
  %v516 = vpack.c.b16 %v438, %v437
  %v517 = vpack.c.b16 %v440, %v439
  %v518 = vpack.c.b16 %v442, %v441
  %v519 = vpack.c.b16 %v444, %v443
  %v520 = vpack.c.b16 %v446, %v445
  %v521 = vpack.c.b16 %v448, %v447
  %v522 = vpack.c.b16 %v450, %v449
  %v527 = vunpack.c.l.b16 %v159
  %v528 = vunpack.c.l.b16 %v160
  %v529 = vunpack.c.l.b16 %v161
  %v530 = vunpack.c.l.b16 %v162
  %v531 = vpack.c.b16 %v528, %v527
  %v532 = vpack.c.b16 %v530, %v529
  %vm534 = vcmask 203776
  %v536 = vsel %vm534, %v451, 0
  %v539 = vsel %vm534, %v452, 0
  %v542 = vsel %vm534, %v453, 0
  %v545 = vsel %vm534, %v454, 0
  %v548 = vsel %vm534, %v455, 0
  %v551 = vsel %vm534, %v456, 0
  %v554 = vsel %vm534, %v457, 0
  %v557 = vsel %vm534, %v458, 0
  %v560 = vsel %vm534, %v459, 0
  %v563 = vsel %vm534, %v460, 0
  %v566 = vsel %vm534, %v461, 0
  %v569 = vsel %vm534, %v462, 0
  %v572 = vsel %vm534, %v463, 0
  %v575 = vsel %vm534, %v464, 0
  %v578 = vsel %vm534, %v465, 0
  %v581 = vsel %vm534, %v466, 0
  %v584 = vsel %vm534, %v467, 0
  %v587 = vsel %vm534, %v468, 0
  %v590 = vsel %vm534, %v469, 0
  %v593 = vsel %vm534, %v470, 0
  %v596 = vsel %vm534, %v471, 0
  %v599 = vsel %vm534, %v472, 0
  %v602 = vsel %vm534, %v473, 0
  %v605 = vsel %vm534, %v474, 0
  %v608 = vsel %vm534, %v475, 0
  %v611 = vsel %vm534, %v476, 0
  %v614 = vsel %vm534, %v477, 0
  %v617 = vsel %vm534, %v478, 0
  %v620 = vsel %vm534, %v479, 0
  %v623 = vsel %vm534, %v480, 0
  %v626 = vsel %vm534, %v481, 0
  %v629 = vsel %vm534, %v482, 0
  %v632 = vsel %vm534, %v483, 0
  %v635 = vsel %vm534, %v484, 0
  %v638 = vsel %vm534, %v485, 0
  %v641 = vsel %vm534, %v486, 0
  %v644 = vsel %vm534, %v487, 0
  %v647 = vsel %vm534, %v488, 0
  %v650 = vsel %vm534, %v489, 0
  %v653 = vsel %vm534, %v490, 0
  %v656 = vsel %vm534, %v491, 0
  %v659 = vsel %vm534, %v492, 0
  %v662 = vsel %vm534, %v493, 0
  %v665 = vsel %vm534, %v494, 0
  %v668 = vsel %vm534, %v495, 0
  %v671 = vsel %vm534, %v496, 0
  %v674 = vsel %vm534, %v497, 0
  %v677 = vsel %vm534, %v498, 0
  %v680 = vsel %vm534, %v499, 0
  %v683 = vsel %vm534, %v500, 0
  %v686 = vsel %vm534, %v501, 0
  %v689 = vsel %vm534, %v502, 0
  %v692 = vsel %vm534, %v503, 0
  %v695 = vsel %vm534, %v504, 0
  %v698 = vsel %vm534, %v505, 0
  %v701 = vsel %vm534, %v506, 0
  %v704 = vsel %vm534, %v507, 0
  %v707 = vsel %vm534, %v508, 0
  %v710 = vsel %vm534, %v509, 0
  %v713 = vsel %vm534, %v510, 0
  %v716 = vsel %vm534, %v511, 0
  %v719 = vsel %vm534, %v512, 0
  %v722 = vsel %vm534, %v513, 0
  %v725 = vsel %vm534, %v514, 0
  %v728 = vsel %vm534, %v515, 0
  %v731 = vsel %vm534, %v516, 0
  %v734 = vsel %vm534, %v517, 0
  %v737 = vsel %vm534, %v518, 0
  %v740 = vsel %vm534, %v519, 0
  %v743 = vsel %vm534, %v520, 0
  %v746 = vsel %vm534, %v521, 0
  %v749 = vsel %vm534, %v522, 0
  %vm751 = vcmask 1043456
  %vm752 = vcmask 1044480
  %v753 = vsel %vm751, 4294967295, 65535
  %v754 = vsel %vm752, %v753, 0
  %v756 = vand.u32 %v532, %v754
  %758 = vmatprep.subr.bf16.mxu0 0
  %759 = vmatpush1.bf16.msra.mxu0 0
  %760 = vmatprep.subr.bf16.mxu0 0
  %761 = vmatpush1.bf16.msra.mxu0 0
  %762 = vmatprep.subr.bf16.mxu0 0
  %763 = vmatpush1.bf16.msra.mxu0 0
  %764 = vmatprep.subr.bf16.mxu0 0
  %765 = vmatpush1.bf16.msra.mxu0 0
  %766 = vmatprep.subr.bf16.mxu0 0
  %767 = vmatpush1.bf16.msra.mxu0 0
  %768 = vmatprep.subr.bf16.mxu0 0
  %769 = vmatpush1.bf16.msra.mxu0 0
  %770 = vmatprep.subr.bf16.mxu0 0
  %771 = vmatpush1.bf16.msra.mxu0 %v756
  %772 = vmatprep.subr.bf16.mxu0 0
  %773 = vmatpush1.bf16.msra.mxu0 %v531
  %774 = vmatprep.subr.bf16.mxu0 0
  %775 = vmatpush2.bf16.msra.mxu0 0
  %776 = vmatprep.subr.bf16.mxu0 0
  %777 = vmatpush2.bf16.msra.mxu0 0
  %778 = vmatprep.subr.bf16.mxu0 0
  %779 = vmatpush2.bf16.msra.mxu0 0
  %780 = vmatprep.subr.bf16.mxu0 0
  %781 = vmatpush2.bf16.msra.mxu0 0
  %782 = vmatprep.subr.bf16.mxu0 0
  %783 = vmatpush2.bf16.msra.mxu0 0
  %784 = vmatprep.subr.bf16.mxu0 0
  %785 = vmatpush2.bf16.msra.mxu0 0
  %786 = vmatprep.subr.bf16.mxu0 0
  %787 = vmatpush2.bf16.msra.mxu0 0
  %788 = vmatprep.subr.bf16.mxu0 0
  %789 = vmatpush2.bf16.msra.mxu0 0
  %790 = vmatprep.mubr.bf16.mxu0 0
  %791 = vmatmul.mubr.bf16.gmra.mxu0 %v536
  %v792 = vpop.f32.mrf.mxu0
  %v793 = vadd.f32 0.0, %v792
  %v794 = vpop.f32.mrf.mxu0
  %v795 = vpop.f32.mrf.mxu0
  %v796 = vadd.f32 0.0, %v795
  %v797 = vpop.f32.mrf.mxu0
  %798 = vmatprep.mubr.bf16.mxu0 0
  %799 = vmatmul.mubr.bf16.gmra.mxu0 %v539
  %v800 = vpop.f32.mrf.mxu0
  %v801 = vadd.f32 0.0, %v800
  %v802 = vpop.f32.mrf.mxu0
  %v803 = vpop.f32.mrf.mxu0
  %v804 = vadd.f32 0.0, %v803
  %v805 = vpop.f32.mrf.mxu0
  %806 = vmatprep.mubr.bf16.mxu0 0
  %807 = vmatmul.mubr.bf16.gmra.mxu0 %v542
  %v808 = vpop.f32.mrf.mxu0
  %v809 = vadd.f32 0.0, %v808
  %v810 = vpop.f32.mrf.mxu0
  %v811 = vpop.f32.mrf.mxu0
  %v812 = vadd.f32 0.0, %v811
  %v813 = vpop.f32.mrf.mxu0
  %814 = vmatprep.mubr.bf16.mxu0 0
  %815 = vmatmul.mubr.bf16.gmra.mxu0 %v545
  %v816 = vpop.f32.mrf.mxu0
  %v817 = vadd.f32 0.0, %v816
  %v818 = vpop.f32.mrf.mxu0
  %v819 = vpop.f32.mrf.mxu0
  %v820 = vadd.f32 0.0, %v819
  %v821 = vpop.f32.mrf.mxu0
  %822 = vmatprep.mubr.bf16.mxu0 0
  %823 = vmatmul.mubr.bf16.gmra.mxu0 %v548
  %v824 = vpop.f32.mrf.mxu0
  %v825 = vadd.f32 0.0, %v824
  %v826 = vpop.f32.mrf.mxu0
  %v827 = vpop.f32.mrf.mxu0
  %v828 = vadd.f32 0.0, %v827
  %v829 = vpop.f32.mrf.mxu0
  %830 = vmatprep.mubr.bf16.mxu0 0
  %831 = vmatmul.mubr.bf16.gmra.mxu0 %v551
  %v832 = vpop.f32.mrf.mxu0
  %v833 = vadd.f32 0.0, %v832
  %v834 = vpop.f32.mrf.mxu0
  %v835 = vpop.f32.mrf.mxu0
  %v836 = vadd.f32 0.0, %v835
  %v837 = vpop.f32.mrf.mxu0
  %838 = vmatprep.mubr.bf16.mxu0 0
  %839 = vmatmul.mubr.bf16.gmra.mxu0 %v554
  %v840 = vpop.f32.mrf.mxu0
  %v841 = vadd.f32 0.0, %v840
  %v842 = vpop.f32.mrf.mxu0
  %v843 = vpop.f32.mrf.mxu0
  %v844 = vadd.f32 0.0, %v843
  %v845 = vpop.f32.mrf.mxu0
  %846 = vmatprep.mubr.bf16.mxu0 0
  %847 = vmatmul.mubr.bf16.gmra.mxu0 %v557
  %v848 = vpop.f32.mrf.mxu0
  %v849 = vadd.f32 0.0, %v848
  %v850 = vpop.f32.mrf.mxu0
  %v851 = vpop.f32.mrf.mxu0
  %v852 = vadd.f32 0.0, %v851
  %v853 = vpop.f32.mrf.mxu0
  %854 = vmatprep.mubr.bf16.mxu0 0
  %855 = vmatmul.mubr.bf16.gmra.mxu0 %v560
  %v856 = vpop.f32.mrf.mxu0
  %v857 = vadd.f32 0.0, %v856
  %v858 = vpop.f32.mrf.mxu0
  %v859 = vpop.f32.mrf.mxu0
  %v860 = vadd.f32 0.0, %v859
  %v861 = vpop.f32.mrf.mxu0
  %862 = vmatprep.mubr.bf16.mxu0 0
  %863 = vmatmul.mubr.bf16.gmra.mxu0 %v563
  %v864 = vpop.f32.mrf.mxu0
  %v865 = vadd.f32 0.0, %v864
  %v866 = vpop.f32.mrf.mxu0
  %v867 = vpop.f32.mrf.mxu0
  %v868 = vadd.f32 0.0, %v867
  %v869 = vpop.f32.mrf.mxu0
  %870 = vmatprep.mubr.bf16.mxu0 0
  %871 = vmatmul.mubr.bf16.gmra.mxu0 %v566
  %v872 = vpop.f32.mrf.mxu0
  %v873 = vadd.f32 0.0, %v872
  %v874 = vpop.f32.mrf.mxu0
  %v875 = vpop.f32.mrf.mxu0
  %v876 = vadd.f32 0.0, %v875
  %v877 = vpop.f32.mrf.mxu0
  %878 = vmatprep.mubr.bf16.mxu0 0
  %879 = vmatmul.mubr.bf16.gmra.mxu0 %v569
  %v880 = vpop.f32.mrf.mxu0
  %v881 = vadd.f32 0.0, %v880
  %v882 = vpop.f32.mrf.mxu0
  %v883 = vpop.f32.mrf.mxu0
  %v884 = vadd.f32 0.0, %v883
  %v885 = vpop.f32.mrf.mxu0
  %886 = vmatprep.mubr.bf16.mxu0 0
  %887 = vmatmul.mubr.bf16.gmra.mxu0 %v572
  %v888 = vpop.f32.mrf.mxu0
  %v889 = vadd.f32 0.0, %v888
  %v890 = vpop.f32.mrf.mxu0
  %v891 = vpop.f32.mrf.mxu0
  %v892 = vadd.f32 0.0, %v891
  %v893 = vpop.f32.mrf.mxu0
  %894 = vmatprep.mubr.bf16.mxu0 0
  %895 = vmatmul.mubr.bf16.gmra.mxu0 %v575
  %v896 = vpop.f32.mrf.mxu0
  %v897 = vadd.f32 0.0, %v896
  %v898 = vpop.f32.mrf.mxu0
  %v899 = vpop.f32.mrf.mxu0
  %v900 = vadd.f32 0.0, %v899
  %v901 = vpop.f32.mrf.mxu0
  %902 = vmatprep.mubr.bf16.mxu0 0
  %903 = vmatmul.mubr.bf16.gmra.mxu0 %v578
  %v904 = vpop.f32.mrf.mxu0
  %v905 = vadd.f32 0.0, %v904
  %v906 = vpop.f32.mrf.mxu0
  %v907 = vpop.f32.mrf.mxu0
  %v908 = vadd.f32 0.0, %v907
  %v909 = vpop.f32.mrf.mxu0
  %910 = vmatprep.mubr.bf16.mxu0 0
  %911 = vmatmul.mubr.bf16.gmra.mxu0 %v581
  %v912 = vpop.f32.mrf.mxu0
  %v913 = vadd.f32 0.0, %v912
  %v914 = vpop.f32.mrf.mxu0
  %v915 = vpop.f32.mrf.mxu0
  %v916 = vadd.f32 0.0, %v915
  %v917 = vpop.f32.mrf.mxu0
  %918 = vmatprep.mubr.bf16.mxu0 0
  %919 = vmatmul.mubr.bf16.gmra.mxu0 %v584
  %v920 = vpop.f32.mrf.mxu0
  %v921 = vadd.f32 0.0, %v920
  %v922 = vpop.f32.mrf.mxu0
  %v923 = vpop.f32.mrf.mxu0
  %v924 = vadd.f32 0.0, %v923
  %v925 = vpop.f32.mrf.mxu0
  %926 = vmatprep.mubr.bf16.mxu0 0
  %927 = vmatmul.mubr.bf16.gmra.mxu0 %v587
  %v928 = vpop.f32.mrf.mxu0
  %v929 = vadd.f32 0.0, %v928
  %v930 = vpop.f32.mrf.mxu0
  %v931 = vpop.f32.mrf.mxu0
  %v932 = vadd.f32 0.0, %v931
  %v933 = vpop.f32.mrf.mxu0
  %934 = vmatprep.mubr.bf16.mxu0 0
  %935 = vmatmul.mubr.bf16.gmra.mxu0 %v590
  %v936 = vpop.f32.mrf.mxu0
  %v937 = vadd.f32 0.0, %v936
  %v938 = vpop.f32.mrf.mxu0
  %v939 = vpop.f32.mrf.mxu0
  %v940 = vadd.f32 0.0, %v939
  %v941 = vpop.f32.mrf.mxu0
  %942 = vmatprep.mubr.bf16.mxu0 0
  %943 = vmatmul.mubr.bf16.gmra.mxu0 %v593
  %v944 = vpop.f32.mrf.mxu0
  %v945 = vadd.f32 0.0, %v944
  %v946 = vpop.f32.mrf.mxu0
  %v947 = vpop.f32.mrf.mxu0
  %v948 = vadd.f32 0.0, %v947
  %v949 = vpop.f32.mrf.mxu0
  %950 = vmatprep.mubr.bf16.mxu0 0
  %951 = vmatmul.mubr.bf16.gmra.mxu0 %v596
  %v952 = vpop.f32.mrf.mxu0
  %v953 = vadd.f32 0.0, %v952
  %v954 = vpop.f32.mrf.mxu0
  %v955 = vpop.f32.mrf.mxu0
  %v956 = vadd.f32 0.0, %v955
  %v957 = vpop.f32.mrf.mxu0
  %958 = vmatprep.mubr.bf16.mxu0 0
  %959 = vmatmul.mubr.bf16.gmra.mxu0 %v599
  %v960 = vpop.f32.mrf.mxu0
  %v961 = vadd.f32 0.0, %v960
  %v962 = vpop.f32.mrf.mxu0
  %v963 = vpop.f32.mrf.mxu0
  %v964 = vadd.f32 0.0, %v963
  %v965 = vpop.f32.mrf.mxu0
  %966 = vmatprep.mubr.bf16.mxu0 0
  %967 = vmatmul.mubr.bf16.gmra.mxu0 %v602
  %v968 = vpop.f32.mrf.mxu0
  %v969 = vadd.f32 0.0, %v968
  %v970 = vpop.f32.mrf.mxu0
  %v971 = vpop.f32.mrf.mxu0
  %v972 = vadd.f32 0.0, %v971
  %v973 = vpop.f32.mrf.mxu0
  %974 = vmatprep.mubr.bf16.mxu0 0
  %975 = vmatmul.mubr.bf16.gmra.mxu0 %v605
  %v976 = vpop.f32.mrf.mxu0
  %v977 = vadd.f32 0.0, %v976
  %v978 = vpop.f32.mrf.mxu0
  %v979 = vpop.f32.mrf.mxu0
  %v980 = vadd.f32 0.0, %v979
  %v981 = vpop.f32.mrf.mxu0
  %982 = vmatprep.mubr.bf16.mxu0 0
  %983 = vmatmul.mubr.bf16.gmra.mxu0 %v608
  %v984 = vpop.f32.mrf.mxu0
  %v985 = vadd.f32 0.0, %v984
  %v986 = vpop.f32.mrf.mxu0
  %v987 = vpop.f32.mrf.mxu0
  %v988 = vadd.f32 0.0, %v987
  %v989 = vpop.f32.mrf.mxu0
  %990 = vmatprep.mubr.bf16.mxu0 0
  %991 = vmatmul.mubr.bf16.gmra.mxu0 %v611
  %v992 = vpop.f32.mrf.mxu0
  %v993 = vadd.f32 0.0, %v992
  %v994 = vpop.f32.mrf.mxu0
  %v995 = vpop.f32.mrf.mxu0
  %v996 = vadd.f32 0.0, %v995
  %v997 = vpop.f32.mrf.mxu0
  %998 = vmatprep.mubr.bf16.mxu0 0
  %999 = vmatmul.mubr.bf16.gmra.mxu0 %v614
  %v1000 = vpop.f32.mrf.mxu0
  %v1001 = vadd.f32 0.0, %v1000
  %v1002 = vpop.f32.mrf.mxu0
  %v1003 = vpop.f32.mrf.mxu0
  %v1004 = vadd.f32 0.0, %v1003
  %v1005 = vpop.f32.mrf.mxu0
  %1006 = vmatprep.mubr.bf16.mxu0 0
  %1007 = vmatmul.mubr.bf16.gmra.mxu0 %v617
  %v1008 = vpop.f32.mrf.mxu0
  %v1009 = vadd.f32 0.0, %v1008
  %v1010 = vpop.f32.mrf.mxu0
  %v1011 = vpop.f32.mrf.mxu0
  %v1012 = vadd.f32 0.0, %v1011
  %v1013 = vpop.f32.mrf.mxu0
  %1014 = vmatprep.mubr.bf16.mxu0 0
  %1015 = vmatmul.mubr.bf16.gmra.mxu0 %v620
  %v1016 = vpop.f32.mrf.mxu0
  %v1017 = vadd.f32 0.0, %v1016
  %v1018 = vpop.f32.mrf.mxu0
  %v1019 = vpop.f32.mrf.mxu0
  %v1020 = vadd.f32 0.0, %v1019
  %v1021 = vpop.f32.mrf.mxu0
  %1022 = vmatprep.mubr.bf16.mxu0 0
  %1023 = vmatmul.mubr.bf16.gmra.mxu0 %v623
  %v1024 = vpop.f32.mrf.mxu0
  %v1025 = vadd.f32 0.0, %v1024
  %v1026 = vpop.f32.mrf.mxu0
  %v1027 = vpop.f32.mrf.mxu0
  %v1028 = vadd.f32 0.0, %v1027
  %v1029 = vpop.f32.mrf.mxu0
  %1030 = vmatprep.mubr.bf16.mxu0 0
  %1031 = vmatmul.mubr.bf16.gmra.mxu0 %v626
  %v1032 = vpop.f32.mrf.mxu0
  %v1033 = vadd.f32 0.0, %v1032
  %v1034 = vpop.f32.mrf.mxu0
  %v1035 = vpop.f32.mrf.mxu0
  %v1036 = vadd.f32 0.0, %v1035
  %v1037 = vpop.f32.mrf.mxu0
  %1038 = vmatprep.mubr.bf16.mxu0 0
  %1039 = vmatmul.mubr.bf16.gmra.mxu0 %v629
  %v1040 = vpop.f32.mrf.mxu0
  %v1041 = vadd.f32 0.0, %v1040
  %v1042 = vpop.f32.mrf.mxu0
  %v1043 = vpop.f32.mrf.mxu0
  %v1044 = vadd.f32 0.0, %v1043
  %v1045 = vpop.f32.mrf.mxu0
  %1046 = vmatprep.mubr.bf16.mxu0 0
  %1047 = vmatmul.mubr.bf16.gmra.mxu0 %v632
  %v1048 = vpop.f32.mrf.mxu0
  %v1049 = vadd.f32 0.0, %v1048
  %v1050 = vpop.f32.mrf.mxu0
  %v1051 = vpop.f32.mrf.mxu0
  %v1052 = vadd.f32 0.0, %v1051
  %v1053 = vpop.f32.mrf.mxu0
  %1054 = vmatprep.mubr.bf16.mxu0 0
  %1055 = vmatmul.mubr.bf16.gmra.mxu0 %v635
  %v1056 = vpop.f32.mrf.mxu0
  %v1057 = vadd.f32 0.0, %v1056
  %v1058 = vpop.f32.mrf.mxu0
  %v1059 = vpop.f32.mrf.mxu0
  %v1060 = vadd.f32 0.0, %v1059
  %v1061 = vpop.f32.mrf.mxu0
  %1062 = vmatprep.mubr.bf16.mxu0 0
  %1063 = vmatmul.mubr.bf16.gmra.mxu0 %v638
  %v1064 = vpop.f32.mrf.mxu0
  %v1065 = vadd.f32 0.0, %v1064
  %v1066 = vpop.f32.mrf.mxu0
  %v1067 = vpop.f32.mrf.mxu0
  %v1068 = vadd.f32 0.0, %v1067
  %v1069 = vpop.f32.mrf.mxu0
  %1070 = vmatprep.mubr.bf16.mxu0 0
  %1071 = vmatmul.mubr.bf16.gmra.mxu0 %v641
  %v1072 = vpop.f32.mrf.mxu0
  %v1073 = vadd.f32 0.0, %v1072
  %v1074 = vpop.f32.mrf.mxu0
  %v1075 = vpop.f32.mrf.mxu0
  %v1076 = vadd.f32 0.0, %v1075
  %v1077 = vpop.f32.mrf.mxu0
  %1078 = vmatprep.mubr.bf16.mxu0 0
  %1079 = vmatmul.mubr.bf16.gmra.mxu0 %v644
  %v1080 = vpop.f32.mrf.mxu0
  %v1081 = vadd.f32 0.0, %v1080
  %v1082 = vpop.f32.mrf.mxu0
  %v1083 = vpop.f32.mrf.mxu0
  %v1084 = vadd.f32 0.0, %v1083
  %v1085 = vpop.f32.mrf.mxu0
  %1086 = vmatprep.mubr.bf16.mxu0 0
  %1087 = vmatmul.mubr.bf16.gmra.mxu0 %v647
  %v1088 = vpop.f32.mrf.mxu0
  %v1089 = vadd.f32 0.0, %v1088
  %v1090 = vpop.f32.mrf.mxu0
  %v1091 = vpop.f32.mrf.mxu0
  %v1092 = vadd.f32 0.0, %v1091
  %v1093 = vpop.f32.mrf.mxu0
  %1094 = vmatprep.mubr.bf16.mxu0 0
  %1095 = vmatmul.mubr.bf16.gmra.mxu0 %v650
  %v1096 = vpop.f32.mrf.mxu0
  %v1097 = vadd.f32 0.0, %v1096
  %v1098 = vpop.f32.mrf.mxu0
  %v1099 = vpop.f32.mrf.mxu0
  %v1100 = vadd.f32 0.0, %v1099
  %v1101 = vpop.f32.mrf.mxu0
  %1102 = vmatprep.mubr.bf16.mxu0 0
  %1103 = vmatmul.mubr.bf16.gmra.mxu0 %v653
  %v1104 = vpop.f32.mrf.mxu0
  %v1105 = vadd.f32 0.0, %v1104
  %v1106 = vpop.f32.mrf.mxu0
  %v1107 = vpop.f32.mrf.mxu0
  %v1108 = vadd.f32 0.0, %v1107
  %v1109 = vpop.f32.mrf.mxu0
  %1110 = vmatprep.mubr.bf16.mxu0 0
  %1111 = vmatmul.mubr.bf16.gmra.mxu0 %v656
  %v1112 = vpop.f32.mrf.mxu0
  %v1113 = vadd.f32 0.0, %v1112
  %v1114 = vpop.f32.mrf.mxu0
  %v1115 = vpop.f32.mrf.mxu0
  %v1116 = vadd.f32 0.0, %v1115
  %v1117 = vpop.f32.mrf.mxu0
  %1118 = vmatprep.mubr.bf16.mxu0 0
  %1119 = vmatmul.mubr.bf16.gmra.mxu0 %v659
  %v1120 = vpop.f32.mrf.mxu0
  %v1121 = vadd.f32 0.0, %v1120
  %v1122 = vpop.f32.mrf.mxu0
  %v1123 = vpop.f32.mrf.mxu0
  %v1124 = vadd.f32 0.0, %v1123
  %v1125 = vpop.f32.mrf.mxu0
  %1126 = vmatprep.mubr.bf16.mxu0 0
  %1127 = vmatmul.mubr.bf16.gmra.mxu0 %v662
  %v1128 = vpop.f32.mrf.mxu0
  %v1129 = vadd.f32 0.0, %v1128
  %v1130 = vpop.f32.mrf.mxu0
  %v1131 = vpop.f32.mrf.mxu0
  %v1132 = vadd.f32 0.0, %v1131
  %v1133 = vpop.f32.mrf.mxu0
  %1134 = vmatprep.mubr.bf16.mxu0 0
  %1135 = vmatmul.mubr.bf16.gmra.mxu0 %v665
  %v1136 = vpop.f32.mrf.mxu0
  %v1137 = vadd.f32 0.0, %v1136
  %v1138 = vpop.f32.mrf.mxu0
  %v1139 = vpop.f32.mrf.mxu0
  %v1140 = vadd.f32 0.0, %v1139
  %v1141 = vpop.f32.mrf.mxu0
  %1142 = vmatprep.mubr.bf16.mxu0 0
  %1143 = vmatmul.mubr.bf16.gmra.mxu0 %v668
  %v1144 = vpop.f32.mrf.mxu0
  %v1145 = vadd.f32 0.0, %v1144
  %v1146 = vpop.f32.mrf.mxu0
  %v1147 = vpop.f32.mrf.mxu0
  %v1148 = vadd.f32 0.0, %v1147
  %v1149 = vpop.f32.mrf.mxu0
  %1150 = vmatprep.mubr.bf16.mxu0 0
  %1151 = vmatmul.mubr.bf16.gmra.mxu0 %v671
  %v1152 = vpop.f32.mrf.mxu0
  %v1153 = vadd.f32 0.0, %v1152
  %v1154 = vpop.f32.mrf.mxu0
  %v1155 = vpop.f32.mrf.mxu0
  %v1156 = vadd.f32 0.0, %v1155
  %v1157 = vpop.f32.mrf.mxu0
  %1158 = vmatprep.mubr.bf16.mxu0 0
  %1159 = vmatmul.mubr.bf16.gmra.mxu0 %v674
  %v1160 = vpop.f32.mrf.mxu0
  %v1161 = vadd.f32 0.0, %v1160
  %v1162 = vpop.f32.mrf.mxu0
  %v1163 = vpop.f32.mrf.mxu0
  %v1164 = vadd.f32 0.0, %v1163
  %v1165 = vpop.f32.mrf.mxu0
  %1166 = vmatprep.mubr.bf16.mxu0 0
  %1167 = vmatmul.mubr.bf16.gmra.mxu0 %v677
  %v1168 = vpop.f32.mrf.mxu0
  %v1169 = vadd.f32 0.0, %v1168
  %v1170 = vpop.f32.mrf.mxu0
  %v1171 = vpop.f32.mrf.mxu0
  %v1172 = vadd.f32 0.0, %v1171
  %v1173 = vpop.f32.mrf.mxu0
  %1174 = vmatprep.mubr.bf16.mxu0 0
  %1175 = vmatmul.mubr.bf16.gmra.mxu0 %v680
  %v1176 = vpop.f32.mrf.mxu0
  %v1177 = vadd.f32 0.0, %v1176
  %v1178 = vpop.f32.mrf.mxu0
  %v1179 = vpop.f32.mrf.mxu0
  %v1180 = vadd.f32 0.0, %v1179
  %v1181 = vpop.f32.mrf.mxu0
  %1182 = vmatprep.mubr.bf16.mxu0 0
  %1183 = vmatmul.mubr.bf16.gmra.mxu0 %v683
  %v1184 = vpop.f32.mrf.mxu0
  %v1185 = vadd.f32 0.0, %v1184
  %v1186 = vpop.f32.mrf.mxu0
  %v1187 = vpop.f32.mrf.mxu0
  %v1188 = vadd.f32 0.0, %v1187
  %v1189 = vpop.f32.mrf.mxu0
  %1190 = vmatprep.mubr.bf16.mxu0 0
  %1191 = vmatmul.mubr.bf16.gmra.mxu0 %v686
  %v1192 = vpop.f32.mrf.mxu0
  %v1193 = vadd.f32 0.0, %v1192
  %v1194 = vpop.f32.mrf.mxu0
  %v1195 = vpop.f32.mrf.mxu0
  %v1196 = vadd.f32 0.0, %v1195
  %v1197 = vpop.f32.mrf.mxu0
  %1198 = vmatprep.mubr.bf16.mxu0 0
  %1199 = vmatmul.mubr.bf16.gmra.mxu0 %v689
  %v1200 = vpop.f32.mrf.mxu0
  %v1201 = vadd.f32 0.0, %v1200
  %v1202 = vpop.f32.mrf.mxu0
  %v1203 = vpop.f32.mrf.mxu0
  %v1204 = vadd.f32 0.0, %v1203
  %v1205 = vpop.f32.mrf.mxu0
  %1206 = vmatprep.mubr.bf16.mxu0 0
  %1207 = vmatmul.mubr.bf16.gmra.mxu0 %v692
  %v1208 = vpop.f32.mrf.mxu0
  %v1209 = vadd.f32 0.0, %v1208
  %v1210 = vpop.f32.mrf.mxu0
  %v1211 = vpop.f32.mrf.mxu0
  %v1212 = vadd.f32 0.0, %v1211
  %v1213 = vpop.f32.mrf.mxu0
  %1214 = vmatprep.mubr.bf16.mxu0 0
  %1215 = vmatmul.mubr.bf16.gmra.mxu0 %v695
  %v1216 = vpop.f32.mrf.mxu0
  %v1217 = vadd.f32 0.0, %v1216
  %v1218 = vpop.f32.mrf.mxu0
  %v1219 = vpop.f32.mrf.mxu0
  %v1220 = vadd.f32 0.0, %v1219
  %v1221 = vpop.f32.mrf.mxu0
  %1222 = vmatprep.mubr.bf16.mxu0 0
  %1223 = vmatmul.mubr.bf16.gmra.mxu0 %v698
  %v1224 = vpop.f32.mrf.mxu0
  %v1225 = vadd.f32 0.0, %v1224
  %v1226 = vpop.f32.mrf.mxu0
  %v1227 = vpop.f32.mrf.mxu0
  %v1228 = vadd.f32 0.0, %v1227
  %v1229 = vpop.f32.mrf.mxu0
  %1230 = vmatprep.mubr.bf16.mxu0 0
  %1231 = vmatmul.mubr.bf16.gmra.mxu0 %v701
  %v1232 = vpop.f32.mrf.mxu0
  %v1233 = vadd.f32 0.0, %v1232
  %v1234 = vpop.f32.mrf.mxu0
  %v1235 = vpop.f32.mrf.mxu0
  %v1236 = vadd.f32 0.0, %v1235
  %v1237 = vpop.f32.mrf.mxu0
  %1238 = vmatprep.mubr.bf16.mxu0 0
  %1239 = vmatmul.mubr.bf16.gmra.mxu0 %v704
  %v1240 = vpop.f32.mrf.mxu0
  %v1241 = vadd.f32 0.0, %v1240
  %v1242 = vpop.f32.mrf.mxu0
  %v1243 = vpop.f32.mrf.mxu0
  %v1244 = vadd.f32 0.0, %v1243
  %v1245 = vpop.f32.mrf.mxu0
  %1246 = vmatprep.mubr.bf16.mxu0 0
  %1247 = vmatmul.mubr.bf16.gmra.mxu0 %v707
  %v1248 = vpop.f32.mrf.mxu0
  %v1249 = vadd.f32 0.0, %v1248
  %v1250 = vpop.f32.mrf.mxu0
  %v1251 = vpop.f32.mrf.mxu0
  %v1252 = vadd.f32 0.0, %v1251
  %v1253 = vpop.f32.mrf.mxu0
  %1254 = vmatprep.mubr.bf16.mxu0 0
  %1255 = vmatmul.mubr.bf16.gmra.mxu0 %v710
  %v1256 = vpop.f32.mrf.mxu0
  %v1257 = vadd.f32 0.0, %v1256
  %v1258 = vpop.f32.mrf.mxu0
  %v1259 = vpop.f32.mrf.mxu0
  %v1260 = vadd.f32 0.0, %v1259
  %v1261 = vpop.f32.mrf.mxu0
  %1262 = vmatprep.mubr.bf16.mxu0 0
  %1263 = vmatmul.mubr.bf16.gmra.mxu0 %v713
  %v1264 = vpop.f32.mrf.mxu0
  %v1265 = vadd.f32 0.0, %v1264
  %v1266 = vpop.f32.mrf.mxu0
  %v1267 = vpop.f32.mrf.mxu0
  %v1268 = vadd.f32 0.0, %v1267
  %v1269 = vpop.f32.mrf.mxu0
  %1270 = vmatprep.mubr.bf16.mxu0 0
  %1271 = vmatmul.mubr.bf16.gmra.mxu0 %v716
  %v1272 = vpop.f32.mrf.mxu0
  %v1273 = vadd.f32 0.0, %v1272
  %v1274 = vpop.f32.mrf.mxu0
  %v1275 = vpop.f32.mrf.mxu0
  %v1276 = vadd.f32 0.0, %v1275
  %v1277 = vpop.f32.mrf.mxu0
  %1278 = vmatprep.mubr.bf16.mxu0 0
  %1279 = vmatmul.mubr.bf16.gmra.mxu0 %v719
  %v1280 = vpop.f32.mrf.mxu0
  %v1281 = vadd.f32 0.0, %v1280
  %v1282 = vpop.f32.mrf.mxu0
  %v1283 = vpop.f32.mrf.mxu0
  %v1284 = vadd.f32 0.0, %v1283
  %v1285 = vpop.f32.mrf.mxu0
  %1286 = vmatprep.mubr.bf16.mxu0 0
  %1287 = vmatmul.mubr.bf16.gmra.mxu0 %v722
  %v1288 = vpop.f32.mrf.mxu0
  %v1289 = vadd.f32 0.0, %v1288
  %v1290 = vpop.f32.mrf.mxu0
  %v1291 = vpop.f32.mrf.mxu0
  %v1292 = vadd.f32 0.0, %v1291
  %v1293 = vpop.f32.mrf.mxu0
  %1294 = vmatprep.mubr.bf16.mxu0 0
  %1295 = vmatmul.mubr.bf16.gmra.mxu0 %v725
  %v1296 = vpop.f32.mrf.mxu0
  %v1297 = vadd.f32 0.0, %v1296
  %v1298 = vpop.f32.mrf.mxu0
  %v1299 = vpop.f32.mrf.mxu0
  %v1300 = vadd.f32 0.0, %v1299
  %v1301 = vpop.f32.mrf.mxu0
  %1302 = vmatprep.mubr.bf16.mxu0 0
  %1303 = vmatmul.mubr.bf16.gmra.mxu0 %v728
  %v1304 = vpop.f32.mrf.mxu0
  %v1305 = vadd.f32 0.0, %v1304
  %v1306 = vpop.f32.mrf.mxu0
  %v1307 = vpop.f32.mrf.mxu0
  %v1308 = vadd.f32 0.0, %v1307
  %v1309 = vpop.f32.mrf.mxu0
  %1310 = vmatprep.mubr.bf16.mxu0 0
  %1311 = vmatmul.mubr.bf16.gmra.mxu0 %v731
  %v1312 = vpop.f32.mrf.mxu0
  %v1313 = vadd.f32 0.0, %v1312
  %v1314 = vpop.f32.mrf.mxu0
  %v1315 = vpop.f32.mrf.mxu0
  %v1316 = vadd.f32 0.0, %v1315
  %v1317 = vpop.f32.mrf.mxu0
  %1318 = vmatprep.mubr.bf16.mxu0 0
  %1319 = vmatmul.mubr.bf16.gmra.mxu0 %v734
  %v1320 = vpop.f32.mrf.mxu0
  %v1321 = vadd.f32 0.0, %v1320
  %v1322 = vpop.f32.mrf.mxu0
  %v1323 = vpop.f32.mrf.mxu0
  %v1324 = vadd.f32 0.0, %v1323
  %v1325 = vpop.f32.mrf.mxu0
  %1326 = vmatprep.mubr.bf16.mxu0 0
  %1327 = vmatmul.mubr.bf16.gmra.mxu0 %v737
  %v1328 = vpop.f32.mrf.mxu0
  %v1329 = vadd.f32 0.0, %v1328
  %v1330 = vpop.f32.mrf.mxu0
  %v1331 = vpop.f32.mrf.mxu0
  %v1332 = vadd.f32 0.0, %v1331
  %v1333 = vpop.f32.mrf.mxu0
  %1334 = vmatprep.mubr.bf16.mxu0 0
  %1335 = vmatmul.mubr.bf16.gmra.mxu0 %v740
  %v1336 = vpop.f32.mrf.mxu0
  %v1337 = vadd.f32 0.0, %v1336
  %v1338 = vpop.f32.mrf.mxu0
  %v1339 = vpop.f32.mrf.mxu0
  %v1340 = vadd.f32 0.0, %v1339
  %v1341 = vpop.f32.mrf.mxu0
  %1342 = vmatprep.mubr.bf16.mxu0 0
  %1343 = vmatmul.mubr.bf16.gmra.mxu0 %v743
  %v1344 = vpop.f32.mrf.mxu0
  %v1345 = vadd.f32 0.0, %v1344
  %v1346 = vpop.f32.mrf.mxu0
  %v1347 = vpop.f32.mrf.mxu0
  %v1348 = vadd.f32 0.0, %v1347
  %v1349 = vpop.f32.mrf.mxu0
  %1350 = vmatprep.mubr.bf16.mxu0 0
  %1351 = vmatmul.mubr.bf16.gmra.mxu0 %v746
  %v1352 = vpop.f32.mrf.mxu0
  %v1353 = vadd.f32 0.0, %v1352
  %v1354 = vpop.f32.mrf.mxu0
  %v1355 = vpop.f32.mrf.mxu0
  %v1356 = vadd.f32 0.0, %v1355
  %v1357 = vpop.f32.mrf.mxu0
  %1358 = vmatprep.mubr.bf16.mxu0 0
  %1359 = vmatmul.mubr.bf16.gmra.mxu0 %v749
  %v1360 = vpop.f32.mrf.mxu0
  %v1361 = vadd.f32 0.0, %v1360
  %v1362 = vpop.f32.mrf.mxu0
  %v1363 = vpop.f32.mrf.mxu0
  %v1364 = vadd.f32 0.0, %v1363
  %v1365 = vpop.f32.mrf.mxu0
  %1366 = vdwg.mxu0
  %v1367 = vmax.f32 %v793, %v937
  %v1368 = vmax.f32 %v796, %v940
  %v1369 = vmax.f32 %v801, %v945
  %v1370 = vmax.f32 %v804, %v948
  %v1371 = vmax.f32 %v809, %v953
  %v1372 = vmax.f32 %v812, %v956
  %v1373 = vmax.f32 %v817, %v961
  %v1374 = vmax.f32 %v820, %v964
  %v1375 = vmax.f32 %v825, %v969
  %v1376 = vmax.f32 %v828, %v972
  %v1377 = vmax.f32 %v833, %v977
  %v1378 = vmax.f32 %v836, %v980
  %v1379 = vmax.f32 %v841, %v985
  %v1380 = vmax.f32 %v844, %v988
  %v1381 = vmax.f32 %v849, %v993
  %v1382 = vmax.f32 %v852, %v996
  %v1383 = vmax.f32 %v857, %v1001
  %v1384 = vmax.f32 %v860, %v1004
  %v1385 = vmax.f32 %v865, %v1009
  %v1386 = vmax.f32 %v868, %v1012
  %v1387 = vmax.f32 %v873, %v1017
  %v1388 = vmax.f32 %v876, %v1020
  %v1389 = vmax.f32 %v881, %v1025
  %v1390 = vmax.f32 %v884, %v1028
  %v1391 = vmax.f32 %v889, %v1033
  %v1392 = vmax.f32 %v892, %v1036
  %v1393 = vmax.f32 %v897, %v1041
  %v1394 = vmax.f32 %v900, %v1044
  %v1395 = vmax.f32 %v905, %v1049
  %v1396 = vmax.f32 %v908, %v1052
  %v1397 = vmax.f32 %v913, %v1057
  %v1398 = vmax.f32 %v916, %v1060
  %v1399 = vmax.f32 %v921, %v1065
  %v1400 = vmax.f32 %v924, %v1068
  %v1401 = vmax.f32 %v929, %v1073
  %v1402 = vmax.f32 %v932, %v1076
  %v1403 = vmax.f32 %v1367, %v1081
  %v1404 = vmax.f32 %v1368, %v1084
  %v1405 = vmax.f32 %v1369, %v1089
  %v1406 = vmax.f32 %v1370, %v1092
  %v1407 = vmax.f32 %v1371, %v1097
  %v1408 = vmax.f32 %v1372, %v1100
  %v1409 = vmax.f32 %v1373, %v1105
  %v1410 = vmax.f32 %v1374, %v1108
  %v1411 = vmax.f32 %v1375, %v1113
  %v1412 = vmax.f32 %v1376, %v1116
  %v1413 = vmax.f32 %v1377, %v1121
  %v1414 = vmax.f32 %v1378, %v1124
  %v1415 = vmax.f32 %v1379, %v1129
  %v1416 = vmax.f32 %v1380, %v1132
  %v1417 = vmax.f32 %v1381, %v1137
  %v1418 = vmax.f32 %v1382, %v1140
  %v1419 = vmax.f32 %v1383, %v1145
  %v1420 = vmax.f32 %v1384, %v1148
  %v1421 = vmax.f32 %v1385, %v1153
  %v1422 = vmax.f32 %v1386, %v1156
  %v1423 = vmax.f32 %v1387, %v1161
  %v1424 = vmax.f32 %v1388, %v1164
  %v1425 = vmax.f32 %v1389, %v1169
  %v1426 = vmax.f32 %v1390, %v1172
  %v1427 = vmax.f32 %v1391, %v1177
  %v1428 = vmax.f32 %v1392, %v1180
  %v1429 = vmax.f32 %v1393, %v1185
  %v1430 = vmax.f32 %v1394, %v1188
  %v1431 = vmax.f32 %v1395, %v1193
  %v1432 = vmax.f32 %v1396, %v1196
  %v1433 = vmax.f32 %v1397, %v1201
  %v1434 = vmax.f32 %v1398, %v1204
  %v1435 = vmax.f32 %v1399, %v1209
  %v1436 = vmax.f32 %v1400, %v1212
  %v1437 = vmax.f32 %v1401, %v1217
  %v1438 = vmax.f32 %v1402, %v1220
  %v1439 = vmax.f32 %v1403, %v1225
  %v1440 = vmax.f32 %v1404, %v1228
  %v1441 = vmax.f32 %v1405, %v1233
  %v1442 = vmax.f32 %v1406, %v1236
  %v1443 = vmax.f32 %v1407, %v1241
  %v1444 = vmax.f32 %v1408, %v1244
  %v1445 = vmax.f32 %v1409, %v1249
  %v1446 = vmax.f32 %v1410, %v1252
  %v1447 = vmax.f32 %v1411, %v1257
  %v1448 = vmax.f32 %v1412, %v1260
  %v1449 = vmax.f32 %v1413, %v1265
  %v1450 = vmax.f32 %v1414, %v1268
  %v1451 = vmax.f32 %v1415, %v1273
  %v1452 = vmax.f32 %v1416, %v1276
  %v1453 = vmax.f32 %v1417, %v1281
  %v1454 = vmax.f32 %v1418, %v1284
  %v1455 = vmax.f32 %v1419, %v1289
  %v1456 = vmax.f32 %v1420, %v1292
  %v1457 = vmax.f32 %v1421, %v1297
  %v1458 = vmax.f32 %v1422, %v1300
  %v1459 = vmax.f32 %v1423, %v1305
  %v1460 = vmax.f32 %v1424, %v1308
  %v1461 = vmax.f32 %v1425, %v1313
  %v1462 = vmax.f32 %v1426, %v1316
  %v1463 = vmax.f32 %v1427, %v1321
  %v1464 = vmax.f32 %v1428, %v1324
  %v1465 = vmax.f32 %v1429, %v1329
  %v1466 = vmax.f32 %v1430, %v1332
  %v1467 = vmax.f32 %v1431, %v1337
  %v1468 = vmax.f32 %v1432, %v1340
  %v1469 = vmax.f32 %v1433, %v1345
  %v1470 = vmax.f32 %v1434, %v1348
  %v1471 = vmax.f32 %v1435, %v1353
  %v1472 = vmax.f32 %v1436, %v1356
  %v1473 = vmax.f32 %v1437, %v1361
  %v1474 = vmax.f32 %v1438, %v1364
  %v1475 = vld [vmem:[%s2] sm:$0x1]
  %v1477 = vlaneseq
  %v1478 = vshrl.u32 %v1477, 7
  %v1479 = vsub.s32 0, %v1478
  %v1480 = vrot.slane %v1475, %v1479
  %v1482 = vadd.f32 %v1439, %v1480
  %v1483 = vadd.f32 %v1440, %v1480
  %v1484 = vadd.f32 %v1441, %v1480
  %v1485 = vadd.f32 %v1442, %v1480
  %v1486 = vadd.f32 %v1443, %v1480
  %v1487 = vadd.f32 %v1444, %v1480
  %v1488 = vadd.f32 %v1445, %v1480
  %v1489 = vadd.f32 %v1446, %v1480
  %v1490 = vadd.f32 %v1447, %v1480
  %v1491 = vadd.f32 %v1448, %v1480
  %v1492 = vadd.f32 %v1449, %v1480
  %v1493 = vadd.f32 %v1450, %v1480
  %v1494 = vadd.f32 %v1451, %v1480
  %v1495 = vadd.f32 %v1452, %v1480
  %v1496 = vadd.f32 %v1453, %v1480
  %v1497 = vadd.f32 %v1454, %v1480
  %v1498 = vadd.f32 %v1455, %v1480
  %v1499 = vadd.f32 %v1456, %v1480
  %v1500 = vadd.f32 %v1457, %v1480
  %v1501 = vadd.f32 %v1458, %v1480
  %v1502 = vadd.f32 %v1459, %v1480
  %v1503 = vadd.f32 %v1460, %v1480
  %v1504 = vadd.f32 %v1461, %v1480
  %v1505 = vadd.f32 %v1462, %v1480
  %v1506 = vadd.f32 %v1463, %v1480
  %v1507 = vadd.f32 %v1464, %v1480
  %v1508 = vadd.f32 %v1465, %v1480
  %v1509 = vadd.f32 %v1466, %v1480
  %v1510 = vadd.f32 %v1467, %v1480
  %v1511 = vadd.f32 %v1468, %v1480
  %v1512 = vadd.f32 %v1469, %v1480
  %v1513 = vadd.f32 %v1470, %v1480
  %v1514 = vadd.f32 %v1471, %v1480
  %v1515 = vadd.f32 %v1472, %v1480
  %v1516 = vadd.f32 %v1473, %v1480
  %v1517 = vadd.f32 %v1474, %v1480
  %v1518 = vpack.c.bf16 %v1483, %v1482
  %v1519 = vpack.c.bf16 %v1485, %v1484
  %v1520 = vpack.c.bf16 %v1487, %v1486
  %v1521 = vpack.c.bf16 %v1489, %v1488
  %v1522 = vpack.c.bf16 %v1491, %v1490
  %v1523 = vpack.c.bf16 %v1493, %v1492
  %v1524 = vpack.c.bf16 %v1495, %v1494
  %v1525 = vpack.c.bf16 %v1497, %v1496
  %v1526 = vpack.c.bf16 %v1499, %v1498
  %v1527 = vpack.c.bf16 %v1501, %v1500
  %v1528 = vpack.c.bf16 %v1503, %v1502
  %v1529 = vpack.c.bf16 %v1505, %v1504
  %v1530 = vpack.c.bf16 %v1507, %v1506
  %v1531 = vpack.c.bf16 %v1509, %v1508
  %v1532 = vpack.c.bf16 %v1511, %v1510
  %v1533 = vpack.c.bf16 %v1513, %v1512
  %v1534 = vpack.c.bf16 %v1515, %v1514
  %v1535 = vpack.c.bf16 %v1517, %v1516
  %v1554 = vunpack.c.l.b16 %v1518
  %v1555 = vunpack.c.h.b16 %v1518
  %v1556 = vunpack.c.l.b16 %v1519
  %v1557 = vunpack.c.h.b16 %v1519
  %v1558 = vunpack.c.l.b16 %v1520
  %v1559 = vunpack.c.h.b16 %v1520
  %v1560 = vunpack.c.l.b16 %v1521
  %v1561 = vunpack.c.h.b16 %v1521
  %v1562 = vunpack.c.l.b16 %v1522
  %v1563 = vunpack.c.h.b16 %v1522
  %v1564 = vunpack.c.l.b16 %v1523
  %v1565 = vunpack.c.h.b16 %v1523
  %v1566 = vunpack.c.l.b16 %v1524
  %v1567 = vunpack.c.h.b16 %v1524
  %v1568 = vunpack.c.l.b16 %v1525
  %v1569 = vunpack.c.h.b16 %v1525
  %v1570 = vunpack.c.l.b16 %v1526
  %v1571 = vunpack.c.h.b16 %v1526
  %v1572 = vunpack.c.l.b16 %v1527
  %v1573 = vunpack.c.h.b16 %v1527
  %v1574 = vunpack.c.l.b16 %v1528
  %v1575 = vunpack.c.h.b16 %v1528
  %v1576 = vunpack.c.l.b16 %v1529
  %v1577 = vunpack.c.h.b16 %v1529
  %v1578 = vunpack.c.l.b16 %v1530
  %v1579 = vunpack.c.h.b16 %v1530
  %v1580 = vunpack.c.l.b16 %v1531
  %v1581 = vunpack.c.h.b16 %v1531
  %v1582 = vunpack.c.l.b16 %v1532
  %v1583 = vunpack.c.h.b16 %v1532
  %v1584 = vunpack.c.l.b16 %v1533
  %v1585 = vunpack.c.h.b16 %v1533
  %v1586 = vunpack.c.l.b16 %v1534
  %v1587 = vunpack.c.h.b16 %v1534
  %v1588 = vunpack.c.l.b16 %v1535
  %v1589 = vunpack.c.h.b16 %v1535
  %v1590 = vpack.c.b16 %v1554, %v1554
  %v1591 = vpack.c.b16 %v1555, %v1555
  %v1592 = vpack.c.b16 %v1556, %v1556
  %v1593 = vpack.c.b16 %v1557, %v1557
  %v1594 = vpack.c.b16 %v1558, %v1558
  %v1595 = vpack.c.b16 %v1559, %v1559
  %v1596 = vpack.c.b16 %v1560, %v1560
  %v1597 = vpack.c.b16 %v1561, %v1561
  %v1598 = vpack.c.b16 %v1562, %v1562
  %v1599 = vpack.c.b16 %v1563, %v1563
  %v1600 = vpack.c.b16 %v1564, %v1564
  %v1601 = vpack.c.b16 %v1565, %v1565
  %v1602 = vpack.c.b16 %v1566, %v1566
  %v1603 = vpack.c.b16 %v1567, %v1567
  %v1604 = vpack.c.b16 %v1568, %v1568
  %v1605 = vpack.c.b16 %v1569, %v1569
  %v1606 = vpack.c.b16 %v1570, %v1570
  %v1607 = vpack.c.b16 %v1571, %v1571
  %v1608 = vpack.c.b16 %v1572, %v1572
  %v1609 = vpack.c.b16 %v1573, %v1573
  %v1610 = vpack.c.b16 %v1574, %v1574
  %v1611 = vpack.c.b16 %v1575, %v1575
  %v1612 = vpack.c.b16 %v1576, %v1576
  %v1613 = vpack.c.b16 %v1577, %v1577
  %v1614 = vpack.c.b16 %v1578, %v1578
  %v1615 = vpack.c.b16 %v1579, %v1579
  %v1616 = vpack.c.b16 %v1580, %v1580
  %v1617 = vpack.c.b16 %v1581, %v1581
  %v1618 = vpack.c.b16 %v1582, %v1582
  %v1619 = vpack.c.b16 %v1583, %v1583
  %v1620 = vpack.c.b16 %v1584, %v1584
  %v1621 = vpack.c.b16 %v1585, %v1585
  %v1622 = vpack.c.b16 %v1586, %v1586
  %v1623 = vpack.c.b16 %v1587, %v1587
  %v1624 = vpack.c.b16 %v1588, %v1588
  %v1625 = vpack.c.b16 %v1589, %v1589
  %vm1662 = vcmask 257024
  %1663 = vst.msk [vmem:[%s3] sm:$0xf] %vm1662, %v1590
  %1664 = vst.msk [vmem:[%s3 + $0x4] sm:$0xf] %vm1662, %v1591
  %1665 = vst.msk [vmem:[%s3 + $0x8] sm:$0xf] %vm1662, %v1592
  %1666 = vst.msk [vmem:[%s3 + $0xc] sm:$0xf] %vm1662, %v1593
  %1667 = vst.msk [vmem:[%s3 + $0x10] sm:$0xf] %vm1662, %v1594
  %1668 = vst.msk [vmem:[%s3 + $0x14] sm:$0xf] %vm1662, %v1595
  %1669 = vst.msk [vmem:[%s3 + $0x18] sm:$0xf] %vm1662, %v1596
  %1670 = vst.msk [vmem:[%s3 + $0x1c] sm:$0xf] %vm1662, %v1597
  %1671 = vst.msk [vmem:[%s3 + $0x20] sm:$0xf] %vm1662, %v1598
  %1672 = vst.msk [vmem:[%s3 + $0x24] sm:$0xf] %vm1662, %v1599
  %1673 = vst.msk [vmem:[%s3 + $0x28] sm:$0xf] %vm1662, %v1600
  %1674 = vst.msk [vmem:[%s3 + $0x2c] sm:$0xf] %vm1662, %v1601
  %1675 = vst.msk [vmem:[%s3 + $0x30] sm:$0xf] %vm1662, %v1602
  %1676 = vst.msk [vmem:[%s3 + $0x34] sm:$0xf] %vm1662, %v1603
  %1677 = vst.msk [vmem:[%s3 + $0x38] sm:$0xf] %vm1662, %v1604
  %1678 = vst.msk [vmem:[%s3 + $0x3c] sm:$0xf] %vm1662, %v1605
  %1679 = vst.msk [vmem:[%s3 + $0x40] sm:$0xf] %vm1662, %v1606
  %1680 = vst.msk [vmem:[%s3 + $0x44] sm:$0xf] %vm1662, %v1607
  %1681 = vst.msk [vmem:[%s3 + $0x48] sm:$0xf] %vm1662, %v1608
  %1682 = vst.msk [vmem:[%s3 + $0x4c] sm:$0xf] %vm1662, %v1609
  %1683 = vst.msk [vmem:[%s3 + $0x50] sm:$0xf] %vm1662, %v1610
  %1684 = vst.msk [vmem:[%s3 + $0x54] sm:$0xf] %vm1662, %v1611
  %1685 = vst.msk [vmem:[%s3 + $0x58] sm:$0xf] %vm1662, %v1612
  %1686 = vst.msk [vmem:[%s3 + $0x5c] sm:$0xf] %vm1662, %v1613
  %1687 = vst.msk [vmem:[%s3 + $0x60] sm:$0xf] %vm1662, %v1614
  %1688 = vst.msk [vmem:[%s3 + $0x64] sm:$0xf] %vm1662, %v1615
  %1689 = vst.msk [vmem:[%s3 + $0x68] sm:$0xf] %vm1662, %v1616
  %1690 = vst.msk [vmem:[%s3 + $0x6c] sm:$0xf] %vm1662, %v1617
  %1691 = vst.msk [vmem:[%s3 + $0x70] sm:$0xf] %vm1662, %v1618
  %1692 = vst.msk [vmem:[%s3 + $0x74] sm:$0xf] %vm1662, %v1619
  %1693 = vst.msk [vmem:[%s3 + $0x78] sm:$0xf] %vm1662, %v1620
  %1694 = vst.msk [vmem:[%s3 + $0x7c] sm:$0xf] %vm1662, %v1621
  %1695 = vst.msk [vmem:[%s3 + $0x80] sm:$0xf] %vm1662, %v1622
  %1696 = vst.msk [vmem:[%s3 + $0x84] sm:$0xf] %vm1662, %v1623
  %1697 = vst.msk [vmem:[%s3 + $0x88] sm:$0xf] %vm1662, %v1624
  %1698 = vst.msk [vmem:[%s3 + $0x8c] sm:$0xf] %vm1662, %v1625
  // Predicated region
  $region14: #{lenet_forward.3} parent=0 // pred_check
    _
  $region15: #{lenet_forward.3} parent=0 // pred_check_branch
    %1700 = sbr.rel (0) target = $region17
  $region16: #{lenet_forward.3} parent=0 // pred_region
    _
  $region17: #{lenet_forward.3} parent=0 // pred_fallthru
    _
  // Predicated region
  $region18: #{lenet_forward.3} parent=0 // pred_check
    _
  $region19: #{lenet_forward.3} parent=0 // pred_check_branch
    %1702 = sbr.rel (0) target = $region21
  $region20: #{lenet_forward.3} parent=0 // pred_region
    _
  $region21: #{lenet_forward.3} parent=0 // pred_fallthru
    _

// kernel: lenet_forward.4
$region0: #{lenet_forward.4}
  #allocation0 [shape = 'u32[]', space=smem, size = 0x4, offset = 0x4, fixed_abs, tag = 'smem constant byte address 0x4 - core index']
  #allocation1 [shape = 'u32[144,128]{1,0:T(1,128)}', space=vmem, size = 0x12000, scoped, tag = 'internal scratch']
  %s0 = inlined_call_operand.vmem [shape: bf16[4,32,800], index: 0, kind: input, shape index: {}]
  %s1 = inlined_call_operand.vmem [shape: bf16[800,64], index: 1, kind: input, shape index: {}]
  %s2 = inlined_call_operand.vmem [shape: f32[1,64], index: 2, kind: input, shape index: {}]
  %s3 = inlined_call_operand.vmem [shape: bf16[32,64], index: 3, kind: output, shape index: {}]
  %s4 = sld [smem:[#allocation0]]
  $region22: #{lenet_forward.4} parent=0
    _
  %s6 = ssub.s32 1, %s4
  %s7 = scalar_select 0, %s6, %s4
  // Predicated region
  $region2: #{lenet_forward.4} parent=0 // pred_check
    _
  $region3: #{lenet_forward.4} parent=0 // pred_check_branch
    %9 = sbr.rel (0) target = $region5
  $region4: #{lenet_forward.4} parent=0 // pred_region
    _
  $region5: #{lenet_forward.4} parent=0 // pred_fallthru
    _
  // Predicated region
  $region6: #{lenet_forward.4} parent=0 // pred_check
    _
  $region7: #{lenet_forward.4} parent=0 // pred_check_branch
    %11 = sbr.rel (0) target = $region9
  $region8: #{lenet_forward.4} parent=0 // pred_region
    _
  $region9: #{lenet_forward.4} parent=0 // pred_fallthru
    _
  // Predicated region
  $region10: #{lenet_forward.4} parent=0 // pred_check
    _
  $region11: #{lenet_forward.4} parent=0 // pred_check_branch
    %13 = sbr.rel (0) target = $region13
  $region12: #{lenet_forward.4} parent=0 // pred_region
    _
  $region13: #{lenet_forward.4} parent=0 // pred_fallthru
    _
  %v15 = vld [vmem:[%s0] sm:$0xff]
  %v16 = vld [vmem:[%s0 + $0x8] sm:$0xff]
  %v17 = vld [vmem:[%s0 + $0x10] sm:$0xff]
  %v18 = vld [vmem:[%s0 + $0x18] sm:$0xf]
  %v19 = vld [vmem:[%s0 + $0x1c] sm:$0xff]
  %v20 = vld [vmem:[%s0 + $0x24] sm:$0xff]
  %v21 = vld [vmem:[%s0 + $0x2c] sm:$0xff]
  %v22 = vld [vmem:[%s0 + $0x34] sm:$0xf]
  %v23 = vld [vmem:[%s0 + $0x38] sm:$0xff]
  %v24 = vld [vmem:[%s0 + $0x40] sm:$0xff]
  %v25 = vld [vmem:[%s0 + $0x48] sm:$0xff]
  %v26 = vld [vmem:[%s0 + $0x50] sm:$0xf]
  %v27 = vld [vmem:[%s0 + $0x54] sm:$0xff]
  %v28 = vld [vmem:[%s0 + $0x5c] sm:$0xff]
  %v29 = vld [vmem:[%s0 + $0x64] sm:$0xff]
  %v30 = vld [vmem:[%s0 + $0x6c] sm:$0xf]
  %v31 = vld [vmem:[%s0 + $0x70] sm:$0xff]
  %v32 = vld [vmem:[%s0 + $0x78] sm:$0xff]
  %v33 = vld [vmem:[%s0 + $0x80] sm:$0xff]
  %v34 = vld [vmem:[%s0 + $0x88] sm:$0xf]
  %v35 = vld [vmem:[%s0 + $0x8c] sm:$0xff]
  %v36 = vld [vmem:[%s0 + $0x94] sm:$0xff]
  %v37 = vld [vmem:[%s0 + $0x9c] sm:$0xff]
  %v38 = vld [vmem:[%s0 + $0xa4] sm:$0xf]
  %v39 = vld [vmem:[%s0 + $0xa8] sm:$0xff]
  %v40 = vld [vmem:[%s0 + $0xb0] sm:$0xff]
  %v41 = vld [vmem:[%s0 + $0xb8] sm:$0xff]
  %v42 = vld [vmem:[%s0 + $0xc0] sm:$0xf]
  %v43 = vld [vmem:[%s0 + $0xc4] sm:$0xff]
  %v44 = vld [vmem:[%s0 + $0xcc] sm:$0xff]
  %v45 = vld [vmem:[%s0 + $0xd4] sm:$0xff]
  %v46 = vld [vmem:[%s0 + $0xdc] sm:$0xf]
  %v47 = vld [vmem:[%s0 + $0xe0] sm:$0xff]
  %v48 = vld [vmem:[%s0 + $0xe8] sm:$0xff]
  %v49 = vld [vmem:[%s0 + $0xf0] sm:$0xff]
  %v50 = vld [vmem:[%s0 + $0xf8] sm:$0xf]
  %v51 = vld [vmem:[%s0 + $0xfc] sm:$0xff]
  %v52 = vld [vmem:[%s0 + $0x104] sm:$0xff]
  %v53 = vld [vmem:[%s0 + $0x10c] sm:$0xff]
  %v54 = vld [vmem:[%s0 + $0x114] sm:$0xf]
  %v55 = vld [vmem:[%s0 + $0x118] sm:$0xff]
  %v56 = vld [vmem:[%s0 + $0x120] sm:$0xff]
  %v57 = vld [vmem:[%s0 + $0x128] sm:$0xff]
  %v58 = vld [vmem:[%s0 + $0x130] sm:$0xf]
  %v59 = vld [vmem:[%s0 + $0x134] sm:$0xff]
  %v60 = vld [vmem:[%s0 + $0x13c] sm:$0xff]
  %v61 = vld [vmem:[%s0 + $0x144] sm:$0xff]
  %v62 = vld [vmem:[%s0 + $0x14c] sm:$0xf]
  %v63 = vld [vmem:[%s0 + $0x150] sm:$0xff]
  %v64 = vld [vmem:[%s0 + $0x158] sm:$0xff]
  %v65 = vld [vmem:[%s0 + $0x160] sm:$0xff]
  %v66 = vld [vmem:[%s0 + $0x168] sm:$0xf]
  %v67 = vld [vmem:[%s0 + $0x16c] sm:$0xff]
  %v68 = vld [vmem:[%s0 + $0x174] sm:$0xff]
  %v69 = vld [vmem:[%s0 + $0x17c] sm:$0xff]
  %v70 = vld [vmem:[%s0 + $0x184] sm:$0xf]
  %v71 = vld [vmem:[%s0 + $0x188] sm:$0xff]
  %v72 = vld [vmem:[%s0 + $0x190] sm:$0xff]
  %v73 = vld [vmem:[%s0 + $0x198] sm:$0xff]
  %v74 = vld [vmem:[%s0 + $0x1a0] sm:$0xf]
  %v75 = vld [vmem:[%s0 + $0x1a4] sm:$0xff]
  %v76 = vld [vmem:[%s0 + $0x1ac] sm:$0xff]
  %v77 = vld [vmem:[%s0 + $0x1b4] sm:$0xff]
  %v78 = vld [vmem:[%s0 + $0x1bc] sm:$0xf]
  %v79 = vld [vmem:[%s1] sm:$0xf]
  %v80 = vld [vmem:[%s1 + $0x4] sm:$0xf]
  %v81 = vld [vmem:[%s1 + $0x8] sm:$0xf]
  %v82 = vld [vmem:[%s1 + $0xc] sm:$0xf]
  %v83 = vld [vmem:[%s1 + $0x10] sm:$0xf]
  %v84 = vld [vmem:[%s1 + $0x14] sm:$0xf]
  %v85 = vld [vmem:[%s1 + $0x18] sm:$0xf]
  %v86 = vld [vmem:[%s1 + $0x1c] sm:$0xf]
  %v87 = vld [vmem:[%s1 + $0x20] sm:$0xf]
  %v88 = vld [vmem:[%s1 + $0x24] sm:$0xf]
  %v89 = vld [vmem:[%s1 + $0x28] sm:$0xf]
  %v90 = vld [vmem:[%s1 + $0x2c] sm:$0xf]
  %v91 = vld [vmem:[%s1 + $0x30] sm:$0xf]
  %v92 = vld [vmem:[%s1 + $0x34] sm:$0xf]
  %v93 = vld [vmem:[%s1 + $0x38] sm:$0xf]
  %v94 = vld [vmem:[%s1 + $0x3c] sm:$0xf]
  %v95 = vld [vmem:[%s1 + $0x40] sm:$0xf]
  %v96 = vld [vmem:[%s1 + $0x44] sm:$0xf]
  %v97 = vld [vmem:[%s1 + $0x48] sm:$0xf]
  %v98 = vld [vmem:[%s1 + $0x4c] sm:$0xf]
  %v99 = vld [vmem:[%s1 + $0x50] sm:$0xf]
  %v100 = vld [vmem:[%s1 + $0x54] sm:$0xf]
  %v101 = vld [vmem:[%s1 + $0x58] sm:$0xf]
  %v102 = vld [vmem:[%s1 + $0x5c] sm:$0xf]
  %v103 = vld [vmem:[%s1 + $0x60] sm:$0xf]
  %v104 = vld [vmem:[%s1 + $0x64] sm:$0xf]
  %v105 = vld [vmem:[%s1 + $0x68] sm:$0xf]
  %v106 = vld [vmem:[%s1 + $0x6c] sm:$0xf]
  %v107 = vld [vmem:[%s1 + $0x70] sm:$0xf]
  %v108 = vld [vmem:[%s1 + $0x74] sm:$0xf]
  %v109 = vld [vmem:[%s1 + $0x78] sm:$0xf]
  %v110 = vld [vmem:[%s1 + $0x7c] sm:$0xf]
  %v111 = vld [vmem:[%s1 + $0x80] sm:$0xf]
  %v112 = vld [vmem:[%s1 + $0x84] sm:$0xf]
  %v113 = vld [vmem:[%s1 + $0x88] sm:$0xf]
  %v114 = vld [vmem:[%s1 + $0x8c] sm:$0xf]
  %v115 = vld [vmem:[%s1 + $0x90] sm:$0xf]
  %v116 = vld [vmem:[%s1 + $0x94] sm:$0xf]
  %v117 = vld [vmem:[%s1 + $0x98] sm:$0xf]
  %v118 = vld [vmem:[%s1 + $0x9c] sm:$0xf]
  %v119 = vld [vmem:[%s1 + $0xa0] sm:$0xf]
  %v120 = vld [vmem:[%s1 + $0xa4] sm:$0xf]
  %v121 = vld [vmem:[%s1 + $0xa8] sm:$0xf]
  %v122 = vld [vmem:[%s1 + $0xac] sm:$0xf]
  %v123 = vld [vmem:[%s1 + $0xb0] sm:$0xf]
  %v124 = vld [vmem:[%s1 + $0xb4] sm:$0xf]
  %v125 = vld [vmem:[%s1 + $0xb8] sm:$0xf]
  %v126 = vld [vmem:[%s1 + $0xbc] sm:$0xf]
  %v127 = vld [vmem:[%s1 + $0xc0] sm:$0xf]
  %v128 = vld [vmem:[%s1 + $0xc4] sm:$0xf]
  %v129 = vld [vmem:[%s1 + $0xc8] sm:$0xf]
  %v130 = vld [vmem:[%s1 + $0xcc] sm:$0xf]
  %v131 = vld [vmem:[%s1 + $0xd0] sm:$0xf]
  %v132 = vld [vmem:[%s1 + $0xd4] sm:$0xf]
  %v133 = vld [vmem:[%s1 + $0xd8] sm:$0xf]
  %v134 = vld [vmem:[%s1 + $0xdc] sm:$0xf]
  %v135 = vld [vmem:[%s1 + $0xe0] sm:$0xf]
  %v136 = vld [vmem:[%s1 + $0xe4] sm:$0xf]
  %v137 = vld [vmem:[%s1 + $0xe8] sm:$0xf]
  %v138 = vld [vmem:[%s1 + $0xec] sm:$0xf]
  %v139 = vld [vmem:[%s1 + $0xf0] sm:$0xf]
  %v140 = vld [vmem:[%s1 + $0xf4] sm:$0xf]
  %v141 = vld [vmem:[%s1 + $0xf8] sm:$0xf]
  %v142 = vld [vmem:[%s1 + $0xfc] sm:$0xf]
  %v143 = vld [vmem:[%s1 + $0x100] sm:$0xf]
  %v144 = vld [vmem:[%s1 + $0x104] sm:$0xf]
  %v145 = vld [vmem:[%s1 + $0x108] sm:$0xf]
  %v146 = vld [vmem:[%s1 + $0x10c] sm:$0xf]
  %v147 = vld [vmem:[%s1 + $0x110] sm:$0xf]
  %v148 = vld [vmem:[%s1 + $0x114] sm:$0xf]
  %v149 = vld [vmem:[%s1 + $0x118] sm:$0xf]
  %v150 = vld [vmem:[%s1 + $0x11c] sm:$0xf]
  %v151 = vld [vmem:[%s1 + $0x120] sm:$0xf]
  %v152 = vld [vmem:[%s1 + $0x124] sm:$0xf]
  %v153 = vld [vmem:[%s1 + $0x128] sm:$0xf]
  %v154 = vld [vmem:[%s1 + $0x12c] sm:$0xf]
  %v155 = vld [vmem:[%s1 + $0x130] sm:$0xf]
  %v156 = vld [vmem:[%s1 + $0x134] sm:$0xf]
  %v157 = vld [vmem:[%s1 + $0x138] sm:$0xf]
  %v158 = vld [vmem:[%s1 + $0x13c] sm:$0xf]
  %v159 = vld [vmem:[%s1 + $0x140] sm:$0xf]
  %v160 = vld [vmem:[%s1 + $0x144] sm:$0xf]
  %v161 = vld [vmem:[%s1 + $0x148] sm:$0xf]
  %v162 = vld [vmem:[%s1 + $0x14c] sm:$0xf]
  %v163 = vld [vmem:[%s1 + $0x150] sm:$0xf]
  %v164 = vld [vmem:[%s1 + $0x154] sm:$0xf]
  %v165 = vld [vmem:[%s1 + $0x158] sm:$0xf]
  %v166 = vld [vmem:[%s1 + $0x15c] sm:$0xf]
  %v167 = vld [vmem:[%s1 + $0x160] sm:$0xf]
  %v168 = vld [vmem:[%s1 + $0x164] sm:$0xf]
  %v169 = vld [vmem:[%s1 + $0x168] sm:$0xf]
  %v170 = vld [vmem:[%s1 + $0x16c] sm:$0xf]
  %v171 = vld [vmem:[%s1 + $0x170] sm:$0xf]
  %v172 = vld [vmem:[%s1 + $0x174] sm:$0xf]
  %v173 = vld [vmem:[%s1 + $0x178] sm:$0xf]
  %v174 = vld [vmem:[%s1 + $0x17c] sm:$0xf]
  %v175 = vld [vmem:[%s1 + $0x180] sm:$0xf]
  %v176 = vld [vmem:[%s1 + $0x184] sm:$0xf]
  %v177 = vld [vmem:[%s1 + $0x188] sm:$0xf]
  %v178 = vld [vmem:[%s1 + $0x18c] sm:$0xf]
  %v243 = vunpack.c.l.b16 %v15
  %v244 = vunpack.c.h.b16 %v15
  %v245 = vunpack.c.l.b16 %v16
  %v246 = vunpack.c.h.b16 %v16
  %v247 = vunpack.c.l.b16 %v17
  %v248 = vunpack.c.h.b16 %v17
  %v249 = vunpack.c.l.b16 %v18
  %v250 = vunpack.c.l.b16 %v19
  %v251 = vunpack.c.h.b16 %v19
  %v252 = vunpack.c.l.b16 %v20
  %v253 = vunpack.c.h.b16 %v20
  %v254 = vunpack.c.l.b16 %v21
  %v255 = vunpack.c.h.b16 %v21
  %v256 = vunpack.c.l.b16 %v22
  %v257 = vunpack.c.l.b16 %v23
  %v258 = vunpack.c.h.b16 %v23
  %v259 = vunpack.c.l.b16 %v24
  %v260 = vunpack.c.h.b16 %v24
  %v261 = vunpack.c.l.b16 %v25
  %v262 = vunpack.c.h.b16 %v25
  %v263 = vunpack.c.l.b16 %v26
  %v264 = vunpack.c.l.b16 %v27
  %v265 = vunpack.c.h.b16 %v27
  %v266 = vunpack.c.l.b16 %v28
  %v267 = vunpack.c.h.b16 %v28
  %v268 = vunpack.c.l.b16 %v29
  %v269 = vunpack.c.h.b16 %v29
  %v270 = vunpack.c.l.b16 %v30
  %v271 = vunpack.c.l.b16 %v31
  %v272 = vunpack.c.h.b16 %v31
  %v273 = vunpack.c.l.b16 %v32
  %v274 = vunpack.c.h.b16 %v32
  %v275 = vunpack.c.l.b16 %v33
  %v276 = vunpack.c.h.b16 %v33
  %v277 = vunpack.c.l.b16 %v34
  %v278 = vunpack.c.l.b16 %v35
  %v279 = vunpack.c.h.b16 %v35
  %v280 = vunpack.c.l.b16 %v36
  %v281 = vunpack.c.h.b16 %v36
  %v282 = vunpack.c.l.b16 %v37
  %v283 = vunpack.c.h.b16 %v37
  %v284 = vunpack.c.l.b16 %v38
  %v285 = vunpack.c.l.b16 %v39
  %v286 = vunpack.c.h.b16 %v39
  %v287 = vunpack.c.l.b16 %v40
  %v288 = vunpack.c.h.b16 %v40
  %v289 = vunpack.c.l.b16 %v41
  %v290 = vunpack.c.h.b16 %v41
  %v291 = vunpack.c.l.b16 %v42
  %v292 = vunpack.c.l.b16 %v43
  %v293 = vunpack.c.h.b16 %v43
  %v294 = vunpack.c.l.b16 %v44
  %v295 = vunpack.c.h.b16 %v44
  %v296 = vunpack.c.l.b16 %v45
  %v297 = vunpack.c.h.b16 %v45
  %v298 = vunpack.c.l.b16 %v46
  %v299 = vunpack.c.l.b16 %v47
  %v300 = vunpack.c.h.b16 %v47
  %v301 = vunpack.c.l.b16 %v48
  %v302 = vunpack.c.h.b16 %v48
  %v303 = vunpack.c.l.b16 %v49
  %v304 = vunpack.c.h.b16 %v49
  %v305 = vunpack.c.l.b16 %v50
  %v306 = vunpack.c.l.b16 %v51
  %v307 = vunpack.c.h.b16 %v51
  %v308 = vunpack.c.l.b16 %v52
  %v309 = vunpack.c.h.b16 %v52
  %v310 = vunpack.c.l.b16 %v53
  %v311 = vunpack.c.h.b16 %v53
  %v312 = vunpack.c.l.b16 %v54
  %v313 = vunpack.c.l.b16 %v55
  %v314 = vunpack.c.h.b16 %v55
  %v315 = vunpack.c.l.b16 %v56
  %v316 = vunpack.c.h.b16 %v56
  %v317 = vunpack.c.l.b16 %v57
  %v318 = vunpack.c.h.b16 %v57
  %v319 = vunpack.c.l.b16 %v58
  %v320 = vunpack.c.l.b16 %v59
  %v321 = vunpack.c.h.b16 %v59
  %v322 = vunpack.c.l.b16 %v60
  %v323 = vunpack.c.h.b16 %v60
  %v324 = vunpack.c.l.b16 %v61
  %v325 = vunpack.c.h.b16 %v61
  %v326 = vunpack.c.l.b16 %v62
  %v327 = vunpack.c.l.b16 %v63
  %v328 = vunpack.c.h.b16 %v63
  %v329 = vunpack.c.l.b16 %v64
  %v330 = vunpack.c.h.b16 %v64
  %v331 = vunpack.c.l.b16 %v65
  %v332 = vunpack.c.h.b16 %v65
  %v333 = vunpack.c.l.b16 %v66
  %v334 = vunpack.c.l.b16 %v67
  %v335 = vunpack.c.h.b16 %v67
  %v336 = vunpack.c.l.b16 %v68
  %v337 = vunpack.c.h.b16 %v68
  %v338 = vunpack.c.l.b16 %v69
  %v339 = vunpack.c.h.b16 %v69
  %v340 = vunpack.c.l.b16 %v70
  %v341 = vunpack.c.l.b16 %v71
  %v342 = vunpack.c.h.b16 %v71
  %v343 = vunpack.c.l.b16 %v72
  %v344 = vunpack.c.h.b16 %v72
  %v345 = vunpack.c.l.b16 %v73
  %v346 = vunpack.c.h.b16 %v73
  %v347 = vunpack.c.l.b16 %v74
  %v348 = vunpack.c.l.b16 %v75
  %v349 = vunpack.c.h.b16 %v75
  %v350 = vunpack.c.l.b16 %v76
  %v351 = vunpack.c.h.b16 %v76
  %v352 = vunpack.c.l.b16 %v77
  %v353 = vunpack.c.h.b16 %v77
  %v354 = vunpack.c.l.b16 %v78
  %v355 = vpack.c.b16 %v250, %v243
  %v356 = vpack.c.b16 %v251, %v244
  %v357 = vpack.c.b16 %v252, %v245
  %v358 = vpack.c.b16 %v253, %v246
  %v359 = vpack.c.b16 %v254, %v247
  %v360 = vpack.c.b16 %v255, %v248
  %v361 = vpack.c.b16 %v256, %v249
  %v362 = vpack.c.b16 %v264, %v257
  %v363 = vpack.c.b16 %v265, %v258
  %v364 = vpack.c.b16 %v266, %v259
  %v365 = vpack.c.b16 %v267, %v260
  %v366 = vpack.c.b16 %v268, %v261
  %v367 = vpack.c.b16 %v269, %v262
  %v368 = vpack.c.b16 %v270, %v263
  %v369 = vpack.c.b16 %v278, %v271
  %v370 = vpack.c.b16 %v279, %v272
  %v371 = vpack.c.b16 %v280, %v273
  %v372 = vpack.c.b16 %v281, %v274
  %v373 = vpack.c.b16 %v282, %v275
  %v374 = vpack.c.b16 %v283, %v276
  %v375 = vpack.c.b16 %v284, %v277
  %v376 = vpack.c.b16 %v292, %v285
  %v377 = vpack.c.b16 %v293, %v286
  %v378 = vpack.c.b16 %v294, %v287
  %v379 = vpack.c.b16 %v295, %v288
  %v380 = vpack.c.b16 %v296, %v289
  %v381 = vpack.c.b16 %v297, %v290
  %v382 = vpack.c.b16 %v298, %v291
  %v383 = vpack.c.b16 %v306, %v299
  %v384 = vpack.c.b16 %v307, %v300
  %v385 = vpack.c.b16 %v308, %v301
  %v386 = vpack.c.b16 %v309, %v302
  %v387 = vpack.c.b16 %v310, %v303
  %v388 = vpack.c.b16 %v311, %v304
  %v389 = vpack.c.b16 %v312, %v305
  %v390 = vpack.c.b16 %v320, %v313
  %v391 = vpack.c.b16 %v321, %v314
  %v392 = vpack.c.b16 %v322, %v315
  %v393 = vpack.c.b16 %v323, %v316
  %v394 = vpack.c.b16 %v324, %v317
  %v395 = vpack.c.b16 %v325, %v318
  %v396 = vpack.c.b16 %v326, %v319
  %v397 = vpack.c.b16 %v334, %v327
  %v398 = vpack.c.b16 %v335, %v328
  %v399 = vpack.c.b16 %v336, %v329
  %v400 = vpack.c.b16 %v337, %v330
  %v401 = vpack.c.b16 %v338, %v331
  %v402 = vpack.c.b16 %v339, %v332
  %v403 = vpack.c.b16 %v340, %v333
  %v404 = vpack.c.b16 %v348, %v341
  %v405 = vpack.c.b16 %v349, %v342
  %v406 = vpack.c.b16 %v350, %v343
  %v407 = vpack.c.b16 %v351, %v344
  %v408 = vpack.c.b16 %v352, %v345
  %v409 = vpack.c.b16 %v353, %v346
  %v410 = vpack.c.b16 %v354, %v347
  %v559 = vunpack.c.l.b16 %v79
  %v560 = vunpack.c.l.b16 %v80
  %v561 = vunpack.c.l.b16 %v81
  %v562 = vunpack.c.l.b16 %v82
  %v563 = vunpack.c.l.b16 %v83
  %v564 = vunpack.c.l.b16 %v84
  %v565 = vunpack.c.l.b16 %v85
  %v566 = vunpack.c.l.b16 %v86
  %v567 = vunpack.c.l.b16 %v87
  %v568 = vunpack.c.l.b16 %v88
  %v569 = vunpack.c.l.b16 %v89
  %v570 = vunpack.c.l.b16 %v90
  %v571 = vunpack.c.l.b16 %v91
  %v572 = vunpack.c.l.b16 %v92
  %v573 = vunpack.c.l.b16 %v93
  %v574 = vunpack.c.l.b16 %v94
  %v575 = vunpack.c.l.b16 %v95
  %v576 = vunpack.c.l.b16 %v96
  %v577 = vunpack.c.l.b16 %v97
  %v578 = vunpack.c.l.b16 %v98
  %v579 = vunpack.c.l.b16 %v99
  %v580 = vunpack.c.l.b16 %v100
  %v581 = vunpack.c.l.b16 %v101
  %v582 = vunpack.c.l.b16 %v102
  %v583 = vunpack.c.l.b16 %v103
  %v584 = vunpack.c.l.b16 %v104
  %v585 = vunpack.c.l.b16 %v105
  %v586 = vunpack.c.l.b16 %v106
  %v587 = vunpack.c.l.b16 %v107
  %v588 = vunpack.c.l.b16 %v108
  %v589 = vunpack.c.l.b16 %v109
  %v590 = vunpack.c.l.b16 %v110
  %v591 = vunpack.c.l.b16 %v111
  %v592 = vunpack.c.l.b16 %v112
  %v593 = vunpack.c.l.b16 %v113
  %v594 = vunpack.c.l.b16 %v114
  %v595 = vunpack.c.l.b16 %v115
  %v596 = vunpack.c.l.b16 %v116
  %v597 = vunpack.c.l.b16 %v117
  %v598 = vunpack.c.l.b16 %v118
  %v599 = vunpack.c.l.b16 %v119
  %v600 = vunpack.c.l.b16 %v120
  %v601 = vunpack.c.l.b16 %v121
  %v602 = vunpack.c.l.b16 %v122
  %v603 = vunpack.c.l.b16 %v123
  %v604 = vunpack.c.l.b16 %v124
  %v605 = vunpack.c.l.b16 %v125
  %v606 = vunpack.c.l.b16 %v126
  %v607 = vunpack.c.l.b16 %v127
  %v608 = vunpack.c.l.b16 %v128
  %v609 = vunpack.c.l.b16 %v129
  %v610 = vunpack.c.l.b16 %v130
  %v611 = vunpack.c.l.b16 %v131
  %v612 = vunpack.c.l.b16 %v132
  %v613 = vunpack.c.l.b16 %v133
  %v614 = vunpack.c.l.b16 %v134
  %v615 = vunpack.c.l.b16 %v135
  %v616 = vunpack.c.l.b16 %v136
  %v617 = vunpack.c.l.b16 %v137
  %v618 = vunpack.c.l.b16 %v138
  %v619 = vunpack.c.l.b16 %v139
  %v620 = vunpack.c.l.b16 %v140
  %v621 = vunpack.c.l.b16 %v141
  %v622 = vunpack.c.l.b16 %v142
  %v623 = vunpack.c.l.b16 %v143
  %v624 = vunpack.c.l.b16 %v144
  %v625 = vunpack.c.l.b16 %v145
  %v626 = vunpack.c.l.b16 %v146
  %v627 = vunpack.c.l.b16 %v147
  %v628 = vunpack.c.l.b16 %v148
  %v629 = vunpack.c.l.b16 %v149
  %v630 = vunpack.c.l.b16 %v150
  %v631 = vunpack.c.l.b16 %v151
  %v632 = vunpack.c.l.b16 %v152
  %v633 = vunpack.c.l.b16 %v153
  %v634 = vunpack.c.l.b16 %v154
  %v635 = vunpack.c.l.b16 %v155
  %v636 = vunpack.c.l.b16 %v156
  %v637 = vunpack.c.l.b16 %v157
  %v638 = vunpack.c.l.b16 %v158
  %v639 = vunpack.c.l.b16 %v159
  %v640 = vunpack.c.l.b16 %v160
  %v641 = vunpack.c.l.b16 %v161
  %v642 = vunpack.c.l.b16 %v162
  %v643 = vunpack.c.l.b16 %v163
  %v644 = vunpack.c.l.b16 %v164
  %v645 = vunpack.c.l.b16 %v165
  %v646 = vunpack.c.l.b16 %v166
  %v647 = vunpack.c.l.b16 %v167
  %v648 = vunpack.c.l.b16 %v168
  %v649 = vunpack.c.l.b16 %v169
  %v650 = vunpack.c.l.b16 %v170
  %v651 = vunpack.c.l.b16 %v171
  %v652 = vunpack.c.l.b16 %v172
  %v653 = vunpack.c.l.b16 %v173
  %v654 = vunpack.c.l.b16 %v174
  %v655 = vunpack.c.l.b16 %v175
  %v656 = vunpack.c.l.b16 %v176
  %v657 = vunpack.c.l.b16 %v177
  %v658 = vunpack.c.l.b16 %v178
  %v659 = vpack.c.b16 %v560, %v559
  %v660 = vpack.c.b16 %v562, %v561
  %v661 = vpack.c.b16 %v564, %v563
  %v662 = vpack.c.b16 %v566, %v565
  %v663 = vpack.c.b16 %v568, %v567
  %v664 = vpack.c.b16 %v570, %v569
  %v665 = vpack.c.b16 %v572, %v571
  %v666 = vpack.c.b16 %v574, %v573
  %v667 = vpack.c.b16 %v576, %v575
  %v668 = vpack.c.b16 %v578, %v577
  %v669 = vpack.c.b16 %v580, %v579
  %v670 = vpack.c.b16 %v582, %v581
  %v671 = vpack.c.b16 %v584, %v583
  %v672 = vpack.c.b16 %v586, %v585
  %v673 = vpack.c.b16 %v588, %v587
  %v674 = vpack.c.b16 %v590, %v589
  %v675 = vpack.c.b16 %v592, %v591
  %v676 = vpack.c.b16 %v594, %v593
  %v677 = vpack.c.b16 %v596, %v595
  %v678 = vpack.c.b16 %v598, %v597
  %v679 = vpack.c.b16 %v600, %v599
  %v680 = vpack.c.b16 %v602, %v601
  %v681 = vpack.c.b16 %v604, %v603
  %v682 = vpack.c.b16 %v606, %v605
  %v683 = vpack.c.b16 %v608, %v607
  %v684 = vpack.c.b16 %v610, %v609
  %v685 = vpack.c.b16 %v612, %v611
  %v686 = vpack.c.b16 %v614, %v613
  %v687 = vpack.c.b16 %v616, %v615
  %v688 = vpack.c.b16 %v618, %v617
  %v689 = vpack.c.b16 %v620, %v619
  %v690 = vpack.c.b16 %v622, %v621
  %v691 = vpack.c.b16 %v624, %v623
  %v692 = vpack.c.b16 %v626, %v625
  %v693 = vpack.c.b16 %v628, %v627
  %v694 = vpack.c.b16 %v630, %v629
  %v695 = vpack.c.b16 %v632, %v631
  %v696 = vpack.c.b16 %v634, %v633
  %v697 = vpack.c.b16 %v636, %v635
  %v698 = vpack.c.b16 %v638, %v637
  %v699 = vpack.c.b16 %v640, %v639
  %v700 = vpack.c.b16 %v642, %v641
  %v701 = vpack.c.b16 %v644, %v643
  %v702 = vpack.c.b16 %v646, %v645
  %v703 = vpack.c.b16 %v648, %v647
  %v704 = vpack.c.b16 %v650, %v649
  %v705 = vpack.c.b16 %v652, %v651
  %v706 = vpack.c.b16 %v654, %v653
  %v707 = vpack.c.b16 %v656, %v655
  %v708 = vpack.c.b16 %v658, %v657
  %vm759 = vcmask 261120
  %v761 = vsel %vm759, %v361, 0
  %v764 = vsel %vm759, %v368, 0
  %v767 = vsel %vm759, %v375, 0
  %v770 = vsel %vm759, %v382, 0
  %v773 = vsel %vm759, %v389, 0
  %v776 = vsel %vm759, %v396, 0
  %v779 = vsel %vm759, %v403, 0
  %v782 = vsel %vm759, %v410, 0
  %784 = vmatprep.subr.bf16.mxu0 0
  %785 = vmatpush1.bf16.msra.mxu0 %v666
  %786 = vmatprep.subr.bf16.mxu0 0
  %787 = vmatpush1.bf16.msra.mxu0 %v665
  %788 = vmatprep.subr.bf16.mxu0 0
  %789 = vmatpush1.bf16.msra.mxu0 %v664
  %790 = vmatprep.subr.bf16.mxu0 0
  %791 = vmatpush1.bf16.msra.mxu0 %v663
  %792 = vmatprep.subr.bf16.mxu0 0
  %793 = vmatpush1.bf16.msra.mxu0 %v662
  %794 = vmatprep.subr.bf16.mxu0 0
  %795 = vmatpush1.bf16.msra.mxu0 %v661
  %796 = vmatprep.subr.bf16.mxu0 0
  %797 = vmatpush1.bf16.msra.mxu0 %v660
  %798 = vmatprep.subr.bf16.mxu0 0
  %799 = vmatpush1.bf16.msra.mxu0 %v659
  %800 = vmatprep.subr.bf16.mxu0 0
  %801 = vmatpush2.bf16.msra.mxu0 %v674
  %802 = vmatprep.subr.bf16.mxu0 0
  %803 = vmatpush2.bf16.msra.mxu0 %v673
  %804 = vmatprep.subr.bf16.mxu0 0
  %805 = vmatpush2.bf16.msra.mxu0 %v672
  %806 = vmatprep.subr.bf16.mxu0 0
  %807 = vmatpush2.bf16.msra.mxu0 %v671
  %808 = vmatprep.subr.bf16.mxu0 0
  %809 = vmatpush2.bf16.msra.mxu0 %v670
  %810 = vmatprep.subr.bf16.mxu0 0
  %811 = vmatpush2.bf16.msra.mxu0 %v669
  %812 = vmatprep.subr.bf16.mxu0 0
  %813 = vmatpush2.bf16.msra.mxu0 %v668
  %814 = vmatprep.subr.bf16.mxu0 0
  %815 = vmatpush2.bf16.msra.mxu0 %v667
  %816 = vmatprep.mubr.bf16.mxu0 %v356
  %817 = vmatmul.mubr.bf16.gmra.mxu0 %v355
  %v818 = vpop.f32.mrf.mxu0
  %v819 = vadd.f32 0.0, %v818
  %v820 = vpop.f32.mrf.mxu0
  %v821 = vpop.f32.mrf.mxu0
  %v822 = vadd.f32 0.0, %v821
  %v823 = vpop.f32.mrf.mxu0
  %824 = vmatprep.mubr.bf16.mxu0 %v363
  %825 = vmatmul.mubr.bf16.gmra.mxu0 %v362
  %v826 = vpop.f32.mrf.mxu0
  %v827 = vadd.f32 0.0, %v826
  %v828 = vpop.f32.mrf.mxu0
  %v829 = vpop.f32.mrf.mxu0
  %v830 = vadd.f32 0.0, %v829
  %v831 = vpop.f32.mrf.mxu0
  %832 = vmatprep.mubr.bf16.mxu0 %v370
  %833 = vmatmul.mubr.bf16.gmra.mxu0 %v369
  %v834 = vpop.f32.mrf.mxu0
  %v835 = vadd.f32 0.0, %v834
  %v836 = vpop.f32.mrf.mxu0
  %v837 = vpop.f32.mrf.mxu0
  %v838 = vadd.f32 0.0, %v837
  %v839 = vpop.f32.mrf.mxu0
  %840 = vmatprep.mubr.bf16.mxu0 %v377
  %841 = vmatmul.mubr.bf16.gmra.mxu0 %v376
  %v842 = vpop.f32.mrf.mxu0
  %v843 = vadd.f32 0.0, %v842
  %v844 = vpop.f32.mrf.mxu0
  %v845 = vpop.f32.mrf.mxu0
  %v846 = vadd.f32 0.0, %v845
  %v847 = vpop.f32.mrf.mxu0
  %848 = vmatprep.mubr.bf16.mxu0 %v384
  %849 = vmatmul.mubr.bf16.gmra.mxu0 %v383
  %v850 = vpop.f32.mrf.mxu0
  %v851 = vadd.f32 0.0, %v850
  %v852 = vpop.f32.mrf.mxu0
  %v853 = vpop.f32.mrf.mxu0
  %v854 = vadd.f32 0.0, %v853
  %v855 = vpop.f32.mrf.mxu0
  %856 = vmatprep.mubr.bf16.mxu0 %v391
  %857 = vmatmul.mubr.bf16.gmra.mxu0 %v390
  %v858 = vpop.f32.mrf.mxu0
  %v859 = vadd.f32 0.0, %v858
  %v860 = vpop.f32.mrf.mxu0
  %v861 = vpop.f32.mrf.mxu0
  %v862 = vadd.f32 0.0, %v861
  %v863 = vpop.f32.mrf.mxu0
  %864 = vmatprep.mubr.bf16.mxu0 %v398
  %865 = vmatmul.mubr.bf16.gmra.mxu0 %v397
  %v866 = vpop.f32.mrf.mxu0
  %v867 = vadd.f32 0.0, %v866
  %v868 = vpop.f32.mrf.mxu0
  %v869 = vpop.f32.mrf.mxu0
  %v870 = vadd.f32 0.0, %v869
  %v871 = vpop.f32.mrf.mxu0
  %872 = vmatprep.mubr.bf16.mxu0 %v405
  %873 = vmatmul.mubr.bf16.gmra.mxu0 %v404
  %v874 = vpop.f32.mrf.mxu0
  %v875 = vadd.f32 0.0, %v874
  %v876 = vpop.f32.mrf.mxu0
  %v877 = vpop.f32.mrf.mxu0
  %v878 = vadd.f32 0.0, %v877
  %v879 = vpop.f32.mrf.mxu0
  %880 = vdwg.mxu0
  %881 = vmatprep.subr.bf16.mxu0 0
  %882 = vmatpush1.bf16.msra.mxu0 %v682
  %883 = vmatprep.subr.bf16.mxu0 0
  %884 = vmatpush1.bf16.msra.mxu0 %v681
  %885 = vmatprep.subr.bf16.mxu0 0
  %886 = vmatpush1.bf16.msra.mxu0 %v680
  %887 = vmatprep.subr.bf16.mxu0 0
  %888 = vmatpush1.bf16.msra.mxu0 %v679
  %889 = vmatprep.subr.bf16.mxu0 0
  %890 = vmatpush1.bf16.msra.mxu0 %v678
  %891 = vmatprep.subr.bf16.mxu0 0
  %892 = vmatpush1.bf16.msra.mxu0 %v677
  %893 = vmatprep.subr.bf16.mxu0 0
  %894 = vmatpush1.bf16.msra.mxu0 %v676
  %895 = vmatprep.subr.bf16.mxu0 0
  %896 = vmatpush1.bf16.msra.mxu0 %v675
  %897 = vmatprep.subr.bf16.mxu0 0
  %898 = vmatpush2.bf16.msra.mxu0 %v690
  %899 = vmatprep.subr.bf16.mxu0 0
  %900 = vmatpush2.bf16.msra.mxu0 %v689
  %901 = vmatprep.subr.bf16.mxu0 0
  %902 = vmatpush2.bf16.msra.mxu0 %v688
  %903 = vmatprep.subr.bf16.mxu0 0
  %904 = vmatpush2.bf16.msra.mxu0 %v687
  %905 = vmatprep.subr.bf16.mxu0 0
  %906 = vmatpush2.bf16.msra.mxu0 %v686
  %907 = vmatprep.subr.bf16.mxu0 0
  %908 = vmatpush2.bf16.msra.mxu0 %v685
  %909 = vmatprep.subr.bf16.mxu0 0
  %910 = vmatpush2.bf16.msra.mxu0 %v684
  %911 = vmatprep.subr.bf16.mxu0 0
  %912 = vmatpush2.bf16.msra.mxu0 %v683
  %913 = vmatprep.mubr.bf16.mxu0 %v358
  %914 = vmatmul.mubr.bf16.gmra.mxu0 %v357
  %v915 = vpop.f32.mrf.mxu0
  %v916 = vadd.f32 %v819, %v915
  %v917 = vpop.f32.mrf.mxu0
  %v918 = vpop.f32.mrf.mxu0
  %v919 = vadd.f32 %v822, %v918
  %v920 = vpop.f32.mrf.mxu0
  %921 = vmatprep.mubr.bf16.mxu0 %v365
  %922 = vmatmul.mubr.bf16.gmra.mxu0 %v364
  %v923 = vpop.f32.mrf.mxu0
  %v924 = vadd.f32 %v827, %v923
  %v925 = vpop.f32.mrf.mxu0
  %v926 = vpop.f32.mrf.mxu0
  %v927 = vadd.f32 %v830, %v926
  %v928 = vpop.f32.mrf.mxu0
  %929 = vmatprep.mubr.bf16.mxu0 %v372
  %930 = vmatmul.mubr.bf16.gmra.mxu0 %v371
  %v931 = vpop.f32.mrf.mxu0
  %v932 = vadd.f32 %v835, %v931
  %v933 = vpop.f32.mrf.mxu0
  %v934 = vpop.f32.mrf.mxu0
  %v935 = vadd.f32 %v838, %v934
  %v936 = vpop.f32.mrf.mxu0
  %937 = vmatprep.mubr.bf16.mxu0 %v379
  %938 = vmatmul.mubr.bf16.gmra.mxu0 %v378
  %v939 = vpop.f32.mrf.mxu0
  %v940 = vadd.f32 %v843, %v939
  %v941 = vpop.f32.mrf.mxu0
  %v942 = vpop.f32.mrf.mxu0
  %v943 = vadd.f32 %v846, %v942
  %v944 = vpop.f32.mrf.mxu0
  %945 = vmatprep.mubr.bf16.mxu0 %v386
  %946 = vmatmul.mubr.bf16.gmra.mxu0 %v385
  %v947 = vpop.f32.mrf.mxu0
  %v948 = vadd.f32 %v851, %v947
  %v949 = vpop.f32.mrf.mxu0
  %v950 = vpop.f32.mrf.mxu0
  %v951 = vadd.f32 %v854, %v950
  %v952 = vpop.f32.mrf.mxu0
  %953 = vmatprep.mubr.bf16.mxu0 %v393
  %954 = vmatmul.mubr.bf16.gmra.mxu0 %v392
  %v955 = vpop.f32.mrf.mxu0
  %v956 = vadd.f32 %v859, %v955
  %v957 = vpop.f32.mrf.mxu0
  %v958 = vpop.f32.mrf.mxu0
  %v959 = vadd.f32 %v862, %v958
  %v960 = vpop.f32.mrf.mxu0
  %961 = vmatprep.mubr.bf16.mxu0 %v400
  %962 = vmatmul.mubr.bf16.gmra.mxu0 %v399
  %v963 = vpop.f32.mrf.mxu0
  %v964 = vadd.f32 %v867, %v963
  %v965 = vpop.f32.mrf.mxu0
  %v966 = vpop.f32.mrf.mxu0
  %v967 = vadd.f32 %v870, %v966
  %v968 = vpop.f32.mrf.mxu0
  %969 = vmatprep.mubr.bf16.mxu0 %v407
  %970 = vmatmul.mubr.bf16.gmra.mxu0 %v406
  %v971 = vpop.f32.mrf.mxu0
  %v972 = vadd.f32 %v875, %v971
  %v973 = vpop.f32.mrf.mxu0
  %v974 = vpop.f32.mrf.mxu0
  %v975 = vadd.f32 %v878, %v974
  %v976 = vpop.f32.mrf.mxu0
  %977 = vdwg.mxu0
  %978 = vmatprep.subr.bf16.mxu0 0
  %979 = vmatpush1.bf16.msra.mxu0 %v698
  %980 = vmatprep.subr.bf16.mxu0 0
  %981 = vmatpush1.bf16.msra.mxu0 %v697
  %982 = vmatprep.subr.bf16.mxu0 0
  %983 = vmatpush1.bf16.msra.mxu0 %v696
  %984 = vmatprep.subr.bf16.mxu0 0
  %985 = vmatpush1.bf16.msra.mxu0 %v695
  %986 = vmatprep.subr.bf16.mxu0 0
  %987 = vmatpush1.bf16.msra.mxu0 %v694
  %988 = vmatprep.subr.bf16.mxu0 0
  %989 = vmatpush1.bf16.msra.mxu0 %v693
  %990 = vmatprep.subr.bf16.mxu0 0
  %991 = vmatpush1.bf16.msra.mxu0 %v692
  %992 = vmatprep.subr.bf16.mxu0 0
  %993 = vmatpush1.bf16.msra.mxu0 %v691
  %994 = vmatprep.subr.bf16.mxu0 0
  %995 = vmatpush2.bf16.msra.mxu0 %v706
  %996 = vmatprep.subr.bf16.mxu0 0
  %997 = vmatpush2.bf16.msra.mxu0 %v705
  %998 = vmatprep.subr.bf16.mxu0 0
  %999 = vmatpush2.bf16.msra.mxu0 %v704
  %1000 = vmatprep.subr.bf16.mxu0 0
  %1001 = vmatpush2.bf16.msra.mxu0 %v703
  %1002 = vmatprep.subr.bf16.mxu0 0
  %1003 = vmatpush2.bf16.msra.mxu0 %v702
  %1004 = vmatprep.subr.bf16.mxu0 0
  %1005 = vmatpush2.bf16.msra.mxu0 %v701
  %1006 = vmatprep.subr.bf16.mxu0 0
  %1007 = vmatpush2.bf16.msra.mxu0 %v700
  %1008 = vmatprep.subr.bf16.mxu0 0
  %1009 = vmatpush2.bf16.msra.mxu0 %v699
  %1010 = vmatprep.mubr.bf16.mxu0 %v360
  %1011 = vmatmul.mubr.bf16.gmra.mxu0 %v359
  %v1012 = vpop.f32.mrf.mxu0
  %v1013 = vadd.f32 %v916, %v1012
  %v1014 = vpop.f32.mrf.mxu0
  %v1015 = vpop.f32.mrf.mxu0
  %v1016 = vadd.f32 %v919, %v1015
  %v1017 = vpop.f32.mrf.mxu0
  %1018 = vmatprep.mubr.bf16.mxu0 %v367
  %1019 = vmatmul.mubr.bf16.gmra.mxu0 %v366
  %v1020 = vpop.f32.mrf.mxu0
  %v1021 = vadd.f32 %v924, %v1020
  %v1022 = vpop.f32.mrf.mxu0
  %v1023 = vpop.f32.mrf.mxu0
  %v1024 = vadd.f32 %v927, %v1023
  %v1025 = vpop.f32.mrf.mxu0
  %1026 = vmatprep.mubr.bf16.mxu0 %v374
  %1027 = vmatmul.mubr.bf16.gmra.mxu0 %v373
  %v1028 = vpop.f32.mrf.mxu0
  %v1029 = vadd.f32 %v932, %v1028
  %v1030 = vpop.f32.mrf.mxu0
  %v1031 = vpop.f32.mrf.mxu0
  %v1032 = vadd.f32 %v935, %v1031
  %v1033 = vpop.f32.mrf.mxu0
  %1034 = vmatprep.mubr.bf16.mxu0 %v381
  %1035 = vmatmul.mubr.bf16.gmra.mxu0 %v380
  %v1036 = vpop.f32.mrf.mxu0
  %v1037 = vadd.f32 %v940, %v1036
  %v1038 = vpop.f32.mrf.mxu0
  %v1039 = vpop.f32.mrf.mxu0
  %v1040 = vadd.f32 %v943, %v1039
  %v1041 = vpop.f32.mrf.mxu0
  %1042 = vmatprep.mubr.bf16.mxu0 %v388
  %1043 = vmatmul.mubr.bf16.gmra.mxu0 %v387
  %v1044 = vpop.f32.mrf.mxu0
  %v1045 = vadd.f32 %v948, %v1044
  %v1046 = vpop.f32.mrf.mxu0
  %v1047 = vpop.f32.mrf.mxu0
  %v1048 = vadd.f32 %v951, %v1047
  %v1049 = vpop.f32.mrf.mxu0
  %1050 = vmatprep.mubr.bf16.mxu0 %v395
  %1051 = vmatmul.mubr.bf16.gmra.mxu0 %v394
  %v1052 = vpop.f32.mrf.mxu0
  %v1053 = vadd.f32 %v956, %v1052
  %v1054 = vpop.f32.mrf.mxu0
  %v1055 = vpop.f32.mrf.mxu0
  %v1056 = vadd.f32 %v959, %v1055
  %v1057 = vpop.f32.mrf.mxu0
  %1058 = vmatprep.mubr.bf16.mxu0 %v402
  %1059 = vmatmul.mubr.bf16.gmra.mxu0 %v401
  %v1060 = vpop.f32.mrf.mxu0
  %v1061 = vadd.f32 %v964, %v1060
  %v1062 = vpop.f32.mrf.mxu0
  %v1063 = vpop.f32.mrf.mxu0
  %v1064 = vadd.f32 %v967, %v1063
  %v1065 = vpop.f32.mrf.mxu0
  %1066 = vmatprep.mubr.bf16.mxu0 %v409
  %1067 = vmatmul.mubr.bf16.gmra.mxu0 %v408
  %v1068 = vpop.f32.mrf.mxu0
  %v1069 = vadd.f32 %v972, %v1068
  %v1070 = vpop.f32.mrf.mxu0
  %v1071 = vpop.f32.mrf.mxu0
  %v1072 = vadd.f32 %v975, %v1071
  %v1073 = vpop.f32.mrf.mxu0
  %1074 = vdwg.mxu0
  %1075 = vmatprep.subr.bf16.mxu0 0
  %1076 = vmatpush1.bf16.msra.mxu0 0
  %1077 = vmatprep.subr.bf16.mxu0 0
  %1078 = vmatpush1.bf16.msra.mxu0 0
  %1079 = vmatprep.subr.bf16.mxu0 0
  %1080 = vmatpush1.bf16.msra.mxu0 0
  %1081 = vmatprep.subr.bf16.mxu0 0
  %1082 = vmatpush1.bf16.msra.mxu0 0
  %1083 = vmatprep.subr.bf16.mxu0 0
  %1084 = vmatpush1.bf16.msra.mxu0 0
  %1085 = vmatprep.subr.bf16.mxu0 0
  %1086 = vmatpush1.bf16.msra.mxu0 0
  %1087 = vmatprep.subr.bf16.mxu0 0
  %1088 = vmatpush1.bf16.msra.mxu0 %v708
  %1089 = vmatprep.subr.bf16.mxu0 0
  %1090 = vmatpush1.bf16.msra.mxu0 %v707
  %1091 = vmatprep.subr.bf16.mxu0 0
  %1092 = vmatpush2.bf16.msra.mxu0 0
  %1093 = vmatprep.subr.bf16.mxu0 0
  %1094 = vmatpush2.bf16.msra.mxu0 0
  %1095 = vmatprep.subr.bf16.mxu0 0
  %1096 = vmatpush2.bf16.msra.mxu0 0
  %1097 = vmatprep.subr.bf16.mxu0 0
  %1098 = vmatpush2.bf16.msra.mxu0 0
  %1099 = vmatprep.subr.bf16.mxu0 0
  %1100 = vmatpush2.bf16.msra.mxu0 0
  %1101 = vmatprep.subr.bf16.mxu0 0
  %1102 = vmatpush2.bf16.msra.mxu0 0
  %1103 = vmatprep.subr.bf16.mxu0 0
  %1104 = vmatpush2.bf16.msra.mxu0 0
  %1105 = vmatprep.subr.bf16.mxu0 0
  %1106 = vmatpush2.bf16.msra.mxu0 0
  %1107 = vmatprep.mubr.bf16.mxu0 0
  %1108 = vmatmul.mubr.bf16.gmra.mxu0 %v761
  %v1109 = vpop.f32.mrf.mxu0
  %v1110 = vadd.f32 %v1013, %v1109
  %v1111 = vpop.f32.mrf.mxu0
  %v1112 = vpop.f32.mrf.mxu0
  %v1113 = vadd.f32 %v1016, %v1112
  %v1114 = vpop.f32.mrf.mxu0
  %1115 = vmatprep.mubr.bf16.mxu0 0
  %1116 = vmatmul.mubr.bf16.gmra.mxu0 %v764
  %v1117 = vpop.f32.mrf.mxu0
  %v1118 = vadd.f32 %v1021, %v1117
  %v1119 = vpop.f32.mrf.mxu0
  %v1120 = vpop.f32.mrf.mxu0
  %v1121 = vadd.f32 %v1024, %v1120
  %v1122 = vpop.f32.mrf.mxu0
  %1123 = vmatprep.mubr.bf16.mxu0 0
  %1124 = vmatmul.mubr.bf16.gmra.mxu0 %v767
  %v1125 = vpop.f32.mrf.mxu0
  %v1126 = vadd.f32 %v1029, %v1125
  %v1127 = vpop.f32.mrf.mxu0
  %v1128 = vpop.f32.mrf.mxu0
  %v1129 = vadd.f32 %v1032, %v1128
  %v1130 = vpop.f32.mrf.mxu0
  %1131 = vmatprep.mubr.bf16.mxu0 0
  %1132 = vmatmul.mubr.bf16.gmra.mxu0 %v770
  %v1133 = vpop.f32.mrf.mxu0
  %v1134 = vadd.f32 %v1037, %v1133
  %v1135 = vpop.f32.mrf.mxu0
  %v1136 = vpop.f32.mrf.mxu0
  %v1137 = vadd.f32 %v1040, %v1136
  %v1138 = vpop.f32.mrf.mxu0
  %1139 = vmatprep.mubr.bf16.mxu0 0
  %1140 = vmatmul.mubr.bf16.gmra.mxu0 %v773
  %v1141 = vpop.f32.mrf.mxu0
  %v1142 = vadd.f32 %v1045, %v1141
  %v1143 = vpop.f32.mrf.mxu0
  %v1144 = vpop.f32.mrf.mxu0
  %v1145 = vadd.f32 %v1048, %v1144
  %v1146 = vpop.f32.mrf.mxu0
  %1147 = vmatprep.mubr.bf16.mxu0 0
  %1148 = vmatmul.mubr.bf16.gmra.mxu0 %v776
  %v1149 = vpop.f32.mrf.mxu0
  %v1150 = vadd.f32 %v1053, %v1149
  %v1151 = vpop.f32.mrf.mxu0
  %v1152 = vpop.f32.mrf.mxu0
  %v1153 = vadd.f32 %v1056, %v1152
  %v1154 = vpop.f32.mrf.mxu0
  %1155 = vmatprep.mubr.bf16.mxu0 0
  %1156 = vmatmul.mubr.bf16.gmra.mxu0 %v779
  %v1157 = vpop.f32.mrf.mxu0
  %v1158 = vadd.f32 %v1061, %v1157
  %v1159 = vpop.f32.mrf.mxu0
  %v1160 = vpop.f32.mrf.mxu0
  %v1161 = vadd.f32 %v1064, %v1160
  %v1162 = vpop.f32.mrf.mxu0
  %1163 = vmatprep.mubr.bf16.mxu0 0
  %1164 = vmatmul.mubr.bf16.gmra.mxu0 %v782
  %v1165 = vpop.f32.mrf.mxu0
  %v1166 = vadd.f32 %v1069, %v1165
  %v1167 = vpop.f32.mrf.mxu0
  %v1168 = vpop.f32.mrf.mxu0
  %v1169 = vadd.f32 %v1072, %v1168
  %v1170 = vpop.f32.mrf.mxu0
  %1171 = vdwg.mxu0
  %v1172 = vmax.f32 %v1110, %v1126
  %v1173 = vmax.f32 %v1113, %v1129
  %v1174 = vmax.f32 %v1118, %v1134
  %v1175 = vmax.f32 %v1121, %v1137
  %v1176 = vmax.f32 %v1172, %v1142
  %v1177 = vmax.f32 %v1173, %v1145
  %v1178 = vmax.f32 %v1174, %v1150
  %v1179 = vmax.f32 %v1175, %v1153
  %v1180 = vmax.f32 %v1176, %v1158
  %v1181 = vmax.f32 %v1177, %v1161
  %v1182 = vmax.f32 %v1178, %v1166
  %v1183 = vmax.f32 %v1179, %v1169
  %v1184 = vld [vmem:[%s2] sm:$0x1]
  %v1186 = vlaneseq
  %v1187 = vshrl.u32 %v1186, 7
  %v1188 = vsub.s32 0, %v1187
  %v1189 = vrot.slane %v1184, %v1188
  %v1191 = vadd.f32 %v1180, %v1189
  %v1192 = vadd.f32 %v1181, %v1189
  %v1193 = vadd.f32 %v1182, %v1189
  %v1194 = vadd.f32 %v1183, %v1189
  %v1195 = vpack.c.bf16 %v1192, %v1191
  %v1196 = vpack.c.bf16 %v1194, %v1193
  %v1199 = vunpack.c.l.b16 %v1195
  %v1200 = vunpack.c.h.b16 %v1195
  %v1201 = vunpack.c.l.b16 %v1196
  %v1202 = vunpack.c.h.b16 %v1196
  %v1203 = vpack.c.b16 %v1199, %v1199
  %v1204 = vpack.c.b16 %v1200, %v1200
  %v1205 = vpack.c.b16 %v1201, %v1201
  %v1206 = vpack.c.b16 %v1202, %v1202
  %vm1211 = vcmask 519168
  %1212 = vst.msk [vmem:[%s3] sm:$0xf] %vm1211, %v1203
  %1213 = vst.msk [vmem:[%s3 + $0x4] sm:$0xf] %vm1211, %v1204
  %1214 = vst.msk [vmem:[%s3 + $0x8] sm:$0xf] %vm1211, %v1205
  %1215 = vst.msk [vmem:[%s3 + $0xc] sm:$0xf] %vm1211, %v1206
  // Predicated region
  $region14: #{lenet_forward.4} parent=0 // pred_check
    _
  $region15: #{lenet_forward.4} parent=0 // pred_check_branch
    %1217 = sbr.rel (0) target = $region17
  $region16: #{lenet_forward.4} parent=0 // pred_region
    _
  $region17: #{lenet_forward.4} parent=0 // pred_fallthru
    _
  // Predicated region
  $region18: #{lenet_forward.4} parent=0 // pred_check
    _
  $region19: #{lenet_forward.4} parent=0 // pred_check_branch
    %1219 = sbr.rel (0) target = $region21
  $region20: #{lenet_forward.4} parent=0 // pred_region
    _
  $region21: #{lenet_forward.4} parent=0 // pred_fallthru
    _

// kernel: lenet_forward.5
$region0: #{lenet_forward.5}
  #allocation0 [shape = 'u32[]', space=smem, size = 0x4, offset = 0x4, fixed_abs, tag = 'smem constant byte address 0x4 - core index']
  #allocation1 [shape = 'u32[144,128]{1,0:T(1,128)}', space=vmem, size = 0x12000, scoped, tag = 'internal scratch']
  %s0 = inlined_call_operand.vmem [shape: bf16[16,1024], index: 0, kind: input, shape index: {}]
  %s1 = inlined_call_operand.vmem [shape: bf16[1024,512], index: 1, kind: input, shape index: {}]
  %s2 = inlined_call_operand.vmem [shape: f32[1,512], index: 2, kind: input, shape index: {}]
  %s3 = inlined_call_operand.vmem [shape: bf16[512,128], index: 3, kind: input, shape index: {}]
  %s4 = inlined_call_operand.vmem [shape: f32[1,128], index: 4, kind: input, shape index: {}]
  %s5 = inlined_call_operand.vmem [shape: f32[16,128], index: 5, kind: output, shape index: {}]
  %s6 = sld [smem:[#allocation0]]
  $region30: #{lenet_forward.5} parent=0
    _
  %s8 = ssub.s32 1, %s6
  %s9 = scalar_select 0, %s8, %s6
  // Predicated region
  $region2: #{lenet_forward.5} parent=0 // pred_check
    _
  $region3: #{lenet_forward.5} parent=0 // pred_check_branch
    %11 = sbr.rel (0) target = $region5
  $region4: #{lenet_forward.5} parent=0 // pred_region
    _
  $region5: #{lenet_forward.5} parent=0 // pred_fallthru
    _
  // Predicated region
  $region6: #{lenet_forward.5} parent=0 // pred_check
    _
  $region7: #{lenet_forward.5} parent=0 // pred_check_branch
    %13 = sbr.rel (0) target = $region9
  $region8: #{lenet_forward.5} parent=0 // pred_region
    _
  $region9: #{lenet_forward.5} parent=0 // pred_fallthru
    _
  // Predicated region
  $region10: #{lenet_forward.5} parent=0 // pred_check
    _
  $region11: #{lenet_forward.5} parent=0 // pred_check_branch
    %15 = sbr.rel (0) target = $region13
  $region12: #{lenet_forward.5} parent=0 // pred_region
    _
  $region13: #{lenet_forward.5} parent=0 // pred_fallthru
    _
  // Predicated region
  $region14: #{lenet_forward.5} parent=0 // pred_check
    _
  $region15: #{lenet_forward.5} parent=0 // pred_check_branch
    %17 = sbr.rel (0) target = $region17
  $region16: #{lenet_forward.5} parent=0 // pred_region
    _
  $region17: #{lenet_forward.5} parent=0 // pred_fallthru
    _
  // Predicated region
  $region18: #{lenet_forward.5} parent=0 // pred_check
    _
  $region19: #{lenet_forward.5} parent=0 // pred_check_branch
    %19 = sbr.rel (0) target = $region21
  $region20: #{lenet_forward.5} parent=0 // pred_region
    _
  $region21: #{lenet_forward.5} parent=0 // pred_fallthru
    _
  %v21 = vld [vmem:[%s0] sm:$0xff]
  %v22 = vld [vmem:[%s0 + $0x8] sm:$0xff]
  %v23 = vld [vmem:[%s0 + $0x10] sm:$0xff]
  %v24 = vld [vmem:[%s0 + $0x18] sm:$0xff]
  %v25 = vld [vmem:[%s0 + $0x20] sm:$0xff]
  %v26 = vld [vmem:[%s0 + $0x28] sm:$0xff]
  %v27 = vld [vmem:[%s0 + $0x30] sm:$0xff]
  %v28 = vld [vmem:[%s0 + $0x38] sm:$0xff]
  %v29 = vld [vmem:[%s1] sm:$0xff]
  %v30 = vld [vmem:[%s1 + $0x8] sm:$0xff]
  %v31 = vld [vmem:[%s1 + $0x10] sm:$0xff]
  %v32 = vld [vmem:[%s1 + $0x18] sm:$0xff]
  %v33 = vld [vmem:[%s1 + $0x20] sm:$0xff]
  %v34 = vld [vmem:[%s1 + $0x28] sm:$0xff]
  %v35 = vld [vmem:[%s1 + $0x30] sm:$0xff]
  %v36 = vld [vmem:[%s1 + $0x38] sm:$0xff]
  %v37 = vld [vmem:[%s1 + $0x40] sm:$0xff]
  %v38 = vld [vmem:[%s1 + $0x48] sm:$0xff]
  %v39 = vld [vmem:[%s1 + $0x50] sm:$0xff]
  %v40 = vld [vmem:[%s1 + $0x58] sm:$0xff]
  %v41 = vld [vmem:[%s1 + $0x60] sm:$0xff]
  %v42 = vld [vmem:[%s1 + $0x68] sm:$0xff]
  %v43 = vld [vmem:[%s1 + $0x70] sm:$0xff]
  %v44 = vld [vmem:[%s1 + $0x78] sm:$0xff]
  %v45 = vld [vmem:[%s1 + $0x80] sm:$0xff]
  %v46 = vld [vmem:[%s1 + $0x88] sm:$0xff]
  %v47 = vld [vmem:[%s1 + $0x90] sm:$0xff]
  %v48 = vld [vmem:[%s1 + $0x98] sm:$0xff]
  %v49 = vld [vmem:[%s1 + $0xa0] sm:$0xff]
  %v50 = vld [vmem:[%s1 + $0xa8] sm:$0xff]
  %v51 = vld [vmem:[%s1 + $0xb0] sm:$0xff]
  %v52 = vld [vmem:[%s1 + $0xb8] sm:$0xff]
  %v53 = vld [vmem:[%s1 + $0xc0] sm:$0xff]
  %v54 = vld [vmem:[%s1 + $0xc8] sm:$0xff]
  %v55 = vld [vmem:[%s1 + $0xd0] sm:$0xff]
  %v56 = vld [vmem:[%s1 + $0xd8] sm:$0xff]
  %v57 = vld [vmem:[%s1 + $0xe0] sm:$0xff]
  %v58 = vld [vmem:[%s1 + $0xe8] sm:$0xff]
  %v59 = vld [vmem:[%s1 + $0xf0] sm:$0xff]
  %v60 = vld [vmem:[%s1 + $0xf8] sm:$0xff]
  %v61 = vld [vmem:[%s1 + $0x100] sm:$0xff]
  %v62 = vld [vmem:[%s1 + $0x108] sm:$0xff]
  %v63 = vld [vmem:[%s1 + $0x110] sm:$0xff]
  %v64 = vld [vmem:[%s1 + $0x118] sm:$0xff]
  %v65 = vld [vmem:[%s1 + $0x120] sm:$0xff]
  %v66 = vld [vmem:[%s1 + $0x128] sm:$0xff]
  %v67 = vld [vmem:[%s1 + $0x130] sm:$0xff]
  %v68 = vld [vmem:[%s1 + $0x138] sm:$0xff]
  %v69 = vld [vmem:[%s1 + $0x140] sm:$0xff]
  %v70 = vld [vmem:[%s1 + $0x148] sm:$0xff]
  %v71 = vld [vmem:[%s1 + $0x150] sm:$0xff]
  %v72 = vld [vmem:[%s1 + $0x158] sm:$0xff]
  %v73 = vld [vmem:[%s1 + $0x160] sm:$0xff]
  %v74 = vld [vmem:[%s1 + $0x168] sm:$0xff]
  %v75 = vld [vmem:[%s1 + $0x170] sm:$0xff]
  %v76 = vld [vmem:[%s1 + $0x178] sm:$0xff]
  %v77 = vld [vmem:[%s1 + $0x180] sm:$0xff]
  %v78 = vld [vmem:[%s1 + $0x188] sm:$0xff]
  %v79 = vld [vmem:[%s1 + $0x190] sm:$0xff]
  %v80 = vld [vmem:[%s1 + $0x198] sm:$0xff]
  %v81 = vld [vmem:[%s1 + $0x1a0] sm:$0xff]
  %v82 = vld [vmem:[%s1 + $0x1a8] sm:$0xff]
  %v83 = vld [vmem:[%s1 + $0x1b0] sm:$0xff]
  %v84 = vld [vmem:[%s1 + $0x1b8] sm:$0xff]
  %v85 = vld [vmem:[%s1 + $0x1c0] sm:$0xff]
  %v86 = vld [vmem:[%s1 + $0x1c8] sm:$0xff]
  %v87 = vld [vmem:[%s1 + $0x1d0] sm:$0xff]
  %v88 = vld [vmem:[%s1 + $0x1d8] sm:$0xff]
  %v89 = vld [vmem:[%s1 + $0x1e0] sm:$0xff]
  %v90 = vld [vmem:[%s1 + $0x1e8] sm:$0xff]
  %v91 = vld [vmem:[%s1 + $0x1f0] sm:$0xff]
  %v92 = vld [vmem:[%s1 + $0x1f8] sm:$0xff]
  %v93 = vld [vmem:[%s1 + $0x200] sm:$0xff]
  %v94 = vld [vmem:[%s1 + $0x208] sm:$0xff]
  %v95 = vld [vmem:[%s1 + $0x210] sm:$0xff]
  %v96 = vld [vmem:[%s1 + $0x218] sm:$0xff]
  %v97 = vld [vmem:[%s1 + $0x220] sm:$0xff]
  %v98 = vld [vmem:[%s1 + $0x228] sm:$0xff]
  %v99 = vld [vmem:[%s1 + $0x230] sm:$0xff]
  %v100 = vld [vmem:[%s1 + $0x238] sm:$0xff]
  %v101 = vld [vmem:[%s1 + $0x240] sm:$0xff]
  %v102 = vld [vmem:[%s1 + $0x248] sm:$0xff]
  %v103 = vld [vmem:[%s1 + $0x250] sm:$0xff]
  %v104 = vld [vmem:[%s1 + $0x258] sm:$0xff]
  %v105 = vld [vmem:[%s1 + $0x260] sm:$0xff]
  %v106 = vld [vmem:[%s1 + $0x268] sm:$0xff]
  %v107 = vld [vmem:[%s1 + $0x270] sm:$0xff]
  %v108 = vld [vmem:[%s1 + $0x278] sm:$0xff]
  %v109 = vld [vmem:[%s1 + $0x280] sm:$0xff]
  %v110 = vld [vmem:[%s1 + $0x288] sm:$0xff]
  %v111 = vld [vmem:[%s1 + $0x290] sm:$0xff]
  %v112 = vld [vmem:[%s1 + $0x298] sm:$0xff]
  %v113 = vld [vmem:[%s1 + $0x2a0] sm:$0xff]
  %v114 = vld [vmem:[%s1 + $0x2a8] sm:$0xff]
  %v115 = vld [vmem:[%s1 + $0x2b0] sm:$0xff]
  %v116 = vld [vmem:[%s1 + $0x2b8] sm:$0xff]
  %v117 = vld [vmem:[%s1 + $0x2c0] sm:$0xff]
  %v118 = vld [vmem:[%s1 + $0x2c8] sm:$0xff]
  %v119 = vld [vmem:[%s1 + $0x2d0] sm:$0xff]
  %v120 = vld [vmem:[%s1 + $0x2d8] sm:$0xff]
  %v121 = vld [vmem:[%s1 + $0x2e0] sm:$0xff]
  %v122 = vld [vmem:[%s1 + $0x2e8] sm:$0xff]
  %v123 = vld [vmem:[%s1 + $0x2f0] sm:$0xff]
  %v124 = vld [vmem:[%s1 + $0x2f8] sm:$0xff]
  %v125 = vld [vmem:[%s1 + $0x300] sm:$0xff]
  %v126 = vld [vmem:[%s1 + $0x308] sm:$0xff]
  %v127 = vld [vmem:[%s1 + $0x310] sm:$0xff]
  %v128 = vld [vmem:[%s1 + $0x318] sm:$0xff]
  %v129 = vld [vmem:[%s1 + $0x320] sm:$0xff]
  %v130 = vld [vmem:[%s1 + $0x328] sm:$0xff]
  %v131 = vld [vmem:[%s1 + $0x330] sm:$0xff]
  %v132 = vld [vmem:[%s1 + $0x338] sm:$0xff]
  %v133 = vld [vmem:[%s1 + $0x340] sm:$0xff]
  %v134 = vld [vmem:[%s1 + $0x348] sm:$0xff]
  %v135 = vld [vmem:[%s1 + $0x350] sm:$0xff]
  %v136 = vld [vmem:[%s1 + $0x358] sm:$0xff]
  %v137 = vld [vmem:[%s1 + $0x360] sm:$0xff]
  %v138 = vld [vmem:[%s1 + $0x368] sm:$0xff]
  %v139 = vld [vmem:[%s1 + $0x370] sm:$0xff]
  %v140 = vld [vmem:[%s1 + $0x378] sm:$0xff]
  %v141 = vld [vmem:[%s1 + $0x380] sm:$0xff]
  %v142 = vld [vmem:[%s1 + $0x388] sm:$0xff]
  %v143 = vld [vmem:[%s1 + $0x390] sm:$0xff]
  %v144 = vld [vmem:[%s1 + $0x398] sm:$0xff]
  %v145 = vld [vmem:[%s1 + $0x3a0] sm:$0xff]
  %v146 = vld [vmem:[%s1 + $0x3a8] sm:$0xff]
  %v147 = vld [vmem:[%s1 + $0x3b0] sm:$0xff]
  %v148 = vld [vmem:[%s1 + $0x3b8] sm:$0xff]
  %v149 = vld [vmem:[%s1 + $0x3c0] sm:$0xff]
  %v150 = vld [vmem:[%s1 + $0x3c8] sm:$0xff]
  %v151 = vld [vmem:[%s1 + $0x3d0] sm:$0xff]
  %v152 = vld [vmem:[%s1 + $0x3d8] sm:$0xff]
  %v153 = vld [vmem:[%s1 + $0x3e0] sm:$0xff]
  %v154 = vld [vmem:[%s1 + $0x3e8] sm:$0xff]
  %v155 = vld [vmem:[%s1 + $0x3f0] sm:$0xff]
  %v156 = vld [vmem:[%s1 + $0x3f8] sm:$0xff]
  %v157 = vld [vmem:[%s1 + $0x400] sm:$0xff]
  %v158 = vld [vmem:[%s1 + $0x408] sm:$0xff]
  %v159 = vld [vmem:[%s1 + $0x410] sm:$0xff]
  %v160 = vld [vmem:[%s1 + $0x418] sm:$0xff]
  %v161 = vld [vmem:[%s1 + $0x420] sm:$0xff]
  %v162 = vld [vmem:[%s1 + $0x428] sm:$0xff]
  %v163 = vld [vmem:[%s1 + $0x430] sm:$0xff]
  %v164 = vld [vmem:[%s1 + $0x438] sm:$0xff]
  %v165 = vld [vmem:[%s1 + $0x440] sm:$0xff]
  %v166 = vld [vmem:[%s1 + $0x448] sm:$0xff]
  %v167 = vld [vmem:[%s1 + $0x450] sm:$0xff]
  %v168 = vld [vmem:[%s1 + $0x458] sm:$0xff]
  %v169 = vld [vmem:[%s1 + $0x460] sm:$0xff]
  %v170 = vld [vmem:[%s1 + $0x468] sm:$0xff]
  %v171 = vld [vmem:[%s1 + $0x470] sm:$0xff]
  %v172 = vld [vmem:[%s1 + $0x478] sm:$0xff]
  %v173 = vld [vmem:[%s1 + $0x480] sm:$0xff]
  %v174 = vld [vmem:[%s1 + $0x488] sm:$0xff]
  %v175 = vld [vmem:[%s1 + $0x490] sm:$0xff]
  %v176 = vld [vmem:[%s1 + $0x498] sm:$0xff]
  %v177 = vld [vmem:[%s1 + $0x4a0] sm:$0xff]
  %v178 = vld [vmem:[%s1 + $0x4a8] sm:$0xff]
  %v179 = vld [vmem:[%s1 + $0x4b0] sm:$0xff]
  %v180 = vld [vmem:[%s1 + $0x4b8] sm:$0xff]
  %v181 = vld [vmem:[%s1 + $0x4c0] sm:$0xff]
  %v182 = vld [vmem:[%s1 + $0x4c8] sm:$0xff]
  %v183 = vld [vmem:[%s1 + $0x4d0] sm:$0xff]
  %v184 = vld [vmem:[%s1 + $0x4d8] sm:$0xff]
  %v185 = vld [vmem:[%s1 + $0x4e0] sm:$0xff]
  %v186 = vld [vmem:[%s1 + $0x4e8] sm:$0xff]
  %v187 = vld [vmem:[%s1 + $0x4f0] sm:$0xff]
  %v188 = vld [vmem:[%s1 + $0x4f8] sm:$0xff]
  %v189 = vld [vmem:[%s1 + $0x500] sm:$0xff]
  %v190 = vld [vmem:[%s1 + $0x508] sm:$0xff]
  %v191 = vld [vmem:[%s1 + $0x510] sm:$0xff]
  %v192 = vld [vmem:[%s1 + $0x518] sm:$0xff]
  %v193 = vld [vmem:[%s1 + $0x520] sm:$0xff]
  %v194 = vld [vmem:[%s1 + $0x528] sm:$0xff]
  %v195 = vld [vmem:[%s1 + $0x530] sm:$0xff]
  %v196 = vld [vmem:[%s1 + $0x538] sm:$0xff]
  %v197 = vld [vmem:[%s1 + $0x540] sm:$0xff]
  %v198 = vld [vmem:[%s1 + $0x548] sm:$0xff]
  %v199 = vld [vmem:[%s1 + $0x550] sm:$0xff]
  %v200 = vld [vmem:[%s1 + $0x558] sm:$0xff]
  %v201 = vld [vmem:[%s1 + $0x560] sm:$0xff]
  %v202 = vld [vmem:[%s1 + $0x568] sm:$0xff]
  %v203 = vld [vmem:[%s1 + $0x570] sm:$0xff]
  %v204 = vld [vmem:[%s1 + $0x578] sm:$0xff]
  %v205 = vld [vmem:[%s1 + $0x580] sm:$0xff]
  %v206 = vld [vmem:[%s1 + $0x588] sm:$0xff]
  %v207 = vld [vmem:[%s1 + $0x590] sm:$0xff]
  %v208 = vld [vmem:[%s1 + $0x598] sm:$0xff]
  %v209 = vld [vmem:[%s1 + $0x5a0] sm:$0xff]
  %v210 = vld [vmem:[%s1 + $0x5a8] sm:$0xff]
  %v211 = vld [vmem:[%s1 + $0x5b0] sm:$0xff]
  %v212 = vld [vmem:[%s1 + $0x5b8] sm:$0xff]
  %v213 = vld [vmem:[%s1 + $0x5c0] sm:$0xff]
  %v214 = vld [vmem:[%s1 + $0x5c8] sm:$0xff]
  %v215 = vld [vmem:[%s1 + $0x5d0] sm:$0xff]
  %v216 = vld [vmem:[%s1 + $0x5d8] sm:$0xff]
  %v217 = vld [vmem:[%s1 + $0x5e0] sm:$0xff]
  %v218 = vld [vmem:[%s1 + $0x5e8] sm:$0xff]
  %v219 = vld [vmem:[%s1 + $0x5f0] sm:$0xff]
  %v220 = vld [vmem:[%s1 + $0x5f8] sm:$0xff]
  %v221 = vld [vmem:[%s1 + $0x600] sm:$0xff]
  %v222 = vld [vmem:[%s1 + $0x608] sm:$0xff]
  %v223 = vld [vmem:[%s1 + $0x610] sm:$0xff]
  %v224 = vld [vmem:[%s1 + $0x618] sm:$0xff]
  %v225 = vld [vmem:[%s1 + $0x620] sm:$0xff]
  %v226 = vld [vmem:[%s1 + $0x628] sm:$0xff]
  %v227 = vld [vmem:[%s1 + $0x630] sm:$0xff]
  %v228 = vld [vmem:[%s1 + $0x638] sm:$0xff]
  %v229 = vld [vmem:[%s1 + $0x640] sm:$0xff]
  %v230 = vld [vmem:[%s1 + $0x648] sm:$0xff]
  %v231 = vld [vmem:[%s1 + $0x650] sm:$0xff]
  %v232 = vld [vmem:[%s1 + $0x658] sm:$0xff]
  %v233 = vld [vmem:[%s1 + $0x660] sm:$0xff]
  %v234 = vld [vmem:[%s1 + $0x668] sm:$0xff]
  %v235 = vld [vmem:[%s1 + $0x670] sm:$0xff]
  %v236 = vld [vmem:[%s1 + $0x678] sm:$0xff]
  %v237 = vld [vmem:[%s1 + $0x680] sm:$0xff]
  %v238 = vld [vmem:[%s1 + $0x688] sm:$0xff]
  %v239 = vld [vmem:[%s1 + $0x690] sm:$0xff]
  %v240 = vld [vmem:[%s1 + $0x698] sm:$0xff]
  %v241 = vld [vmem:[%s1 + $0x6a0] sm:$0xff]
  %v242 = vld [vmem:[%s1 + $0x6a8] sm:$0xff]
  %v243 = vld [vmem:[%s1 + $0x6b0] sm:$0xff]
  %v244 = vld [vmem:[%s1 + $0x6b8] sm:$0xff]
  %v245 = vld [vmem:[%s1 + $0x6c0] sm:$0xff]
  %v246 = vld [vmem:[%s1 + $0x6c8] sm:$0xff]
  %v247 = vld [vmem:[%s1 + $0x6d0] sm:$0xff]
  %v248 = vld [vmem:[%s1 + $0x6d8] sm:$0xff]
  %v249 = vld [vmem:[%s1 + $0x6e0] sm:$0xff]
  %v250 = vld [vmem:[%s1 + $0x6e8] sm:$0xff]
  %v251 = vld [vmem:[%s1 + $0x6f0] sm:$0xff]
  %v252 = vld [vmem:[%s1 + $0x6f8] sm:$0xff]
  %v253 = vld [vmem:[%s1 + $0x700] sm:$0xff]
  %v254 = vld [vmem:[%s1 + $0x708] sm:$0xff]
  %v255 = vld [vmem:[%s1 + $0x710] sm:$0xff]
  %v256 = vld [vmem:[%s1 + $0x718] sm:$0xff]
  %v257 = vld [vmem:[%s1 + $0x720] sm:$0xff]
  %v258 = vld [vmem:[%s1 + $0x728] sm:$0xff]
  %v259 = vld [vmem:[%s1 + $0x730] sm:$0xff]
  %v260 = vld [vmem:[%s1 + $0x738] sm:$0xff]
  %v261 = vld [vmem:[%s1 + $0x740] sm:$0xff]
  %v262 = vld [vmem:[%s1 + $0x748] sm:$0xff]
  %v263 = vld [vmem:[%s1 + $0x750] sm:$0xff]
  %v264 = vld [vmem:[%s1 + $0x758] sm:$0xff]
  %v265 = vld [vmem:[%s1 + $0x760] sm:$0xff]
  %v266 = vld [vmem:[%s1 + $0x768] sm:$0xff]
  %v267 = vld [vmem:[%s1 + $0x770] sm:$0xff]
  %v268 = vld [vmem:[%s1 + $0x778] sm:$0xff]
  %v269 = vld [vmem:[%s1 + $0x780] sm:$0xff]
  %v270 = vld [vmem:[%s1 + $0x788] sm:$0xff]
  %v271 = vld [vmem:[%s1 + $0x790] sm:$0xff]
  %v272 = vld [vmem:[%s1 + $0x798] sm:$0xff]
  %v273 = vld [vmem:[%s1 + $0x7a0] sm:$0xff]
  %v274 = vld [vmem:[%s1 + $0x7a8] sm:$0xff]
  %v275 = vld [vmem:[%s1 + $0x7b0] sm:$0xff]
  %v276 = vld [vmem:[%s1 + $0x7b8] sm:$0xff]
  %v277 = vld [vmem:[%s1 + $0x7c0] sm:$0xff]
  %v278 = vld [vmem:[%s1 + $0x7c8] sm:$0xff]
  %v279 = vld [vmem:[%s1 + $0x7d0] sm:$0xff]
  %v280 = vld [vmem:[%s1 + $0x7d8] sm:$0xff]
  %v281 = vld [vmem:[%s1 + $0x7e0] sm:$0xff]
  %v282 = vld [vmem:[%s1 + $0x7e8] sm:$0xff]
  %v283 = vld [vmem:[%s1 + $0x7f0] sm:$0xff]
  %v284 = vld [vmem:[%s1 + $0x7f8] sm:$0xff]
  %v285 = vld [vmem:[%s2] sm:$0xf]
  %v287 = vlaneseq
  %v288 = vshrl.u32 %v287, 7
  %v289 = vsub.s32 0, %v288
  %v290 = vrot.slane %v285, %v289
  %v291 = vlaneseq
  %v292 = vshrl.u32 %v291, 7
  %v293 = vsub.s32 1, %v292
  %v294 = vrot.slane %v285, %v293
  %v295 = vlaneseq
  %v296 = vshrl.u32 %v295, 7
  %v297 = vsub.s32 2, %v296
  %v298 = vrot.slane %v285, %v297
  %v299 = vlaneseq
  %v300 = vshrl.u32 %v299, 7
  %v301 = vsub.s32 3, %v300
  %v302 = vrot.slane %v285, %v301
  %v315 = vunpack.c.l.b16 %v21
  %v316 = vunpack.c.h.b16 %v21
  %v317 = vunpack.c.l.b16 %v22
  %v318 = vunpack.c.h.b16 %v22
  %v319 = vunpack.c.l.b16 %v23
  %v320 = vunpack.c.h.b16 %v23
  %v321 = vunpack.c.l.b16 %v24
  %v322 = vunpack.c.h.b16 %v24
  %v323 = vunpack.c.l.b16 %v25
  %v324 = vunpack.c.h.b16 %v25
  %v325 = vunpack.c.l.b16 %v26
  %v326 = vunpack.c.h.b16 %v26
  %v327 = vunpack.c.l.b16 %v27
  %v328 = vunpack.c.h.b16 %v27
  %v329 = vunpack.c.l.b16 %v28
  %v330 = vunpack.c.h.b16 %v28
  %v331 = vpack.c.b16 %v323, %v315
  %v332 = vpack.c.b16 %v324, %v316
  %v333 = vpack.c.b16 %v325, %v317
  %v334 = vpack.c.b16 %v326, %v318
  %v335 = vpack.c.b16 %v327, %v319
  %v336 = vpack.c.b16 %v328, %v320
  %v337 = vpack.c.b16 %v329, %v321
  %v338 = vpack.c.b16 %v330, %v322
  %v603 = vunpack.c.l.b16 %v29
  %v604 = vunpack.c.h.b16 %v29
  %v605 = vunpack.c.l.b16 %v30
  %v606 = vunpack.c.h.b16 %v30
  %v607 = vunpack.c.l.b16 %v31
  %v608 = vunpack.c.h.b16 %v31
  %v609 = vunpack.c.l.b16 %v32
  %v610 = vunpack.c.h.b16 %v32
  %v611 = vunpack.c.l.b16 %v33
  %v612 = vunpack.c.h.b16 %v33
  %v613 = vunpack.c.l.b16 %v34
  %v614 = vunpack.c.h.b16 %v34
  %v615 = vunpack.c.l.b16 %v35
  %v616 = vunpack.c.h.b16 %v35
  %v617 = vunpack.c.l.b16 %v36
  %v618 = vunpack.c.h.b16 %v36
  %v619 = vunpack.c.l.b16 %v37
  %v620 = vunpack.c.h.b16 %v37
  %v621 = vunpack.c.l.b16 %v38
  %v622 = vunpack.c.h.b16 %v38
  %v623 = vunpack.c.l.b16 %v39
  %v624 = vunpack.c.h.b16 %v39
  %v625 = vunpack.c.l.b16 %v40
  %v626 = vunpack.c.h.b16 %v40
  %v627 = vunpack.c.l.b16 %v41
  %v628 = vunpack.c.h.b16 %v41
  %v629 = vunpack.c.l.b16 %v42
  %v630 = vunpack.c.h.b16 %v42
  %v631 = vunpack.c.l.b16 %v43
  %v632 = vunpack.c.h.b16 %v43
  %v633 = vunpack.c.l.b16 %v44
  %v634 = vunpack.c.h.b16 %v44
  %v635 = vunpack.c.l.b16 %v45
  %v636 = vunpack.c.h.b16 %v45
  %v637 = vunpack.c.l.b16 %v46
  %v638 = vunpack.c.h.b16 %v46
  %v639 = vunpack.c.l.b16 %v47
  %v640 = vunpack.c.h.b16 %v47
  %v641 = vunpack.c.l.b16 %v48
  %v642 = vunpack.c.h.b16 %v48
  %v643 = vunpack.c.l.b16 %v49
  %v644 = vunpack.c.h.b16 %v49
  %v645 = vunpack.c.l.b16 %v50
  %v646 = vunpack.c.h.b16 %v50
  %v647 = vunpack.c.l.b16 %v51
  %v648 = vunpack.c.h.b16 %v51
  %v649 = vunpack.c.l.b16 %v52
  %v650 = vunpack.c.h.b16 %v52
  %v651 = vunpack.c.l.b16 %v53
  %v652 = vunpack.c.h.b16 %v53
  %v653 = vunpack.c.l.b16 %v54
  %v654 = vunpack.c.h.b16 %v54
  %v655 = vunpack.c.l.b16 %v55
  %v656 = vunpack.c.h.b16 %v55
  %v657 = vunpack.c.l.b16 %v56
  %v658 = vunpack.c.h.b16 %v56
  %v659 = vunpack.c.l.b16 %v57
  %v660 = vunpack.c.h.b16 %v57
  %v661 = vunpack.c.l.b16 %v58
  %v662 = vunpack.c.h.b16 %v58
  %v663 = vunpack.c.l.b16 %v59
  %v664 = vunpack.c.h.b16 %v59
  %v665 = vunpack.c.l.b16 %v60
  %v666 = vunpack.c.h.b16 %v60
  %v667 = vunpack.c.l.b16 %v61
  %v668 = vunpack.c.h.b16 %v61
  %v669 = vunpack.c.l.b16 %v62
  %v670 = vunpack.c.h.b16 %v62
  %v671 = vunpack.c.l.b16 %v63
  %v672 = vunpack.c.h.b16 %v63
  %v673 = vunpack.c.l.b16 %v64
  %v674 = vunpack.c.h.b16 %v64
  %v675 = vunpack.c.l.b16 %v65
  %v676 = vunpack.c.h.b16 %v65
  %v677 = vunpack.c.l.b16 %v66
  %v678 = vunpack.c.h.b16 %v66
  %v679 = vunpack.c.l.b16 %v67
  %v680 = vunpack.c.h.b16 %v67
  %v681 = vunpack.c.l.b16 %v68
  %v682 = vunpack.c.h.b16 %v68
  %v683 = vunpack.c.l.b16 %v69
  %v684 = vunpack.c.h.b16 %v69
  %v685 = vunpack.c.l.b16 %v70
  %v686 = vunpack.c.h.b16 %v70
  %v687 = vunpack.c.l.b16 %v71
  %v688 = vunpack.c.h.b16 %v71
  %v689 = vunpack.c.l.b16 %v72
  %v690 = vunpack.c.h.b16 %v72
  %v691 = vunpack.c.l.b16 %v73
  %v692 = vunpack.c.h.b16 %v73
  %v693 = vunpack.c.l.b16 %v74
  %v694 = vunpack.c.h.b16 %v74
  %v695 = vunpack.c.l.b16 %v75
  %v696 = vunpack.c.h.b16 %v75
  %v697 = vunpack.c.l.b16 %v76
  %v698 = vunpack.c.h.b16 %v76
  %v699 = vunpack.c.l.b16 %v77
  %v700 = vunpack.c.h.b16 %v77
  %v701 = vunpack.c.l.b16 %v78
  %v702 = vunpack.c.h.b16 %v78
  %v703 = vunpack.c.l.b16 %v79
  %v704 = vunpack.c.h.b16 %v79
  %v705 = vunpack.c.l.b16 %v80
  %v706 = vunpack.c.h.b16 %v80
  %v707 = vunpack.c.l.b16 %v81
  %v708 = vunpack.c.h.b16 %v81
  %v709 = vunpack.c.l.b16 %v82
  %v710 = vunpack.c.h.b16 %v82
  %v711 = vunpack.c.l.b16 %v83
  %v712 = vunpack.c.h.b16 %v83
  %v713 = vunpack.c.l.b16 %v84
  %v714 = vunpack.c.h.b16 %v84
  %v715 = vunpack.c.l.b16 %v85
  %v716 = vunpack.c.h.b16 %v85
  %v717 = vunpack.c.l.b16 %v86
  %v718 = vunpack.c.h.b16 %v86
  %v719 = vunpack.c.l.b16 %v87
  %v720 = vunpack.c.h.b16 %v87
  %v721 = vunpack.c.l.b16 %v88
  %v722 = vunpack.c.h.b16 %v88
  %v723 = vunpack.c.l.b16 %v89
  %v724 = vunpack.c.h.b16 %v89
  %v725 = vunpack.c.l.b16 %v90
  %v726 = vunpack.c.h.b16 %v90
  %v727 = vunpack.c.l.b16 %v91
  %v728 = vunpack.c.h.b16 %v91
  %v729 = vunpack.c.l.b16 %v92
  %v730 = vunpack.c.h.b16 %v92
  %v731 = vunpack.c.l.b16 %v93
  %v732 = vunpack.c.h.b16 %v93
  %v733 = vunpack.c.l.b16 %v94
  %v734 = vunpack.c.h.b16 %v94
  %v735 = vunpack.c.l.b16 %v95
  %v736 = vunpack.c.h.b16 %v95
  %v737 = vunpack.c.l.b16 %v96
  %v738 = vunpack.c.h.b16 %v96
  %v739 = vunpack.c.l.b16 %v97
  %v740 = vunpack.c.h.b16 %v97
  %v741 = vunpack.c.l.b16 %v98
  %v742 = vunpack.c.h.b16 %v98
  %v743 = vunpack.c.l.b16 %v99
  %v744 = vunpack.c.h.b16 %v99
  %v745 = vunpack.c.l.b16 %v100
  %v746 = vunpack.c.h.b16 %v100
  %v747 = vunpack.c.l.b16 %v101
  %v748 = vunpack.c.h.b16 %v101
  %v749 = vunpack.c.l.b16 %v102
  %v750 = vunpack.c.h.b16 %v102
  %v751 = vunpack.c.l.b16 %v103
  %v752 = vunpack.c.h.b16 %v103
  %v753 = vunpack.c.l.b16 %v104
  %v754 = vunpack.c.h.b16 %v104
  %v755 = vunpack.c.l.b16 %v105
  %v756 = vunpack.c.h.b16 %v105
  %v757 = vunpack.c.l.b16 %v106
  %v758 = vunpack.c.h.b16 %v106
  %v759 = vunpack.c.l.b16 %v107
  %v760 = vunpack.c.h.b16 %v107
  %v761 = vunpack.c.l.b16 %v108
  %v762 = vunpack.c.h.b16 %v108
  %v763 = vunpack.c.l.b16 %v109
  %v764 = vunpack.c.h.b16 %v109
  %v765 = vunpack.c.l.b16 %v110
  %v766 = vunpack.c.h.b16 %v110
  %v767 = vunpack.c.l.b16 %v111
  %v768 = vunpack.c.h.b16 %v111
  %v769 = vunpack.c.l.b16 %v112
  %v770 = vunpack.c.h.b16 %v112
  %v771 = vunpack.c.l.b16 %v113
  %v772 = vunpack.c.h.b16 %v113
  %v773 = vunpack.c.l.b16 %v114
  %v774 = vunpack.c.h.b16 %v114
  %v775 = vunpack.c.l.b16 %v115
  %v776 = vunpack.c.h.b16 %v115
  %v777 = vunpack.c.l.b16 %v116
  %v778 = vunpack.c.h.b16 %v116
  %v779 = vunpack.c.l.b16 %v117
  %v780 = vunpack.c.h.b16 %v117
  %v781 = vunpack.c.l.b16 %v118
  %v782 = vunpack.c.h.b16 %v118
  %v783 = vunpack.c.l.b16 %v119
  %v784 = vunpack.c.h.b16 %v119
  %v785 = vunpack.c.l.b16 %v120
  %v786 = vunpack.c.h.b16 %v120
  %v787 = vunpack.c.l.b16 %v121
  %v788 = vunpack.c.h.b16 %v121
  %v789 = vunpack.c.l.b16 %v122
  %v790 = vunpack.c.h.b16 %v122
  %v791 = vunpack.c.l.b16 %v123
  %v792 = vunpack.c.h.b16 %v123
  %v793 = vunpack.c.l.b16 %v124
  %v794 = vunpack.c.h.b16 %v124
  %v795 = vunpack.c.l.b16 %v125
  %v796 = vunpack.c.h.b16 %v125
  %v797 = vunpack.c.l.b16 %v126
  %v798 = vunpack.c.h.b16 %v126
  %v799 = vunpack.c.l.b16 %v127
  %v800 = vunpack.c.h.b16 %v127
  %v801 = vunpack.c.l.b16 %v128
  %v802 = vunpack.c.h.b16 %v128
  %v803 = vunpack.c.l.b16 %v129
  %v804 = vunpack.c.h.b16 %v129
  %v805 = vunpack.c.l.b16 %v130
  %v806 = vunpack.c.h.b16 %v130
  %v807 = vunpack.c.l.b16 %v131
  %v808 = vunpack.c.h.b16 %v131
  %v809 = vunpack.c.l.b16 %v132
  %v810 = vunpack.c.h.b16 %v132
  %v811 = vunpack.c.l.b16 %v133
  %v812 = vunpack.c.h.b16 %v133
  %v813 = vunpack.c.l.b16 %v134
  %v814 = vunpack.c.h.b16 %v134
  %v815 = vunpack.c.l.b16 %v135
  %v816 = vunpack.c.h.b16 %v135
  %v817 = vunpack.c.l.b16 %v136
  %v818 = vunpack.c.h.b16 %v136
  %v819 = vunpack.c.l.b16 %v137
  %v820 = vunpack.c.h.b16 %v137
  %v821 = vunpack.c.l.b16 %v138
  %v822 = vunpack.c.h.b16 %v138
  %v823 = vunpack.c.l.b16 %v139
  %v824 = vunpack.c.h.b16 %v139
  %v825 = vunpack.c.l.b16 %v140
  %v826 = vunpack.c.h.b16 %v140
  %v827 = vunpack.c.l.b16 %v141
  %v828 = vunpack.c.h.b16 %v141
  %v829 = vunpack.c.l.b16 %v142
  %v830 = vunpack.c.h.b16 %v142
  %v831 = vunpack.c.l.b16 %v143
  %v832 = vunpack.c.h.b16 %v143
  %v833 = vunpack.c.l.b16 %v144
  %v834 = vunpack.c.h.b16 %v144
  %v835 = vunpack.c.l.b16 %v145
  %v836 = vunpack.c.h.b16 %v145
  %v837 = vunpack.c.l.b16 %v146
  %v838 = vunpack.c.h.b16 %v146
  %v839 = vunpack.c.l.b16 %v147
  %v840 = vunpack.c.h.b16 %v147
  %v841 = vunpack.c.l.b16 %v148
  %v842 = vunpack.c.h.b16 %v148
  %v843 = vunpack.c.l.b16 %v149
  %v844 = vunpack.c.h.b16 %v149
  %v845 = vunpack.c.l.b16 %v150
  %v846 = vunpack.c.h.b16 %v150
  %v847 = vunpack.c.l.b16 %v151
  %v848 = vunpack.c.h.b16 %v151
  %v849 = vunpack.c.l.b16 %v152
  %v850 = vunpack.c.h.b16 %v152
  %v851 = vunpack.c.l.b16 %v153
  %v852 = vunpack.c.h.b16 %v153
  %v853 = vunpack.c.l.b16 %v154
  %v854 = vunpack.c.h.b16 %v154
  %v855 = vunpack.c.l.b16 %v155
  %v856 = vunpack.c.h.b16 %v155
  %v857 = vunpack.c.l.b16 %v156
  %v858 = vunpack.c.h.b16 %v156
  %v859 = vunpack.c.l.b16 %v157
  %v860 = vunpack.c.h.b16 %v157
  %v861 = vunpack.c.l.b16 %v158
  %v862 = vunpack.c.h.b16 %v158
  %v863 = vunpack.c.l.b16 %v159
  %v864 = vunpack.c.h.b16 %v159
  %v865 = vunpack.c.l.b16 %v160
  %v866 = vunpack.c.h.b16 %v160
  %v867 = vunpack.c.l.b16 %v161
  %v868 = vunpack.c.h.b16 %v161
  %v869 = vunpack.c.l.b16 %v162
  %v870 = vunpack.c.h.b16 %v162
  %v871 = vunpack.c.l.b16 %v163
  %v872 = vunpack.c.h.b16 %v163
  %v873 = vunpack.c.l.b16 %v164
  %v874 = vunpack.c.h.b16 %v164
  %v875 = vunpack.c.l.b16 %v165
  %v876 = vunpack.c.h.b16 %v165
  %v877 = vunpack.c.l.b16 %v166
  %v878 = vunpack.c.h.b16 %v166
  %v879 = vunpack.c.l.b16 %v167
  %v880 = vunpack.c.h.b16 %v167
  %v881 = vunpack.c.l.b16 %v168
  %v882 = vunpack.c.h.b16 %v168
  %v883 = vunpack.c.l.b16 %v169
  %v884 = vunpack.c.h.b16 %v169
  %v885 = vunpack.c.l.b16 %v170
  %v886 = vunpack.c.h.b16 %v170
  %v887 = vunpack.c.l.b16 %v171
  %v888 = vunpack.c.h.b16 %v171
  %v889 = vunpack.c.l.b16 %v172
  %v890 = vunpack.c.h.b16 %v172
  %v891 = vunpack.c.l.b16 %v173
  %v892 = vunpack.c.h.b16 %v173
  %v893 = vunpack.c.l.b16 %v174
  %v894 = vunpack.c.h.b16 %v174
  %v895 = vunpack.c.l.b16 %v175
  %v896 = vunpack.c.h.b16 %v175
  %v897 = vunpack.c.l.b16 %v176
  %v898 = vunpack.c.h.b16 %v176
  %v899 = vunpack.c.l.b16 %v177
  %v900 = vunpack.c.h.b16 %v177
  %v901 = vunpack.c.l.b16 %v178
  %v902 = vunpack.c.h.b16 %v178
  %v903 = vunpack.c.l.b16 %v179
  %v904 = vunpack.c.h.b16 %v179
  %v905 = vunpack.c.l.b16 %v180
  %v906 = vunpack.c.h.b16 %v180
  %v907 = vunpack.c.l.b16 %v181
  %v908 = vunpack.c.h.b16 %v181
  %v909 = vunpack.c.l.b16 %v182
  %v910 = vunpack.c.h.b16 %v182
  %v911 = vunpack.c.l.b16 %v183
  %v912 = vunpack.c.h.b16 %v183
  %v913 = vunpack.c.l.b16 %v184
  %v914 = vunpack.c.h.b16 %v184
  %v915 = vunpack.c.l.b16 %v185
  %v916 = vunpack.c.h.b16 %v185
  %v917 = vunpack.c.l.b16 %v186
  %v918 = vunpack.c.h.b16 %v186
  %v919 = vunpack.c.l.b16 %v187
  %v920 = vunpack.c.h.b16 %v187
  %v921 = vunpack.c.l.b16 %v188
  %v922 = vunpack.c.h.b16 %v188
  %v923 = vunpack.c.l.b16 %v189
  %v924 = vunpack.c.h.b16 %v189
  %v925 = vunpack.c.l.b16 %v190
  %v926 = vunpack.c.h.b16 %v190
  %v927 = vunpack.c.l.b16 %v191
  %v928 = vunpack.c.h.b16 %v191
  %v929 = vunpack.c.l.b16 %v192
  %v930 = vunpack.c.h.b16 %v192
  %v931 = vunpack.c.l.b16 %v193
  %v932 = vunpack.c.h.b16 %v193
  %v933 = vunpack.c.l.b16 %v194
  %v934 = vunpack.c.h.b16 %v194
  %v935 = vunpack.c.l.b16 %v195
  %v936 = vunpack.c.h.b16 %v195
  %v937 = vunpack.c.l.b16 %v196
  %v938 = vunpack.c.h.b16 %v196
  %v939 = vunpack.c.l.b16 %v197
  %v940 = vunpack.c.h.b16 %v197
  %v941 = vunpack.c.l.b16 %v198
  %v942 = vunpack.c.h.b16 %v198
  %v943 = vunpack.c.l.b16 %v199
  %v944 = vunpack.c.h.b16 %v199
  %v945 = vunpack.c.l.b16 %v200
  %v946 = vunpack.c.h.b16 %v200
  %v947 = vunpack.c.l.b16 %v201
  %v948 = vunpack.c.h.b16 %v201
  %v949 = vunpack.c.l.b16 %v202
  %v950 = vunpack.c.h.b16 %v202
  %v951 = vunpack.c.l.b16 %v203
  %v952 = vunpack.c.h.b16 %v203
  %v953 = vunpack.c.l.b16 %v204
  %v954 = vunpack.c.h.b16 %v204
  %v955 = vunpack.c.l.b16 %v205
  %v956 = vunpack.c.h.b16 %v205
  %v957 = vunpack.c.l.b16 %v206
  %v958 = vunpack.c.h.b16 %v206
  %v959 = vunpack.c.l.b16 %v207
  %v960 = vunpack.c.h.b16 %v207
  %v961 = vunpack.c.l.b16 %v208
  %v962 = vunpack.c.h.b16 %v208
  %v963 = vunpack.c.l.b16 %v209
  %v964 = vunpack.c.h.b16 %v209
  %v965 = vunpack.c.l.b16 %v210
  %v966 = vunpack.c.h.b16 %v210
  %v967 = vunpack.c.l.b16 %v211
  %v968 = vunpack.c.h.b16 %v211
  %v969 = vunpack.c.l.b16 %v212
  %v970 = vunpack.c.h.b16 %v212
  %v971 = vunpack.c.l.b16 %v213
  %v972 = vunpack.c.h.b16 %v213
  %v973 = vunpack.c.l.b16 %v214
  %v974 = vunpack.c.h.b16 %v214
  %v975 = vunpack.c.l.b16 %v215
  %v976 = vunpack.c.h.b16 %v215
  %v977 = vunpack.c.l.b16 %v216
  %v978 = vunpack.c.h.b16 %v216
  %v979 = vunpack.c.l.b16 %v217
  %v980 = vunpack.c.h.b16 %v217
  %v981 = vunpack.c.l.b16 %v218
  %v982 = vunpack.c.h.b16 %v218
  %v983 = vunpack.c.l.b16 %v219
  %v984 = vunpack.c.h.b16 %v219
  %v985 = vunpack.c.l.b16 %v220
  %v986 = vunpack.c.h.b16 %v220
  %v987 = vunpack.c.l.b16 %v221
  %v988 = vunpack.c.h.b16 %v221
  %v989 = vunpack.c.l.b16 %v222
  %v990 = vunpack.c.h.b16 %v222
  %v991 = vunpack.c.l.b16 %v223
  %v992 = vunpack.c.h.b16 %v223
  %v993 = vunpack.c.l.b16 %v224
  %v994 = vunpack.c.h.b16 %v224
  %v995 = vunpack.c.l.b16 %v225
  %v996 = vunpack.c.h.b16 %v225
  %v997 = vunpack.c.l.b16 %v226
  %v998 = vunpack.c.h.b16 %v226
  %v999 = vunpack.c.l.b16 %v227
  %v1000 = vunpack.c.h.b16 %v227
  %v1001 = vunpack.c.l.b16 %v228
  %v1002 = vunpack.c.h.b16 %v228
  %v1003 = vunpack.c.l.b16 %v229
  %v1004 = vunpack.c.h.b16 %v229
  %v1005 = vunpack.c.l.b16 %v230
  %v1006 = vunpack.c.h.b16 %v230
  %v1007 = vunpack.c.l.b16 %v231
  %v1008 = vunpack.c.h.b16 %v231
  %v1009 = vunpack.c.l.b16 %v232
  %v1010 = vunpack.c.h.b16 %v232
  %v1011 = vunpack.c.l.b16 %v233
  %v1012 = vunpack.c.h.b16 %v233
  %v1013 = vunpack.c.l.b16 %v234
  %v1014 = vunpack.c.h.b16 %v234
  %v1015 = vunpack.c.l.b16 %v235
  %v1016 = vunpack.c.h.b16 %v235
  %v1017 = vunpack.c.l.b16 %v236
  %v1018 = vunpack.c.h.b16 %v236
  %v1019 = vunpack.c.l.b16 %v237
  %v1020 = vunpack.c.h.b16 %v237
  %v1021 = vunpack.c.l.b16 %v238
  %v1022 = vunpack.c.h.b16 %v238
  %v1023 = vunpack.c.l.b16 %v239
  %v1024 = vunpack.c.h.b16 %v239
  %v1025 = vunpack.c.l.b16 %v240
  %v1026 = vunpack.c.h.b16 %v240
  %v1027 = vunpack.c.l.b16 %v241
  %v1028 = vunpack.c.h.b16 %v241
  %v1029 = vunpack.c.l.b16 %v242
  %v1030 = vunpack.c.h.b16 %v242
  %v1031 = vunpack.c.l.b16 %v243
  %v1032 = vunpack.c.h.b16 %v243
  %v1033 = vunpack.c.l.b16 %v244
  %v1034 = vunpack.c.h.b16 %v244
  %v1035 = vunpack.c.l.b16 %v245
  %v1036 = vunpack.c.h.b16 %v245
  %v1037 = vunpack.c.l.b16 %v246
  %v1038 = vunpack.c.h.b16 %v246
  %v1039 = vunpack.c.l.b16 %v247
  %v1040 = vunpack.c.h.b16 %v247
  %v1041 = vunpack.c.l.b16 %v248
  %v1042 = vunpack.c.h.b16 %v248
  %v1043 = vunpack.c.l.b16 %v249
  %v1044 = vunpack.c.h.b16 %v249
  %v1045 = vunpack.c.l.b16 %v250
  %v1046 = vunpack.c.h.b16 %v250
  %v1047 = vunpack.c.l.b16 %v251
  %v1048 = vunpack.c.h.b16 %v251
  %v1049 = vunpack.c.l.b16 %v252
  %v1050 = vunpack.c.h.b16 %v252
  %v1051 = vunpack.c.l.b16 %v253
  %v1052 = vunpack.c.h.b16 %v253
  %v1053 = vunpack.c.l.b16 %v254
  %v1054 = vunpack.c.h.b16 %v254
  %v1055 = vunpack.c.l.b16 %v255
  %v1056 = vunpack.c.h.b16 %v255
  %v1057 = vunpack.c.l.b16 %v256
  %v1058 = vunpack.c.h.b16 %v256
  %v1059 = vunpack.c.l.b16 %v257
  %v1060 = vunpack.c.h.b16 %v257
  %v1061 = vunpack.c.l.b16 %v258
  %v1062 = vunpack.c.h.b16 %v258
  %v1063 = vunpack.c.l.b16 %v259
  %v1064 = vunpack.c.h.b16 %v259
  %v1065 = vunpack.c.l.b16 %v260
  %v1066 = vunpack.c.h.b16 %v260
  %v1067 = vunpack.c.l.b16 %v261
  %v1068 = vunpack.c.h.b16 %v261
  %v1069 = vunpack.c.l.b16 %v262
  %v1070 = vunpack.c.h.b16 %v262
  %v1071 = vunpack.c.l.b16 %v263
  %v1072 = vunpack.c.h.b16 %v263
  %v1073 = vunpack.c.l.b16 %v264
  %v1074 = vunpack.c.h.b16 %v264
  %v1075 = vunpack.c.l.b16 %v265
  %v1076 = vunpack.c.h.b16 %v265
  %v1077 = vunpack.c.l.b16 %v266
  %v1078 = vunpack.c.h.b16 %v266
  %v1079 = vunpack.c.l.b16 %v267
  %v1080 = vunpack.c.h.b16 %v267
  %v1081 = vunpack.c.l.b16 %v268
  %v1082 = vunpack.c.h.b16 %v268
  %v1083 = vunpack.c.l.b16 %v269
  %v1084 = vunpack.c.h.b16 %v269
  %v1085 = vunpack.c.l.b16 %v270
  %v1086 = vunpack.c.h.b16 %v270
  %v1087 = vunpack.c.l.b16 %v271
  %v1088 = vunpack.c.h.b16 %v271
  %v1089 = vunpack.c.l.b16 %v272
  %v1090 = vunpack.c.h.b16 %v272
  %v1091 = vunpack.c.l.b16 %v273
  %v1092 = vunpack.c.h.b16 %v273
  %v1093 = vunpack.c.l.b16 %v274
  %v1094 = vunpack.c.h.b16 %v274
  %v1095 = vunpack.c.l.b16 %v275
  %v1096 = vunpack.c.h.b16 %v275
  %v1097 = vunpack.c.l.b16 %v276
  %v1098 = vunpack.c.h.b16 %v276
  %v1099 = vunpack.c.l.b16 %v277
  %v1100 = vunpack.c.h.b16 %v277
  %v1101 = vunpack.c.l.b16 %v278
  %v1102 = vunpack.c.h.b16 %v278
  %v1103 = vunpack.c.l.b16 %v279
  %v1104 = vunpack.c.h.b16 %v279
  %v1105 = vunpack.c.l.b16 %v280
  %v1106 = vunpack.c.h.b16 %v280
  %v1107 = vunpack.c.l.b16 %v281
  %v1108 = vunpack.c.h.b16 %v281
  %v1109 = vunpack.c.l.b16 %v282
  %v1110 = vunpack.c.h.b16 %v282
  %v1111 = vunpack.c.l.b16 %v283
  %v1112 = vunpack.c.h.b16 %v283
  %v1113 = vunpack.c.l.b16 %v284
  %v1114 = vunpack.c.h.b16 %v284
  %v1115 = vpack.c.b16 %v607, %v603
  %v1116 = vpack.c.b16 %v608, %v604
  %v1117 = vpack.c.b16 %v609, %v605
  %v1118 = vpack.c.b16 %v610, %v606
  %v1119 = vpack.c.b16 %v615, %v611
  %v1120 = vpack.c.b16 %v616, %v612
  %v1121 = vpack.c.b16 %v617, %v613
  %v1122 = vpack.c.b16 %v618, %v614
  %v1123 = vpack.c.b16 %v623, %v619
  %v1124 = vpack.c.b16 %v624, %v620
  %v1125 = vpack.c.b16 %v625, %v621
  %v1126 = vpack.c.b16 %v626, %v622
  %v1127 = vpack.c.b16 %v631, %v627
  %v1128 = vpack.c.b16 %v632, %v628
  %v1129 = vpack.c.b16 %v633, %v629
  %v1130 = vpack.c.b16 %v634, %v630
  %v1131 = vpack.c.b16 %v639, %v635
  %v1132 = vpack.c.b16 %v640, %v636
  %v1133 = vpack.c.b16 %v641, %v637
  %v1134 = vpack.c.b16 %v642, %v638
  %v1135 = vpack.c.b16 %v647, %v643
  %v1136 = vpack.c.b16 %v648, %v644
  %v1137 = vpack.c.b16 %v649, %v645
  %v1138 = vpack.c.b16 %v650, %v646
  %v1139 = vpack.c.b16 %v655, %v651
  %v1140 = vpack.c.b16 %v656, %v652
  %v1141 = vpack.c.b16 %v657, %v653
  %v1142 = vpack.c.b16 %v658, %v654
  %v1143 = vpack.c.b16 %v663, %v659
  %v1144 = vpack.c.b16 %v664, %v660
  %v1145 = vpack.c.b16 %v665, %v661
  %v1146 = vpack.c.b16 %v666, %v662
  %v1147 = vpack.c.b16 %v671, %v667
  %v1148 = vpack.c.b16 %v672, %v668
  %v1149 = vpack.c.b16 %v673, %v669
  %v1150 = vpack.c.b16 %v674, %v670
  %v1151 = vpack.c.b16 %v679, %v675
  %v1152 = vpack.c.b16 %v680, %v676
  %v1153 = vpack.c.b16 %v681, %v677
  %v1154 = vpack.c.b16 %v682, %v678
  %v1155 = vpack.c.b16 %v687, %v683
  %v1156 = vpack.c.b16 %v688, %v684
  %v1157 = vpack.c.b16 %v689, %v685
  %v1158 = vpack.c.b16 %v690, %v686
  %v1159 = vpack.c.b16 %v695, %v691
  %v1160 = vpack.c.b16 %v696, %v692
  %v1161 = vpack.c.b16 %v697, %v693
  %v1162 = vpack.c.b16 %v698, %v694
  %v1163 = vpack.c.b16 %v703, %v699
  %v1164 = vpack.c.b16 %v704, %v700
  %v1165 = vpack.c.b16 %v705, %v701
  %v1166 = vpack.c.b16 %v706, %v702
  %v1167 = vpack.c.b16 %v711, %v707
  %v1168 = vpack.c.b16 %v712, %v708
  %v1169 = vpack.c.b16 %v713, %v709
  %v1170 = vpack.c.b16 %v714, %v710
  %v1171 = vpack.c.b16 %v719, %v715
  %v1172 = vpack.c.b16 %v720, %v716
  %v1173 = vpack.c.b16 %v721, %v717
  %v1174 = vpack.c.b16 %v722, %v718
  %v1175 = vpack.c.b16 %v727, %v723
  %v1176 = vpack.c.b16 %v728, %v724
  %v1177 = vpack.c.b16 %v729, %v725
  %v1178 = vpack.c.b16 %v730, %v726
  %v1179 = vpack.c.b16 %v735, %v731
  %v1180 = vpack.c.b16 %v736, %v732
  %v1181 = vpack.c.b16 %v737, %v733
  %v1182 = vpack.c.b16 %v738, %v734
  %v1183 = vpack.c.b16 %v743, %v739
  %v1184 = vpack.c.b16 %v744, %v740
  %v1185 = vpack.c.b16 %v745, %v741
  %v1186 = vpack.c.b16 %v746, %v742
  %v1187 = vpack.c.b16 %v751, %v747
  %v1188 = vpack.c.b16 %v752, %v748
  %v1189 = vpack.c.b16 %v753, %v749
  %v1190 = vpack.c.b16 %v754, %v750
  %v1191 = vpack.c.b16 %v759, %v755
  %v1192 = vpack.c.b16 %v760, %v756
  %v1193 = vpack.c.b16 %v761, %v757
  %v1194 = vpack.c.b16 %v762, %v758
  %v1195 = vpack.c.b16 %v767, %v763
  %v1196 = vpack.c.b16 %v768, %v764
  %v1197 = vpack.c.b16 %v769, %v765
  %v1198 = vpack.c.b16 %v770, %v766
  %v1199 = vpack.c.b16 %v775, %v771
  %v1200 = vpack.c.b16 %v776, %v772
  %v1201 = vpack.c.b16 %v777, %v773
  %v1202 = vpack.c.b16 %v778, %v774
  %v1203 = vpack.c.b16 %v783, %v779
  %v1204 = vpack.c.b16 %v784, %v780
  %v1205 = vpack.c.b16 %v785, %v781
  %v1206 = vpack.c.b16 %v786, %v782
  %v1207 = vpack.c.b16 %v791, %v787
  %v1208 = vpack.c.b16 %v792, %v788
  %v1209 = vpack.c.b16 %v793, %v789
  %v1210 = vpack.c.b16 %v794, %v790
  %v1211 = vpack.c.b16 %v799, %v795
  %v1212 = vpack.c.b16 %v800, %v796
  %v1213 = vpack.c.b16 %v801, %v797
  %v1214 = vpack.c.b16 %v802, %v798
  %v1215 = vpack.c.b16 %v807, %v803
  %v1216 = vpack.c.b16 %v808, %v804
  %v1217 = vpack.c.b16 %v809, %v805
  %v1218 = vpack.c.b16 %v810, %v806
  %v1219 = vpack.c.b16 %v815, %v811
  %v1220 = vpack.c.b16 %v816, %v812
  %v1221 = vpack.c.b16 %v817, %v813
  %v1222 = vpack.c.b16 %v818, %v814
  %v1223 = vpack.c.b16 %v823, %v819
  %v1224 = vpack.c.b16 %v824, %v820
  %v1225 = vpack.c.b16 %v825, %v821
  %v1226 = vpack.c.b16 %v826, %v822
  %v1227 = vpack.c.b16 %v831, %v827
  %v1228 = vpack.c.b16 %v832, %v828
  %v1229 = vpack.c.b16 %v833, %v829
  %v1230 = vpack.c.b16 %v834, %v830
  %v1231 = vpack.c.b16 %v839, %v835
  %v1232 = vpack.c.b16 %v840, %v836
  %v1233 = vpack.c.b16 %v841, %v837
  %v1234 = vpack.c.b16 %v842, %v838
  %v1235 = vpack.c.b16 %v847, %v843
  %v1236 = vpack.c.b16 %v848, %v844
  %v1237 = vpack.c.b16 %v849, %v845
  %v1238 = vpack.c.b16 %v850, %v846
  %v1239 = vpack.c.b16 %v855, %v851
  %v1240 = vpack.c.b16 %v856, %v852
  %v1241 = vpack.c.b16 %v857, %v853
  %v1242 = vpack.c.b16 %v858, %v854
  %v1243 = vpack.c.b16 %v863, %v859
  %v1244 = vpack.c.b16 %v864, %v860
  %v1245 = vpack.c.b16 %v865, %v861
  %v1246 = vpack.c.b16 %v866, %v862
  %v1247 = vpack.c.b16 %v871, %v867
  %v1248 = vpack.c.b16 %v872, %v868
  %v1249 = vpack.c.b16 %v873, %v869
  %v1250 = vpack.c.b16 %v874, %v870
  %v1251 = vpack.c.b16 %v879, %v875
  %v1252 = vpack.c.b16 %v880, %v876
  %v1253 = vpack.c.b16 %v881, %v877
  %v1254 = vpack.c.b16 %v882, %v878
  %v1255 = vpack.c.b16 %v887, %v883
  %v1256 = vpack.c.b16 %v888, %v884
  %v1257 = vpack.c.b16 %v889, %v885
  %v1258 = vpack.c.b16 %v890, %v886
  %v1259 = vpack.c.b16 %v895, %v891
  %v1260 = vpack.c.b16 %v896, %v892
  %v1261 = vpack.c.b16 %v897, %v893
  %v1262 = vpack.c.b16 %v898, %v894
  %v1263 = vpack.c.b16 %v903, %v899
  %v1264 = vpack.c.b16 %v904, %v900
  %v1265 = vpack.c.b16 %v905, %v901
  %v1266 = vpack.c.b16 %v906, %v902
  %v1267 = vpack.c.b16 %v911, %v907
  %v1268 = vpack.c.b16 %v912, %v908
  %v1269 = vpack.c.b16 %v913, %v909
  %v1270 = vpack.c.b16 %v914, %v910
  %v1271 = vpack.c.b16 %v919, %v915
  %v1272 = vpack.c.b16 %v920, %v916
  %v1273 = vpack.c.b16 %v921, %v917
  %v1274 = vpack.c.b16 %v922, %v918
  %v1275 = vpack.c.b16 %v927, %v923
  %v1276 = vpack.c.b16 %v928, %v924
  %v1277 = vpack.c.b16 %v929, %v925
  %v1278 = vpack.c.b16 %v930, %v926
  %v1279 = vpack.c.b16 %v935, %v931
  %v1280 = vpack.c.b16 %v936, %v932
  %v1281 = vpack.c.b16 %v937, %v933
  %v1282 = vpack.c.b16 %v938, %v934
  %v1283 = vpack.c.b16 %v943, %v939
  %v1284 = vpack.c.b16 %v944, %v940
  %v1285 = vpack.c.b16 %v945, %v941
  %v1286 = vpack.c.b16 %v946, %v942
  %v1287 = vpack.c.b16 %v951, %v947
  %v1288 = vpack.c.b16 %v952, %v948
  %v1289 = vpack.c.b16 %v953, %v949
  %v1290 = vpack.c.b16 %v954, %v950
  %v1291 = vpack.c.b16 %v959, %v955
  %v1292 = vpack.c.b16 %v960, %v956
  %v1293 = vpack.c.b16 %v961, %v957
  %v1294 = vpack.c.b16 %v962, %v958
  %v1295 = vpack.c.b16 %v967, %v963
  %v1296 = vpack.c.b16 %v968, %v964
  %v1297 = vpack.c.b16 %v969, %v965
  %v1298 = vpack.c.b16 %v970, %v966
  %v1299 = vpack.c.b16 %v975, %v971
  %v1300 = vpack.c.b16 %v976, %v972
  %v1301 = vpack.c.b16 %v977, %v973
  %v1302 = vpack.c.b16 %v978, %v974
  %v1303 = vpack.c.b16 %v983, %v979
  %v1304 = vpack.c.b16 %v984, %v980
  %v1305 = vpack.c.b16 %v985, %v981
  %v1306 = vpack.c.b16 %v986, %v982
  %v1307 = vpack.c.b16 %v991, %v987
  %v1308 = vpack.c.b16 %v992, %v988
  %v1309 = vpack.c.b16 %v993, %v989
  %v1310 = vpack.c.b16 %v994, %v990
  %v1311 = vpack.c.b16 %v999, %v995
  %v1312 = vpack.c.b16 %v1000, %v996
  %v1313 = vpack.c.b16 %v1001, %v997
  %v1314 = vpack.c.b16 %v1002, %v998
  %v1315 = vpack.c.b16 %v1007, %v1003
  %v1316 = vpack.c.b16 %v1008, %v1004
  %v1317 = vpack.c.b16 %v1009, %v1005
  %v1318 = vpack.c.b16 %v1010, %v1006
  %v1319 = vpack.c.b16 %v1015, %v1011
  %v1320 = vpack.c.b16 %v1016, %v1012
  %v1321 = vpack.c.b16 %v1017, %v1013
  %v1322 = vpack.c.b16 %v1018, %v1014
  %v1323 = vpack.c.b16 %v1023, %v1019
  %v1324 = vpack.c.b16 %v1024, %v1020
  %v1325 = vpack.c.b16 %v1025, %v1021
  %v1326 = vpack.c.b16 %v1026, %v1022
  %v1327 = vpack.c.b16 %v1031, %v1027
  %v1328 = vpack.c.b16 %v1032, %v1028
  %v1329 = vpack.c.b16 %v1033, %v1029
  %v1330 = vpack.c.b16 %v1034, %v1030
  %v1331 = vpack.c.b16 %v1039, %v1035
  %v1332 = vpack.c.b16 %v1040, %v1036
  %v1333 = vpack.c.b16 %v1041, %v1037
  %v1334 = vpack.c.b16 %v1042, %v1038
  %v1335 = vpack.c.b16 %v1047, %v1043
  %v1336 = vpack.c.b16 %v1048, %v1044
  %v1337 = vpack.c.b16 %v1049, %v1045
  %v1338 = vpack.c.b16 %v1050, %v1046
  %v1339 = vpack.c.b16 %v1055, %v1051
  %v1340 = vpack.c.b16 %v1056, %v1052
  %v1341 = vpack.c.b16 %v1057, %v1053
  %v1342 = vpack.c.b16 %v1058, %v1054
  %v1343 = vpack.c.b16 %v1063, %v1059
  %v1344 = vpack.c.b16 %v1064, %v1060
  %v1345 = vpack.c.b16 %v1065, %v1061
  %v1346 = vpack.c.b16 %v1066, %v1062
  %v1347 = vpack.c.b16 %v1071, %v1067
  %v1348 = vpack.c.b16 %v1072, %v1068
  %v1349 = vpack.c.b16 %v1073, %v1069
  %v1350 = vpack.c.b16 %v1074, %v1070
  %v1351 = vpack.c.b16 %v1079, %v1075
  %v1352 = vpack.c.b16 %v1080, %v1076
  %v1353 = vpack.c.b16 %v1081, %v1077
  %v1354 = vpack.c.b16 %v1082, %v1078
  %v1355 = vpack.c.b16 %v1087, %v1083
  %v1356 = vpack.c.b16 %v1088, %v1084
  %v1357 = vpack.c.b16 %v1089, %v1085
  %v1358 = vpack.c.b16 %v1090, %v1086
  %v1359 = vpack.c.b16 %v1095, %v1091
  %v1360 = vpack.c.b16 %v1096, %v1092
  %v1361 = vpack.c.b16 %v1097, %v1093
  %v1362 = vpack.c.b16 %v1098, %v1094
  %v1363 = vpack.c.b16 %v1103, %v1099
  %v1364 = vpack.c.b16 %v1104, %v1100
  %v1365 = vpack.c.b16 %v1105, %v1101
  %v1366 = vpack.c.b16 %v1106, %v1102
  %v1367 = vpack.c.b16 %v1111, %v1107
  %v1368 = vpack.c.b16 %v1112, %v1108
  %v1369 = vpack.c.b16 %v1113, %v1109
  %v1370 = vpack.c.b16 %v1114, %v1110
  %1627 = vmatprep.subr.bf16.mxu0 %v1144
  %1628 = vmatpush1.bf16.msra.mxu0 %v1143
  %1629 = vmatprep.subr.bf16.mxu0 %v1140
  %1630 = vmatpush1.bf16.msra.mxu0 %v1139
  %1631 = vmatprep.subr.bf16.mxu0 %v1136
  %1632 = vmatpush1.bf16.msra.mxu0 %v1135
  %1633 = vmatprep.subr.bf16.mxu0 %v1132
  %1634 = vmatpush1.bf16.msra.mxu0 %v1131
  %1635 = vmatprep.subr.bf16.mxu0 %v1128
  %1636 = vmatpush1.bf16.msra.mxu0 %v1127
  %1637 = vmatprep.subr.bf16.mxu0 %v1124
  %1638 = vmatpush1.bf16.msra.mxu0 %v1123
  %1639 = vmatprep.subr.bf16.mxu0 %v1120
  %1640 = vmatpush1.bf16.msra.mxu0 %v1119
  %1641 = vmatprep.subr.bf16.mxu0 %v1116
  %1642 = vmatpush1.bf16.msra.mxu0 %v1115
  %1643 = vmatprep.subr.bf16.mxu0 %v1176
  %1644 = vmatpush2.bf16.msra.mxu0 %v1175
  %1645 = vmatprep.subr.bf16.mxu0 %v1172
  %1646 = vmatpush2.bf16.msra.mxu0 %v1171
  %1647 = vmatprep.subr.bf16.mxu0 %v1168
  %1648 = vmatpush2.bf16.msra.mxu0 %v1167
  %1649 = vmatprep.subr.bf16.mxu0 %v1164
  %1650 = vmatpush2.bf16.msra.mxu0 %v1163
  %1651 = vmatprep.subr.bf16.mxu0 %v1160
  %1652 = vmatpush2.bf16.msra.mxu0 %v1159
  %1653 = vmatprep.subr.bf16.mxu0 %v1156
  %1654 = vmatpush2.bf16.msra.mxu0 %v1155
  %1655 = vmatprep.subr.bf16.mxu0 %v1152
  %1656 = vmatpush2.bf16.msra.mxu0 %v1151
  %1657 = vmatprep.subr.bf16.mxu0 %v1148
  %1658 = vmatpush2.bf16.msra.mxu0 %v1147
  %1659 = vmatprep.mubr.bf16.mxu0 %v332
  %1660 = vmatmul.mubr.bf16.gmra.mxu0 %v331
  %v1661 = vpop.f32.mrf.mxu0
  %v1662 = vadd.f32 %v290, %v1661
  %v1663 = vpop.f32.mrf.mxu0
  %v1664 = vadd.f32 %v294, %v1663
  %v1665 = vpop.f32.mrf.mxu0
  %v1666 = vadd.f32 %v290, %v1665
  %v1667 = vpop.f32.mrf.mxu0
  %v1668 = vadd.f32 %v294, %v1667
  %1669 = vdwg.mxu0
  %1670 = vmatprep.subr.bf16.mxu0 %v1208
  %1671 = vmatpush1.bf16.msra.mxu0 %v1207
  %1672 = vmatprep.subr.bf16.mxu0 %v1204
  %1673 = vmatpush1.bf16.msra.mxu0 %v1203
  %1674 = vmatprep.subr.bf16.mxu0 %v1200
  %1675 = vmatpush1.bf16.msra.mxu0 %v1199
  %1676 = vmatprep.subr.bf16.mxu0 %v1196
  %1677 = vmatpush1.bf16.msra.mxu0 %v1195
  %1678 = vmatprep.subr.bf16.mxu0 %v1192
  %1679 = vmatpush1.bf16.msra.mxu0 %v1191
  %1680 = vmatprep.subr.bf16.mxu0 %v1188
  %1681 = vmatpush1.bf16.msra.mxu0 %v1187
  %1682 = vmatprep.subr.bf16.mxu0 %v1184
  %1683 = vmatpush1.bf16.msra.mxu0 %v1183
  %1684 = vmatprep.subr.bf16.mxu0 %v1180
  %1685 = vmatpush1.bf16.msra.mxu0 %v1179
  %1686 = vmatprep.subr.bf16.mxu0 %v1240
  %1687 = vmatpush2.bf16.msra.mxu0 %v1239
  %1688 = vmatprep.subr.bf16.mxu0 %v1236
  %1689 = vmatpush2.bf16.msra.mxu0 %v1235
  %1690 = vmatprep.subr.bf16.mxu0 %v1232
  %1691 = vmatpush2.bf16.msra.mxu0 %v1231
  %1692 = vmatprep.subr.bf16.mxu0 %v1228
  %1693 = vmatpush2.bf16.msra.mxu0 %v1227
  %1694 = vmatprep.subr.bf16.mxu0 %v1224
  %1695 = vmatpush2.bf16.msra.mxu0 %v1223
  %1696 = vmatprep.subr.bf16.mxu0 %v1220
  %1697 = vmatpush2.bf16.msra.mxu0 %v1219
  %1698 = vmatprep.subr.bf16.mxu0 %v1216
  %1699 = vmatpush2.bf16.msra.mxu0 %v1215
  %1700 = vmatprep.subr.bf16.mxu0 %v1212
  %1701 = vmatpush2.bf16.msra.mxu0 %v1211
  %1702 = vmatprep.mubr.bf16.mxu0 %v334
  %1703 = vmatmul.mubr.bf16.gmra.mxu0 %v333
  %v1704 = vpop.f32.mrf.mxu0
  %v1705 = vadd.f32 %v1662, %v1704
  %v1706 = vpop.f32.mrf.mxu0
  %v1707 = vadd.f32 %v1664, %v1706
  %v1708 = vpop.f32.mrf.mxu0
  %v1709 = vadd.f32 %v1666, %v1708
  %v1710 = vpop.f32.mrf.mxu0
  %v1711 = vadd.f32 %v1668, %v1710
  %1712 = vdwg.mxu0
  %1713 = vmatprep.subr.bf16.mxu0 %v1272
  %1714 = vmatpush1.bf16.msra.mxu0 %v1271
  %1715 = vmatprep.subr.bf16.mxu0 %v1268
  %1716 = vmatpush1.bf16.msra.mxu0 %v1267
  %1717 = vmatprep.subr.bf16.mxu0 %v1264
  %1718 = vmatpush1.bf16.msra.mxu0 %v1263
  %1719 = vmatprep.subr.bf16.mxu0 %v1260
  %1720 = vmatpush1.bf16.msra.mxu0 %v1259
  %1721 = vmatprep.subr.bf16.mxu0 %v1256
  %1722 = vmatpush1.bf16.msra.mxu0 %v1255
  %1723 = vmatprep.subr.bf16.mxu0 %v1252
  %1724 = vmatpush1.bf16.msra.mxu0 %v1251
  %1725 = vmatprep.subr.bf16.mxu0 %v1248
  %1726 = vmatpush1.bf16.msra.mxu0 %v1247
  %1727 = vmatprep.subr.bf16.mxu0 %v1244
  %1728 = vmatpush1.bf16.msra.mxu0 %v1243
  %1729 = vmatprep.subr.bf16.mxu0 %v1304
  %1730 = vmatpush2.bf16.msra.mxu0 %v1303
  %1731 = vmatprep.subr.bf16.mxu0 %v1300
  %1732 = vmatpush2.bf16.msra.mxu0 %v1299
  %1733 = vmatprep.subr.bf16.mxu0 %v1296
  %1734 = vmatpush2.bf16.msra.mxu0 %v1295
  %1735 = vmatprep.subr.bf16.mxu0 %v1292
  %1736 = vmatpush2.bf16.msra.mxu0 %v1291
  %1737 = vmatprep.subr.bf16.mxu0 %v1288
  %1738 = vmatpush2.bf16.msra.mxu0 %v1287
  %1739 = vmatprep.subr.bf16.mxu0 %v1284
  %1740 = vmatpush2.bf16.msra.mxu0 %v1283
  %1741 = vmatprep.subr.bf16.mxu0 %v1280
  %1742 = vmatpush2.bf16.msra.mxu0 %v1279
  %1743 = vmatprep.subr.bf16.mxu0 %v1276
  %1744 = vmatpush2.bf16.msra.mxu0 %v1275
  %1745 = vmatprep.mubr.bf16.mxu0 %v336
  %1746 = vmatmul.mubr.bf16.gmra.mxu0 %v335
  %v1747 = vpop.f32.mrf.mxu0
  %v1748 = vadd.f32 %v1705, %v1747
  %v1749 = vpop.f32.mrf.mxu0
  %v1750 = vadd.f32 %v1707, %v1749
  %v1751 = vpop.f32.mrf.mxu0
  %v1752 = vadd.f32 %v1709, %v1751
  %v1753 = vpop.f32.mrf.mxu0
  %v1754 = vadd.f32 %v1711, %v1753
  %1755 = vdwg.mxu0
  %1756 = vmatprep.subr.bf16.mxu0 %v1336
  %1757 = vmatpush1.bf16.msra.mxu0 %v1335
  %1758 = vmatprep.subr.bf16.mxu0 %v1332
  %1759 = vmatpush1.bf16.msra.mxu0 %v1331
  %1760 = vmatprep.subr.bf16.mxu0 %v1328
  %1761 = vmatpush1.bf16.msra.mxu0 %v1327
  %1762 = vmatprep.subr.bf16.mxu0 %v1324
  %1763 = vmatpush1.bf16.msra.mxu0 %v1323
  %1764 = vmatprep.subr.bf16.mxu0 %v1320
  %1765 = vmatpush1.bf16.msra.mxu0 %v1319
  %1766 = vmatprep.subr.bf16.mxu0 %v1316
  %1767 = vmatpush1.bf16.msra.mxu0 %v1315
  %1768 = vmatprep.subr.bf16.mxu0 %v1312
  %1769 = vmatpush1.bf16.msra.mxu0 %v1311
  %1770 = vmatprep.subr.bf16.mxu0 %v1308
  %1771 = vmatpush1.bf16.msra.mxu0 %v1307
  %1772 = vmatprep.subr.bf16.mxu0 %v1368
  %1773 = vmatpush2.bf16.msra.mxu0 %v1367
  %1774 = vmatprep.subr.bf16.mxu0 %v1364
  %1775 = vmatpush2.bf16.msra.mxu0 %v1363
  %1776 = vmatprep.subr.bf16.mxu0 %v1360
  %1777 = vmatpush2.bf16.msra.mxu0 %v1359
  %1778 = vmatprep.subr.bf16.mxu0 %v1356
  %1779 = vmatpush2.bf16.msra.mxu0 %v1355
  %1780 = vmatprep.subr.bf16.mxu0 %v1352
  %1781 = vmatpush2.bf16.msra.mxu0 %v1351
  %1782 = vmatprep.subr.bf16.mxu0 %v1348
  %1783 = vmatpush2.bf16.msra.mxu0 %v1347
  %1784 = vmatprep.subr.bf16.mxu0 %v1344
  %1785 = vmatpush2.bf16.msra.mxu0 %v1343
  %1786 = vmatprep.subr.bf16.mxu0 %v1340
  %1787 = vmatpush2.bf16.msra.mxu0 %v1339
  %1788 = vmatprep.mubr.bf16.mxu0 %v338
  %1789 = vmatmul.mubr.bf16.gmra.mxu0 %v337
  %v1790 = vpop.f32.mrf.mxu0
  %v1791 = vadd.f32 %v1748, %v1790
  %v1792 = vpop.f32.mrf.mxu0
  %v1793 = vadd.f32 %v1750, %v1792
  %v1794 = vpop.f32.mrf.mxu0
  %v1795 = vadd.f32 %v1752, %v1794
  %v1796 = vpop.f32.mrf.mxu0
  %v1797 = vadd.f32 %v1754, %v1796
  %1798 = vdwg.mxu0
  %1799 = vmatprep.subr.bf16.mxu0 %v1146
  %1800 = vmatpush1.bf16.msra.mxu0 %v1145
  %1801 = vmatprep.subr.bf16.mxu0 %v1142
  %1802 = vmatpush1.bf16.msra.mxu0 %v1141
  %1803 = vmatprep.subr.bf16.mxu0 %v1138
  %1804 = vmatpush1.bf16.msra.mxu0 %v1137
  %1805 = vmatprep.subr.bf16.mxu0 %v1134
  %1806 = vmatpush1.bf16.msra.mxu0 %v1133
  %1807 = vmatprep.subr.bf16.mxu0 %v1130
  %1808 = vmatpush1.bf16.msra.mxu0 %v1129
  %1809 = vmatprep.subr.bf16.mxu0 %v1126
  %1810 = vmatpush1.bf16.msra.mxu0 %v1125
  %1811 = vmatprep.subr.bf16.mxu0 %v1122
  %1812 = vmatpush1.bf16.msra.mxu0 %v1121
  %1813 = vmatprep.subr.bf16.mxu0 %v1118
  %1814 = vmatpush1.bf16.msra.mxu0 %v1117
  %1815 = vmatprep.subr.bf16.mxu0 %v1178
  %1816 = vmatpush2.bf16.msra.mxu0 %v1177
  %1817 = vmatprep.subr.bf16.mxu0 %v1174
  %1818 = vmatpush2.bf16.msra.mxu0 %v1173
  %1819 = vmatprep.subr.bf16.mxu0 %v1170
  %1820 = vmatpush2.bf16.msra.mxu0 %v1169
  %1821 = vmatprep.subr.bf16.mxu0 %v1166
  %1822 = vmatpush2.bf16.msra.mxu0 %v1165
  %1823 = vmatprep.subr.bf16.mxu0 %v1162
  %1824 = vmatpush2.bf16.msra.mxu0 %v1161
  %1825 = vmatprep.subr.bf16.mxu0 %v1158
  %1826 = vmatpush2.bf16.msra.mxu0 %v1157
  %1827 = vmatprep.subr.bf16.mxu0 %v1154
  %1828 = vmatpush2.bf16.msra.mxu0 %v1153
  %1829 = vmatprep.subr.bf16.mxu0 %v1150
  %1830 = vmatpush2.bf16.msra.mxu0 %v1149
  %1831 = vmatprep.mubr.bf16.mxu0 %v332
  %1832 = vmatmul.mubr.bf16.gmra.mxu0 %v331
  %v1833 = vpop.f32.mrf.mxu0
  %v1834 = vadd.f32 %v298, %v1833
  %v1835 = vpop.f32.mrf.mxu0
  %v1836 = vadd.f32 %v302, %v1835
  %v1837 = vpop.f32.mrf.mxu0
  %v1838 = vadd.f32 %v298, %v1837
  %v1839 = vpop.f32.mrf.mxu0
  %v1840 = vadd.f32 %v302, %v1839
  %1841 = vdwg.mxu0
  %1842 = vmatprep.subr.bf16.mxu0 %v1210
  %1843 = vmatpush1.bf16.msra.mxu0 %v1209
  %1844 = vmatprep.subr.bf16.mxu0 %v1206
  %1845 = vmatpush1.bf16.msra.mxu0 %v1205
  %1846 = vmatprep.subr.bf16.mxu0 %v1202
  %1847 = vmatpush1.bf16.msra.mxu0 %v1201
  %1848 = vmatprep.subr.bf16.mxu0 %v1198
  %1849 = vmatpush1.bf16.msra.mxu0 %v1197
  %1850 = vmatprep.subr.bf16.mxu0 %v1194
  %1851 = vmatpush1.bf16.msra.mxu0 %v1193
  %1852 = vmatprep.subr.bf16.mxu0 %v1190
  %1853 = vmatpush1.bf16.msra.mxu0 %v1189
  %1854 = vmatprep.subr.bf16.mxu0 %v1186
  %1855 = vmatpush1.bf16.msra.mxu0 %v1185
  %1856 = vmatprep.subr.bf16.mxu0 %v1182
  %1857 = vmatpush1.bf16.msra.mxu0 %v1181
  %1858 = vmatprep.subr.bf16.mxu0 %v1242
  %1859 = vmatpush2.bf16.msra.mxu0 %v1241
  %1860 = vmatprep.subr.bf16.mxu0 %v1238
  %1861 = vmatpush2.bf16.msra.mxu0 %v1237
  %1862 = vmatprep.subr.bf16.mxu0 %v1234
  %1863 = vmatpush2.bf16.msra.mxu0 %v1233
  %1864 = vmatprep.subr.bf16.mxu0 %v1230
  %1865 = vmatpush2.bf16.msra.mxu0 %v1229
  %1866 = vmatprep.subr.bf16.mxu0 %v1226
  %1867 = vmatpush2.bf16.msra.mxu0 %v1225
  %1868 = vmatprep.subr.bf16.mxu0 %v1222
  %1869 = vmatpush2.bf16.msra.mxu0 %v1221
  %1870 = vmatprep.subr.bf16.mxu0 %v1218
  %1871 = vmatpush2.bf16.msra.mxu0 %v1217
  %1872 = vmatprep.subr.bf16.mxu0 %v1214
  %1873 = vmatpush2.bf16.msra.mxu0 %v1213
  %1874 = vmatprep.mubr.bf16.mxu0 %v334
  %1875 = vmatmul.mubr.bf16.gmra.mxu0 %v333
  %v1876 = vpop.f32.mrf.mxu0
  %v1877 = vadd.f32 %v1834, %v1876
  %v1878 = vpop.f32.mrf.mxu0
  %v1879 = vadd.f32 %v1836, %v1878
  %v1880 = vpop.f32.mrf.mxu0
  %v1881 = vadd.f32 %v1838, %v1880
  %v1882 = vpop.f32.mrf.mxu0
  %v1883 = vadd.f32 %v1840, %v1882
  %1884 = vdwg.mxu0
  %1885 = vmatprep.subr.bf16.mxu0 %v1274
  %1886 = vmatpush1.bf16.msra.mxu0 %v1273
  %1887 = vmatprep.subr.bf16.mxu0 %v1270
  %1888 = vmatpush1.bf16.msra.mxu0 %v1269
  %1889 = vmatprep.subr.bf16.mxu0 %v1266
  %1890 = vmatpush1.bf16.msra.mxu0 %v1265
  %1891 = vmatprep.subr.bf16.mxu0 %v1262
  %1892 = vmatpush1.bf16.msra.mxu0 %v1261
  %1893 = vmatprep.subr.bf16.mxu0 %v1258
  %1894 = vmatpush1.bf16.msra.mxu0 %v1257
  %1895 = vmatprep.subr.bf16.mxu0 %v1254
  %1896 = vmatpush1.bf16.msra.mxu0 %v1253
  %1897 = vmatprep.subr.bf16.mxu0 %v1250
  %1898 = vmatpush1.bf16.msra.mxu0 %v1249
  %1899 = vmatprep.subr.bf16.mxu0 %v1246
  %1900 = vmatpush1.bf16.msra.mxu0 %v1245
  %1901 = vmatprep.subr.bf16.mxu0 %v1306
  %1902 = vmatpush2.bf16.msra.mxu0 %v1305
  %1903 = vmatprep.subr.bf16.mxu0 %v1302
  %1904 = vmatpush2.bf16.msra.mxu0 %v1301
  %1905 = vmatprep.subr.bf16.mxu0 %v1298
  %1906 = vmatpush2.bf16.msra.mxu0 %v1297
  %1907 = vmatprep.subr.bf16.mxu0 %v1294
  %1908 = vmatpush2.bf16.msra.mxu0 %v1293
  %1909 = vmatprep.subr.bf16.mxu0 %v1290
  %1910 = vmatpush2.bf16.msra.mxu0 %v1289
  %1911 = vmatprep.subr.bf16.mxu0 %v1286
  %1912 = vmatpush2.bf16.msra.mxu0 %v1285
  %1913 = vmatprep.subr.bf16.mxu0 %v1282
  %1914 = vmatpush2.bf16.msra.mxu0 %v1281
  %1915 = vmatprep.subr.bf16.mxu0 %v1278
  %1916 = vmatpush2.bf16.msra.mxu0 %v1277
  %1917 = vmatprep.mubr.bf16.mxu0 %v336
  %1918 = vmatmul.mubr.bf16.gmra.mxu0 %v335
  %v1919 = vpop.f32.mrf.mxu0
  %v1920 = vadd.f32 %v1877, %v1919
  %v1921 = vpop.f32.mrf.mxu0
  %v1922 = vadd.f32 %v1879, %v1921
  %v1923 = vpop.f32.mrf.mxu0
  %v1924 = vadd.f32 %v1881, %v1923
  %v1925 = vpop.f32.mrf.mxu0
  %v1926 = vadd.f32 %v1883, %v1925
  %1927 = vdwg.mxu0
  %1928 = vmatprep.subr.bf16.mxu0 %v1338
  %1929 = vmatpush1.bf16.msra.mxu0 %v1337
  %1930 = vmatprep.subr.bf16.mxu0 %v1334
  %1931 = vmatpush1.bf16.msra.mxu0 %v1333
  %1932 = vmatprep.subr.bf16.mxu0 %v1330
  %1933 = vmatpush1.bf16.msra.mxu0 %v1329
  %1934 = vmatprep.subr.bf16.mxu0 %v1326
  %1935 = vmatpush1.bf16.msra.mxu0 %v1325
  %1936 = vmatprep.subr.bf16.mxu0 %v1322
  %1937 = vmatpush1.bf16.msra.mxu0 %v1321
  %1938 = vmatprep.subr.bf16.mxu0 %v1318
  %1939 = vmatpush1.bf16.msra.mxu0 %v1317
  %1940 = vmatprep.subr.bf16.mxu0 %v1314
  %1941 = vmatpush1.bf16.msra.mxu0 %v1313
  %1942 = vmatprep.subr.bf16.mxu0 %v1310
  %1943 = vmatpush1.bf16.msra.mxu0 %v1309
  %1944 = vmatprep.subr.bf16.mxu0 %v1370
  %1945 = vmatpush2.bf16.msra.mxu0 %v1369
  %1946 = vmatprep.subr.bf16.mxu0 %v1366
  %1947 = vmatpush2.bf16.msra.mxu0 %v1365
  %1948 = vmatprep.subr.bf16.mxu0 %v1362
  %1949 = vmatpush2.bf16.msra.mxu0 %v1361
  %1950 = vmatprep.subr.bf16.mxu0 %v1358
  %1951 = vmatpush2.bf16.msra.mxu0 %v1357
  %1952 = vmatprep.subr.bf16.mxu0 %v1354
  %1953 = vmatpush2.bf16.msra.mxu0 %v1353
  %1954 = vmatprep.subr.bf16.mxu0 %v1350
  %1955 = vmatpush2.bf16.msra.mxu0 %v1349
  %1956 = vmatprep.subr.bf16.mxu0 %v1346
  %1957 = vmatpush2.bf16.msra.mxu0 %v1345
  %1958 = vmatprep.subr.bf16.mxu0 %v1342
  %1959 = vmatpush2.bf16.msra.mxu0 %v1341
  %1960 = vmatprep.mubr.bf16.mxu0 %v338
  %1961 = vmatmul.mubr.bf16.gmra.mxu0 %v337
  %v1962 = vpop.f32.mrf.mxu0
  %v1963 = vadd.f32 %v1920, %v1962
  %v1964 = vpop.f32.mrf.mxu0
  %v1965 = vadd.f32 %v1922, %v1964
  %v1966 = vpop.f32.mrf.mxu0
  %v1967 = vadd.f32 %v1924, %v1966
  %v1968 = vpop.f32.mrf.mxu0
  %v1969 = vadd.f32 %v1926, %v1968
  %1970 = vdwg.mxu0
  %v1971 = vmax.f32 %v1791, 0.0
  %v1972 = vmax.f32 %v1793, 0.0
  %v1973 = vmax.f32 %v1963, 0.0
  %v1974 = vmax.f32 %v1965, 0.0
  %v1975 = vmax.f32 %v1795, 0.0
  %v1976 = vmax.f32 %v1797, 0.0
  %v1977 = vmax.f32 %v1967, 0.0
  %v1978 = vmax.f32 %v1969, 0.0
  %v1979 = vpack.c.bf16 %v1975, %v1971
  %v1980 = vpack.c.bf16 %v1976, %v1972
  %v1981 = vpack.c.bf16 %v1977, %v1973
  %v1982 = vpack.c.bf16 %v1978, %v1974
  %v1983 = vld [vmem:[%s3] sm:$0xf]
  %v1984 = vld [vmem:[%s3 + $0x4] sm:$0xf]
  %v1985 = vld [vmem:[%s3 + $0x8] sm:$0xf]
  %v1986 = vld [vmem:[%s3 + $0xc] sm:$0xf]
  %v1987 = vld [vmem:[%s3 + $0x10] sm:$0xf]
  %v1988 = vld [vmem:[%s3 + $0x14] sm:$0xf]
  %v1989 = vld [vmem:[%s3 + $0x18] sm:$0xf]
  %v1990 = vld [vmem:[%s3 + $0x1c] sm:$0xf]
  %v1991 = vld [vmem:[%s3 + $0x20] sm:$0xf]
  %v1992 = vld [vmem:[%s3 + $0x24] sm:$0xf]
  %v1993 = vld [vmem:[%s3 + $0x28] sm:$0xf]
  %v1994 = vld [vmem:[%s3 + $0x2c] sm:$0xf]
  %v1995 = vld [vmem:[%s3 + $0x30] sm:$0xf]
  %v1996 = vld [vmem:[%s3 + $0x34] sm:$0xf]
  %v1997 = vld [vmem:[%s3 + $0x38] sm:$0xf]
  %v1998 = vld [vmem:[%s3 + $0x3c] sm:$0xf]
  %v1999 = vld [vmem:[%s3 + $0x40] sm:$0xf]
  %v2000 = vld [vmem:[%s3 + $0x44] sm:$0xf]
  %v2001 = vld [vmem:[%s3 + $0x48] sm:$0xf]
  %v2002 = vld [vmem:[%s3 + $0x4c] sm:$0xf]
  %v2003 = vld [vmem:[%s3 + $0x50] sm:$0xf]
  %v2004 = vld [vmem:[%s3 + $0x54] sm:$0xf]
  %v2005 = vld [vmem:[%s3 + $0x58] sm:$0xf]
  %v2006 = vld [vmem:[%s3 + $0x5c] sm:$0xf]
  %v2007 = vld [vmem:[%s3 + $0x60] sm:$0xf]
  %v2008 = vld [vmem:[%s3 + $0x64] sm:$0xf]
  %v2009 = vld [vmem:[%s3 + $0x68] sm:$0xf]
  %v2010 = vld [vmem:[%s3 + $0x6c] sm:$0xf]
  %v2011 = vld [vmem:[%s3 + $0x70] sm:$0xf]
  %v2012 = vld [vmem:[%s3 + $0x74] sm:$0xf]
  %v2013 = vld [vmem:[%s3 + $0x78] sm:$0xf]
  %v2014 = vld [vmem:[%s3 + $0x7c] sm:$0xf]
  %v2015 = vld [vmem:[%s3 + $0x80] sm:$0xf]
  %v2016 = vld [vmem:[%s3 + $0x84] sm:$0xf]
  %v2017 = vld [vmem:[%s3 + $0x88] sm:$0xf]
  %v2018 = vld [vmem:[%s3 + $0x8c] sm:$0xf]
  %v2019 = vld [vmem:[%s3 + $0x90] sm:$0xf]
  %v2020 = vld [vmem:[%s3 + $0x94] sm:$0xf]
  %v2021 = vld [vmem:[%s3 + $0x98] sm:$0xf]
  %v2022 = vld [vmem:[%s3 + $0x9c] sm:$0xf]
  %v2023 = vld [vmem:[%s3 + $0xa0] sm:$0xf]
  %v2024 = vld [vmem:[%s3 + $0xa4] sm:$0xf]
  %v2025 = vld [vmem:[%s3 + $0xa8] sm:$0xf]
  %v2026 = vld [vmem:[%s3 + $0xac] sm:$0xf]
  %v2027 = vld [vmem:[%s3 + $0xb0] sm:$0xf]
  %v2028 = vld [vmem:[%s3 + $0xb4] sm:$0xf]
  %v2029 = vld [vmem:[%s3 + $0xb8] sm:$0xf]
  %v2030 = vld [vmem:[%s3 + $0xbc] sm:$0xf]
  %v2031 = vld [vmem:[%s3 + $0xc0] sm:$0xf]
  %v2032 = vld [vmem:[%s3 + $0xc4] sm:$0xf]
  %v2033 = vld [vmem:[%s3 + $0xc8] sm:$0xf]
  %v2034 = vld [vmem:[%s3 + $0xcc] sm:$0xf]
  %v2035 = vld [vmem:[%s3 + $0xd0] sm:$0xf]
  %v2036 = vld [vmem:[%s3 + $0xd4] sm:$0xf]
  %v2037 = vld [vmem:[%s3 + $0xd8] sm:$0xf]
  %v2038 = vld [vmem:[%s3 + $0xdc] sm:$0xf]
  %v2039 = vld [vmem:[%s3 + $0xe0] sm:$0xf]
  %v2040 = vld [vmem:[%s3 + $0xe4] sm:$0xf]
  %v2041 = vld [vmem:[%s3 + $0xe8] sm:$0xf]
  %v2042 = vld [vmem:[%s3 + $0xec] sm:$0xf]
  %v2043 = vld [vmem:[%s3 + $0xf0] sm:$0xf]
  %v2044 = vld [vmem:[%s3 + $0xf4] sm:$0xf]
  %v2045 = vld [vmem:[%s3 + $0xf8] sm:$0xf]
  %v2046 = vld [vmem:[%s3 + $0xfc] sm:$0xf]
  %v2047 = vld [vmem:[%s4] sm:$0x1]
  %v2049 = vlaneseq
  %v2050 = vshrl.u32 %v2049, 7
  %v2051 = vsub.s32 0, %v2050
  %v2052 = vrot.slane %v2047, %v2051
  %v2118 = vunpack.c.l.b16 %v1983
  %v2119 = vunpack.c.l.b16 %v1984
  %v2120 = vunpack.c.l.b16 %v1985
  %v2121 = vunpack.c.l.b16 %v1986
  %v2122 = vunpack.c.l.b16 %v1987
  %v2123 = vunpack.c.l.b16 %v1988
  %v2124 = vunpack.c.l.b16 %v1989
  %v2125 = vunpack.c.l.b16 %v1990
  %v2126 = vunpack.c.l.b16 %v1991
  %v2127 = vunpack.c.l.b16 %v1992
  %v2128 = vunpack.c.l.b16 %v1993
  %v2129 = vunpack.c.l.b16 %v1994
  %v2130 = vunpack.c.l.b16 %v1995
  %v2131 = vunpack.c.l.b16 %v1996
  %v2132 = vunpack.c.l.b16 %v1997
  %v2133 = vunpack.c.l.b16 %v1998
  %v2134 = vunpack.c.l.b16 %v1999
  %v2135 = vunpack.c.l.b16 %v2000
  %v2136 = vunpack.c.l.b16 %v2001
  %v2137 = vunpack.c.l.b16 %v2002
  %v2138 = vunpack.c.l.b16 %v2003
  %v2139 = vunpack.c.l.b16 %v2004
  %v2140 = vunpack.c.l.b16 %v2005
  %v2141 = vunpack.c.l.b16 %v2006
  %v2142 = vunpack.c.l.b16 %v2007
  %v2143 = vunpack.c.l.b16 %v2008
  %v2144 = vunpack.c.l.b16 %v2009
  %v2145 = vunpack.c.l.b16 %v2010
  %v2146 = vunpack.c.l.b16 %v2011
  %v2147 = vunpack.c.l.b16 %v2012
  %v2148 = vunpack.c.l.b16 %v2013
  %v2149 = vunpack.c.l.b16 %v2014
  %v2150 = vunpack.c.l.b16 %v2015
  %v2151 = vunpack.c.l.b16 %v2016
  %v2152 = vunpack.c.l.b16 %v2017
  %v2153 = vunpack.c.l.b16 %v2018
  %v2154 = vunpack.c.l.b16 %v2019
  %v2155 = vunpack.c.l.b16 %v2020
  %v2156 = vunpack.c.l.b16 %v2021
  %v2157 = vunpack.c.l.b16 %v2022
  %v2158 = vunpack.c.l.b16 %v2023
  %v2159 = vunpack.c.l.b16 %v2024
  %v2160 = vunpack.c.l.b16 %v2025
  %v2161 = vunpack.c.l.b16 %v2026
  %v2162 = vunpack.c.l.b16 %v2027
  %v2163 = vunpack.c.l.b16 %v2028
  %v2164 = vunpack.c.l.b16 %v2029
  %v2165 = vunpack.c.l.b16 %v2030
  %v2166 = vunpack.c.l.b16 %v2031
  %v2167 = vunpack.c.l.b16 %v2032
  %v2168 = vunpack.c.l.b16 %v2033
  %v2169 = vunpack.c.l.b16 %v2034
  %v2170 = vunpack.c.l.b16 %v2035
  %v2171 = vunpack.c.l.b16 %v2036
  %v2172 = vunpack.c.l.b16 %v2037
  %v2173 = vunpack.c.l.b16 %v2038
  %v2174 = vunpack.c.l.b16 %v2039
  %v2175 = vunpack.c.l.b16 %v2040
  %v2176 = vunpack.c.l.b16 %v2041
  %v2177 = vunpack.c.l.b16 %v2042
  %v2178 = vunpack.c.l.b16 %v2043
  %v2179 = vunpack.c.l.b16 %v2044
  %v2180 = vunpack.c.l.b16 %v2045
  %v2181 = vunpack.c.l.b16 %v2046
  %v2182 = vpack.c.b16 %v2119, %v2118
  %v2183 = vpack.c.b16 %v2121, %v2120
  %v2184 = vpack.c.b16 %v2123, %v2122
  %v2185 = vpack.c.b16 %v2125, %v2124
  %v2186 = vpack.c.b16 %v2127, %v2126
  %v2187 = vpack.c.b16 %v2129, %v2128
  %v2188 = vpack.c.b16 %v2131, %v2130
  %v2189 = vpack.c.b16 %v2133, %v2132
  %v2190 = vpack.c.b16 %v2135, %v2134
  %v2191 = vpack.c.b16 %v2137, %v2136
  %v2192 = vpack.c.b16 %v2139, %v2138
  %v2193 = vpack.c.b16 %v2141, %v2140
  %v2194 = vpack.c.b16 %v2143, %v2142
  %v2195 = vpack.c.b16 %v2145, %v2144
  %v2196 = vpack.c.b16 %v2147, %v2146
  %v2197 = vpack.c.b16 %v2149, %v2148
  %v2198 = vpack.c.b16 %v2151, %v2150
  %v2199 = vpack.c.b16 %v2153, %v2152
  %v2200 = vpack.c.b16 %v2155, %v2154
  %v2201 = vpack.c.b16 %v2157, %v2156
  %v2202 = vpack.c.b16 %v2159, %v2158
  %v2203 = vpack.c.b16 %v2161, %v2160
  %v2204 = vpack.c.b16 %v2163, %v2162
  %v2205 = vpack.c.b16 %v2165, %v2164
  %v2206 = vpack.c.b16 %v2167, %v2166
  %v2207 = vpack.c.b16 %v2169, %v2168
  %v2208 = vpack.c.b16 %v2171, %v2170
  %v2209 = vpack.c.b16 %v2173, %v2172
  %v2210 = vpack.c.b16 %v2175, %v2174
  %v2211 = vpack.c.b16 %v2177, %v2176
  %v2212 = vpack.c.b16 %v2179, %v2178
  %v2213 = vpack.c.b16 %v2181, %v2180
  %2246 = vmatprep.subr.bf16.mxu0 0
  %2247 = vmatpush1.bf16.msra.mxu0 %v2189
  %2248 = vmatprep.subr.bf16.mxu0 0
  %2249 = vmatpush1.bf16.msra.mxu0 %v2188
  %2250 = vmatprep.subr.bf16.mxu0 0
  %2251 = vmatpush1.bf16.msra.mxu0 %v2187
  %2252 = vmatprep.subr.bf16.mxu0 0
  %2253 = vmatpush1.bf16.msra.mxu0 %v2186
  %2254 = vmatprep.subr.bf16.mxu0 0
  %2255 = vmatpush1.bf16.msra.mxu0 %v2185
  %2256 = vmatprep.subr.bf16.mxu0 0
  %2257 = vmatpush1.bf16.msra.mxu0 %v2184
  %2258 = vmatprep.subr.bf16.mxu0 0
  %2259 = vmatpush1.bf16.msra.mxu0 %v2183
  %2260 = vmatprep.subr.bf16.mxu0 0
  %2261 = vmatpush1.bf16.msra.mxu0 %v2182
  %2262 = vmatprep.subr.bf16.mxu0 0
  %2263 = vmatpush2.bf16.msra.mxu0 %v2197
  %2264 = vmatprep.subr.bf16.mxu0 0
  %2265 = vmatpush2.bf16.msra.mxu0 %v2196
  %2266 = vmatprep.subr.bf16.mxu0 0
  %2267 = vmatpush2.bf16.msra.mxu0 %v2195
  %2268 = vmatprep.subr.bf16.mxu0 0
  %2269 = vmatpush2.bf16.msra.mxu0 %v2194
  %2270 = vmatprep.subr.bf16.mxu0 0
  %2271 = vmatpush2.bf16.msra.mxu0 %v2193
  %2272 = vmatprep.subr.bf16.mxu0 0
  %2273 = vmatpush2.bf16.msra.mxu0 %v2192
  %2274 = vmatprep.subr.bf16.mxu0 0
  %2275 = vmatpush2.bf16.msra.mxu0 %v2191
  %2276 = vmatprep.subr.bf16.mxu0 0
  %2277 = vmatpush2.bf16.msra.mxu0 %v2190
  %2278 = vmatprep.mubr.bf16.mxu0 %v1980
  %2279 = vmatmul.mubr.bf16.gmra.mxu0 %v1979
  %v2280 = vpop.f32.mrf.mxu0
  %v2281 = vadd.f32 %v2052, %v2280
  %v2282 = vpop.f32.mrf.mxu0
  %v2283 = vpop.f32.mrf.mxu0
  %v2284 = vadd.f32 %v2052, %v2283
  %v2285 = vpop.f32.mrf.mxu0
  %2286 = vdwg.mxu0
  %2287 = vmatprep.subr.bf16.mxu0 0
  %2288 = vmatpush1.bf16.msra.mxu0 %v2205
  %2289 = vmatprep.subr.bf16.mxu0 0
  %2290 = vmatpush1.bf16.msra.mxu0 %v2204
  %2291 = vmatprep.subr.bf16.mxu0 0
  %2292 = vmatpush1.bf16.msra.mxu0 %v2203
  %2293 = vmatprep.subr.bf16.mxu0 0
  %2294 = vmatpush1.bf16.msra.mxu0 %v2202
  %2295 = vmatprep.subr.bf16.mxu0 0
  %2296 = vmatpush1.bf16.msra.mxu0 %v2201
  %2297 = vmatprep.subr.bf16.mxu0 0
  %2298 = vmatpush1.bf16.msra.mxu0 %v2200
  %2299 = vmatprep.subr.bf16.mxu0 0
  %2300 = vmatpush1.bf16.msra.mxu0 %v2199
  %2301 = vmatprep.subr.bf16.mxu0 0
  %2302 = vmatpush1.bf16.msra.mxu0 %v2198
  %2303 = vmatprep.subr.bf16.mxu0 0
  %2304 = vmatpush2.bf16.msra.mxu0 %v2213
  %2305 = vmatprep.subr.bf16.mxu0 0
  %2306 = vmatpush2.bf16.msra.mxu0 %v2212
  %2307 = vmatprep.subr.bf16.mxu0 0
  %2308 = vmatpush2.bf16.msra.mxu0 %v2211
  %2309 = vmatprep.subr.bf16.mxu0 0
  %2310 = vmatpush2.bf16.msra.mxu0 %v2210
  %2311 = vmatprep.subr.bf16.mxu0 0
  %2312 = vmatpush2.bf16.msra.mxu0 %v2209
  %2313 = vmatprep.subr.bf16.mxu0 0
  %2314 = vmatpush2.bf16.msra.mxu0 %v2208
  %2315 = vmatprep.subr.bf16.mxu0 0
  %2316 = vmatpush2.bf16.msra.mxu0 %v2207
  %2317 = vmatprep.subr.bf16.mxu0 0
  %2318 = vmatpush2.bf16.msra.mxu0 %v2206
  %2319 = vmatprep.mubr.bf16.mxu0 %v1982
  %2320 = vmatmul.mubr.bf16.gmra.mxu0 %v1981
  %v2321 = vpop.f32.mrf.mxu0
  %v2322 = vadd.f32 %v2281, %v2321
  %v2323 = vpop.f32.mrf.mxu0
  %v2324 = vpop.f32.mrf.mxu0
  %v2325 = vadd.f32 %v2284, %v2324
  %v2326 = vpop.f32.mrf.mxu0
  %2327 = vdwg.mxu0
  %2328 = vst [vmem:[%s5] sm:$0xff] %v2322
  %2329 = vst [vmem:[%s5 + $0x8] sm:$0xff] %v2325
  // Predicated region
  $region22: #{lenet_forward.5} parent=0 // pred_check
    _
  $region23: #{lenet_forward.5} parent=0 // pred_check_branch
    %2331 = sbr.rel (0) target = $region25
  $region24: #{lenet_forward.5} parent=0 // pred_region
    _
  $region25: #{lenet_forward.5} parent=0 // pred_fallthru
    _
  // Predicated region
  $region26: #{lenet_forward.5} parent=0 // pred_check
    _
  $region27: #{lenet_forward.5} parent=0 // pred_check_branch
    %2333 = sbr.rel (0) target = $region29
  $region28: #{lenet_forward.5} parent=0 // pred_region
    _
  $region29: #{lenet_forward.5} parent=0 // pred_fallthru
    _

</llo_original>
